<compile_context>
chip_gen: v7x
topology: tpu7x:2x2x1
jax: 0.10.0
libtpu: 0.0.40
codegen_flags: <defaults>
</compile_context>

<pallas_src>
import functools

import jax
import jax.numpy as jnp
from jax import lax
from jax.experimental import pallas as pl
from jax.experimental.pallas import tpu as pltpu

# ---- small deterministic config (scaled down from bert-base: hidden=768, n_class=1991) ----
VOCAB      = 128
TYPE_VOCAB = 2
MAX_POS    = 64
HIDDEN     = 64
N_HEADS    = 4
HEAD_DIM   = HIDDEN // N_HEADS
INTER      = 256
N_LAYERS   = 2
N_CLASS    = 32
CLS_PAD    = 128          # lane-dense padded classifier width (>= 128)
LN_EPS     = 1e-12


# ----------------------------- in-kernel helpers -----------------------------

def _ln(x, gamma, beta):
    mean = jnp.mean(x, axis=-1, keepdims=True)
    xc = x - mean
    var = jnp.mean(xc * xc, axis=-1, keepdims=True)
    inv = lax.rsqrt(var + LN_EPS)
    return (xc * inv) * gamma + beta


# ----------------------------- fused Pallas kernel -----------------------------

def _bert_kernel(x_ref, mask_ref, embg_ref, embb_ref,
                 wqkv_ref, bqkv_ref, wo_ref, bo_ref, ln1g_ref, ln1b_ref,
                 w1_ref, b1_ref, w2_ref, b2_ref, ln2g_ref, ln2b_ref,
                 pw_ref, pb_ref, cw_ref, cb_ref,
                 o_ref, hid_ref, *, batch, seq, n_heads, head_dim):
    l = pl.program_id(0)
    hidden = n_heads * head_dim

    @pl.when(l == 0)
    def _():
        # Embedding LayerNorm fused here (no separate launch / HBM round trip).
        hid_ref[...] = _ln(x_ref[...], embg_ref[...], embb_ref[...])

    h = hid_ref[...]                                          # (B*S, H) f32, VMEM-resident

    # ---- self-attention: fused QKV matmul, per-head scores, ONE batched softmax ----
    qkv = jnp.dot(h.astype(jnp.bfloat16), wqkv_ref[0],
                  preferred_element_type=jnp.float32) + bqkv_ref[0]      # (B*S, 3H)
    mask = mask_ref[...]                                      # (B, S) additive key bias
    ctx_rows = []
    for b in range(batch):
        qkv_b = qkv[b * seq:(b + 1) * seq, :]                 # (S, 3H)
        scores = []
        for hh in range(n_heads):                             # 1/sqrt(dH) folded into wqkv
            lo = hh * head_dim
            q_h = qkv_b[:, lo:lo + head_dim].astype(jnp.bfloat16)
            k_h = qkv_b[:, hidden + lo:hidden + lo + head_dim].astype(jnp.bfloat16)
            scores.append(lax.dot_general(q_h, k_h, (((1,), (1,)), ((), ())),
                                          preferred_element_type=jnp.float32))
        # stack heads along sublanes -> single softmax over (n_heads*S, S)
        s_all = jnp.concatenate(scores, axis=0) + mask[b:b + 1, :]
        m = jnp.max(s_all, axis=-1, keepdims=True)
        p = jnp.exp(s_all - m)
        denom = jnp.sum(p, axis=-1, keepdims=True)
        p = p * pl.reciprocal(denom, approx=True)             # EUP slot
        ctx_heads = []
        for hh in range(n_heads):
            lo = 2 * hidden + hh * head_dim
            v_h = qkv_b[:, lo:lo + head_dim].astype(jnp.bfloat16)
            p_h = p[hh * seq:(hh + 1) * seq, :].astype(jnp.bfloat16)
            ctx_heads.append(jnp.dot(p_h, v_h, preferred_element_type=jnp.float32))
        ctx_rows.append(jnp.concatenate(ctx_heads, axis=1))   # (S, H)
    ctx = jnp.concatenate(ctx_rows, axis=0)                   # (B*S, H)

    # single output projection (no per-head accumulation)
    attn = jnp.dot(ctx.astype(jnp.bfloat16), wo_ref[0],
                   preferred_element_type=jnp.float32) + bo_ref[0]

    # post-LN BERT: residual add + LayerNorm, all in VMEM / f32
    h1 = _ln(attn + h, ln1g_ref[0], ln1b_ref[0])

    # ---- FFN: w1 + gelu + w2, fused ----
    ff = jnp.dot(h1.astype(jnp.bfloat16), w1_ref[0],
                 preferred_element_type=jnp.float32) + b1_ref[0]
    # TODO(synk): HF BERT uses exact (erf) gelu; tanh approximation used here.
    ff = jax.nn.gelu(ff, approximate=True)
    ff = jnp.dot(ff.astype(jnp.bfloat16), w2_ref[0],
                 preferred_element_type=jnp.float32) + b2_ref[0]

    h2 = _ln(ff + h1, ln2g_ref[0], ln2b_ref[0])
    hid_ref[...] = h2                                         # carry to next layer (VMEM)

    # ---- pooler + classifier fused at the last layer; lane-dense (B, 128) output ----
    @pl.when(l == pl.num_programs(0) - 1)
    def _():
        cls = jnp.concatenate([h2[b * seq:b * seq + 1, :] for b in range(batch)], axis=0)
        pooled = jnp.tanh(jnp.dot(cls.astype(jnp.bfloat16), pw_ref[...],
                                  preferred_element_type=jnp.float32) + pb_ref[...])
        # TODO(synk): nn.Dropout(0.5) is identity under eval/inference semantics.
        logits = jnp.dot(pooled.astype(jnp.bfloat16), cw_ref[...],
                         preferred_element_type=jnp.float32) + cb_ref[...]
        o_ref[...] = logits.astype(o_ref.dtype)


def bert_encoder_and_head(h_emb, mask_bias, p, B, S):
    H, I, L = HIDDEN, INTER, N_LAYERS
    kernel = functools.partial(_bert_kernel, batch=B, seq=S,
                               n_heads=N_HEADS, head_dim=HEAD_DIM)
    const2 = lambda l: (0, 0)            # fetched once (block index never changes)
    mat = lambda l: (l, 0, 0)            # per-layer weight blocks -> auto-pipelined
    return pl.pallas_call(
        kernel,
        out_shape=jax.ShapeDtypeStruct((B, CLS_PAD), jnp.float32),
        grid=(L,),
        in_specs=[
            pl.BlockSpec((B * S, H), const2),          # embedding sum (pre-LN)
            pl.BlockSpec((B, S), const2),              # additive attention-mask bias
            pl.BlockSpec((1, H), const2),              # emb LN gamma
            pl.BlockSpec((1, H), const2),              # emb LN beta
            pl.BlockSpec((1, H, 3 * H), mat),          # wqkv  (bf16, scale folded into Q)
            pl.BlockSpec((1, 1, 3 * H), mat),          # bqkv
            pl.BlockSpec((1, H, H), mat),              # wo    (bf16)
            pl.BlockSpec((1, 1, H), mat),              # bo
            pl.BlockSpec((1, 1, H), mat),              # ln1 gamma
            pl.BlockSpec((1, 1, H), mat),              # ln1 beta
            pl.BlockSpec((1, H, I), mat),              # w1    (bf16)
            pl.BlockSpec((1, 1, I), mat),              # b1
            pl.BlockSpec((1, I, H), mat),              # w2    (bf16)
            pl.BlockSpec((1, 1, H), mat),              # b2
            pl.BlockSpec((1, 1, H), mat),              # ln2 gamma
            pl.BlockSpec((1, 1, H), mat),              # ln2 beta
            pl.BlockSpec((H, H), const2),              # pooler weight (bf16)
            pl.BlockSpec((1, H), const2),              # pooler bias
            pl.BlockSpec((H, CLS_PAD), const2),        # classifier weight, padded lane-dense
            pl.BlockSpec((1, CLS_PAD), const2),        # classifier bias, padded
        ],
        out_specs=pl.BlockSpec((B, CLS_PAD), const2),  # lane-dense (B, 128) logits block
        scratch_shapes=[pltpu.VMEM((B * S, H), jnp.float32)],   # hidden state, layer-resident
        compiler_params=pltpu.CompilerParams(
            dimension_semantics=("arbitrary",)),       # layer axis is a sequential carry
    )(h_emb, mask_bias,
      p['emb_ln_g'], p['emb_ln_b'],
      p['wqkv'], p['bqkv'], p['wo'], p['bo'],
      p['ln1_g'], p['ln1_b'],
      p['w1'], p['b1'], p['w2'], p['b2'],
      p['ln2_g'], p['ln2_b'],
      p['pool_w'], p['pool_b'], p['cls_w'], p['cls_b'])


# ----------------------------- Model forward -----------------------------

def bert_classify_forward(params, input_ids, attention_mask, token_type_ids):
    B, S = input_ids.shape
    H = HIDDEN

    # Embedding gathers + adds are glue (plain JAX); LN is fused into the kernel at l==0.
    h_emb = (params['word_emb'][input_ids]
             + params['pos_emb'][None, :S, :]
             + params['type_emb'][token_type_ids]).reshape(B * S, H)

    mask_bias = (1.0 - attention_mask.astype(jnp.float32)) * -1e9       # (B, S)

    logits_padded = bert_encoder_and_head(h_emb, mask_bias, params, B, S)
    return logits_padded[:, :N_CLASS]                                   # (B, N_CLASS)


# ----------------------------- Parameter init -----------------------------

def init_params(key):
    def dense(k, fan_in, fan_out):
        w = jax.random.normal(k, (fan_in, fan_out), jnp.float32) * 0.02
        b = jnp.zeros((fan_out,), jnp.float32)
        return w, b

    scale = 1.0 / (HEAD_DIM ** 0.5)
    keys = jax.random.split(key, 8 + N_LAYERS)

    pool_w, pool_b = dense(keys[3], HIDDEN, HIDDEN)
    cls_w, cls_b = dense(keys[4], HIDDEN, N_CLASS)
    # pad classifier to 128 lanes for a lane-dense output; extra columns are zero
    cls_w_pad = jnp.zeros((HIDDEN, CLS_PAD), jnp.float32).at[:, :N_CLASS].set(cls_w)
    cls_b_pad = jnp.zeros((CLS_PAD,), jnp.float32).at[:N_CLASS].set(cls_b)

    wqkv_l, bqkv_l, wo_l, bo_l, w1_l, b1_l, w2_l, b2_l = ([] for _ in range(8))
    for l in range(N_LAYERS):
        lk = jax.random.split(keys[8 + l], 4)
        wqkv, bqkv = dense(lk[0], HIDDEN, 3 * HIDDEN)          # fused Q|K|V projection
        # fold 1/sqrt(head_dim) into the Q columns (one-time weight transform)
        wqkv = wqkv.at[:, :HIDDEN].multiply(scale)
        bqkv = bqkv.at[:HIDDEN].multiply(scale)
        wo, bo = dense(lk[1], HIDDEN, HIDDEN)
        w1, b1 = dense(lk[2], HIDDEN, INTER)
        w2, b2 = dense(lk[3], INTER, HIDDEN)
        wqkv_l.append(wqkv); bqkv_l.append(bqkv)
        wo_l.append(wo); bo_l.append(bo)
        w1_l.append(w1); b1_l.append(b1)
        w2_l.append(w2); b2_l.append(b2)

    stack_mat = lambda xs: jnp.stack(xs).astype(jnp.bfloat16)   # (L, in, out) bf16 MXU operands
    stack_vec = lambda xs: jnp.stack(xs)[:, None, :]            # (L, 1, dim)   f32

    params = {
        'word_emb': jax.random.normal(keys[0], (VOCAB, HIDDEN), jnp.float32) * 0.02,
        'pos_emb':  jax.random.normal(keys[1], (MAX_POS, HIDDEN), jnp.float32) * 0.02,
        'type_emb': jax.random.normal(keys[2], (TYPE_VOCAB, HIDDEN), jnp.float32) * 0.02,
        'emb_ln_g': jnp.ones((1, HIDDEN), jnp.float32),
        'emb_ln_b': jnp.zeros((1, HIDDEN), jnp.float32),
        'pool_w': pool_w.astype(jnp.bfloat16),
        'pool_b': pool_b.reshape(1, HIDDEN),
        'cls_w': cls_w_pad.astype(jnp.bfloat16),
        'cls_b': cls_b_pad.reshape(1, CLS_PAD),
        'wqkv': stack_mat(wqkv_l), 'bqkv': stack_vec(bqkv_l),
        'wo':   stack_mat(wo_l),   'bo':   stack_vec(bo_l),
        'w1':   stack_mat(w1_l),   'b1':   stack_vec(b1_l),
        'w2':   stack_mat(w2_l),   'b2':   stack_vec(b2_l),
        'ln1_g': jnp.ones((N_LAYERS, 1, HIDDEN), jnp.float32),
        'ln1_b': jnp.zeros((N_LAYERS, 1, HIDDEN), jnp.float32),
        'ln2_g': jnp.ones((N_LAYERS, 1, HIDDEN), jnp.float32),
        'ln2_b': jnp.zeros((N_LAYERS, 1, HIDDEN), jnp.float32),
    }
    return params


# ----------------------------------- main -----------------------------------

if __name__ == "__main__":
    key = jax.random.PRNGKey(0)
    k_ids, k_params = jax.random.split(key)

    B, S = 2, 8
    input_ids = jax.random.randint(k_ids, (B, S), 0, VOCAB, dtype=jnp.int32)
    attention_mask = jnp.ones((B, S), jnp.int32).at[1, 6:].set(0)
    token_type_ids = jnp.zeros((B, S), jnp.int32).at[:, S // 2:].set(1)

    params = init_params(k_params)

    fwd = jax.jit(bert_classify_forward)
    logits = fwd(params, input_ids, attention_mask, token_type_ids)
    jax.block_until_ready(logits)

    assert logits.shape == (B, N_CLASS)
    assert logits.dtype == jnp.float32
    assert bool(jnp.all(jnp.isfinite(logits)))
    print("KERNEL_OK")
</pallas_src>

<mosaic_0001>
module attributes {stable_mosaic.version = 11 : i64} {
  func.func @_bert_kernel(%arg0: i32, %arg1: memref<16x64xf32, #tpu.memory_space<vmem>>, %arg2: memref<2x8xf32, #tpu.memory_space<vmem>>, %arg3: memref<1x64xf32, #tpu.memory_space<vmem>>, %arg4: memref<1x64xf32, #tpu.memory_space<vmem>>, %arg5: memref<1x64x192xbf16, #tpu.memory_space<vmem>>, %arg6: memref<1x1x192xf32, #tpu.memory_space<vmem>>, %arg7: memref<1x64x64xbf16, #tpu.memory_space<vmem>>, %arg8: memref<1x1x64xf32, #tpu.memory_space<vmem>>, %arg9: memref<1x1x64xf32, #tpu.memory_space<vmem>>, %arg10: memref<1x1x64xf32, #tpu.memory_space<vmem>>, %arg11: memref<1x64x256xbf16, #tpu.memory_space<vmem>>, %arg12: memref<1x1x256xf32, #tpu.memory_space<vmem>>, %arg13: memref<1x256x64xbf16, #tpu.memory_space<vmem>>, %arg14: memref<1x1x64xf32, #tpu.memory_space<vmem>>, %arg15: memref<1x1x64xf32, #tpu.memory_space<vmem>>, %arg16: memref<1x1x64xf32, #tpu.memory_space<vmem>>, %arg17: memref<64x64xbf16, #tpu.memory_space<vmem>>, %arg18: memref<1x64xf32, #tpu.memory_space<vmem>>, %arg19: memref<64x128xbf16, #tpu.memory_space<vmem>>, %arg20: memref<1x128xf32, #tpu.memory_space<vmem>>, %arg21: memref<2x128xf32, #tpu.memory_space<vmem>>, %arg22: memref<16x64xf32, #tpu.memory_space<vmem>>) attributes {dimension_semantics = [#tpu.dimension_semantics<arbitrary>], iteration_bounds = array<i64: 2>, scalar_prefetch = 0 : i64, scratch_operands = 1 : i64, tpu.core_type = #tpu.core_type<tc>, window_params = [{pipeline_mode = #tpu.pipeline_mode<synchronous>, transform_indices = @transform_0, window_bounds = array<i64: 16, 64>}, {pipeline_mode = #tpu.pipeline_mode<synchronous>, transform_indices = @transform_1, window_bounds = array<i64: 2, 8>}, {pipeline_mode = #tpu.pipeline_mode<synchronous>, transform_indices = @transform_2, window_bounds = array<i64: 1, 64>}, {pipeline_mode = #tpu.pipeline_mode<synchronous>, transform_indices = @transform_3, window_bounds = array<i64: 1, 64>}, {transform_indices = @transform_4, window_bounds = array<i64: 1, 64, 192>}, {transform_indices = @transform_5, window_bounds = array<i64: 1, 1, 192>}, {transform_indices = @transform_6, window_bounds = array<i64: 1, 64, 64>}, {transform_indices = @transform_7, window_bounds = array<i64: 1, 1, 64>}, {transform_indices = @transform_8, window_bounds = array<i64: 1, 1, 64>}, {transform_indices = @transform_9, window_bounds = array<i64: 1, 1, 64>}, {transform_indices = @transform_10, window_bounds = array<i64: 1, 64, 256>}, {transform_indices = @transform_11, window_bounds = array<i64: 1, 1, 256>}, {transform_indices = @transform_12, window_bounds = array<i64: 1, 256, 64>}, {transform_indices = @transform_13, window_bounds = array<i64: 1, 1, 64>}, {transform_indices = @transform_14, window_bounds = array<i64: 1, 1, 64>}, {transform_indices = @transform_15, window_bounds = array<i64: 1, 1, 64>}, {pipeline_mode = #tpu.pipeline_mode<synchronous>, transform_indices = @transform_16, window_bounds = array<i64: 64, 64>}, {pipeline_mode = #tpu.pipeline_mode<synchronous>, transform_indices = @transform_17, window_bounds = array<i64: 1, 64>}, {pipeline_mode = #tpu.pipeline_mode<synchronous>, transform_indices = @transform_18, window_bounds = array<i64: 64, 128>}, {pipeline_mode = #tpu.pipeline_mode<synchronous>, transform_indices = @transform_19, window_bounds = array<i64: 1, 128>}, {pipeline_mode = #tpu.pipeline_mode<synchronous>, transform_indices = @transform_20, window_bounds = array<i64: 2, 128>}]} {
    %c0_i32 = arith.constant 0 : i32
    %0 = arith.cmpi eq, %arg0, %c0_i32 : i32
    %1 = arith.extui %0 : i1 to i32
    %c0_i32_0 = arith.constant 0 : i32
    %2 = arith.cmpi ne, %1, %c0_i32_0 : i32
    scf.if %2 {
      %c0_80 = arith.constant 0 : index
      %c0_81 = arith.constant 0 : index
      %217 = vector.load %arg1[%c0_80, %c0_81] : memref<16x64xf32, #tpu.memory_space<vmem>>, vector<16x64xf32>
      %c0_82 = arith.constant 0 : index
      %c0_83 = arith.constant 0 : index
      %218 = vector.load %arg3[%c0_82, %c0_83] : memref<1x64xf32, #tpu.memory_space<vmem>>, vector<1x64xf32>
      %c0_84 = arith.constant 0 : index
      %c0_85 = arith.constant 0 : index
      %219 = vector.load %arg4[%c0_84, %c0_85] : memref<1x64xf32, #tpu.memory_space<vmem>>, vector<1x64xf32>
      %cst_86 = arith.constant dense<0.000000e+00> : vector<16xf32>
      %220 = vector.multi_reduction <add>, %217, %cst_86 [1] : vector<16x64xf32> to vector<16xf32>
      %221 = vector.shape_cast %220 : vector<16xf32> to vector<16x1xf32>
      %cst_87 = arith.constant 6.400000e+01 : f32
      %222 = vector.broadcast %cst_87 : f32 to vector<16x1xf32>
      %223 = arith.divf %221, %222 : vector<16x1xf32>
      %224 = vector.broadcast %223 : vector<16x1xf32> to vector<16x64xf32>
      %225 = arith.subf %217, %224 : vector<16x64xf32>
      %226 = arith.mulf %225, %225 : vector<16x64xf32>
      %cst_88 = arith.constant dense<0.000000e+00> : vector<16xf32>
      %227 = vector.multi_reduction <add>, %226, %cst_88 [1] : vector<16x64xf32> to vector<16xf32>
      %228 = vector.shape_cast %227 : vector<16xf32> to vector<16x1xf32>
      %cst_89 = arith.constant 6.400000e+01 : f32
      %229 = vector.broadcast %cst_89 : f32 to vector<16x1xf32>
      %230 = arith.divf %228, %229 : vector<16x1xf32>
      %cst_90 = arith.constant 9.99999996E-13 : f32
      %231 = vector.broadcast %cst_90 : f32 to vector<16x1xf32>
      %232 = arith.addf %230, %231 : vector<16x1xf32>
      %233 = math.rsqrt %232 : vector<16x1xf32>
      %234 = vector.broadcast %233 : vector<16x1xf32> to vector<16x64xf32>
      %235 = arith.mulf %225, %234 : vector<16x64xf32>
      %236 = vector.broadcast %218 : vector<1x64xf32> to vector<16x64xf32>
      %237 = arith.mulf %235, %236 : vector<16x64xf32>
      %238 = vector.broadcast %219 : vector<1x64xf32> to vector<16x64xf32>
      %239 = arith.addf %237, %238 : vector<16x64xf32>
      %c0_91 = arith.constant 0 : index
      %c0_92 = arith.constant 0 : index
      %240 = vector.load %arg22[%c0_91, %c0_92] : memref<16x64xf32, #tpu.memory_space<vmem>>, vector<16x64xf32>
      tpu.vector_store %arg22[%c0_91, %c0_92], %239 {strides = array<i32>} : memref<16x64xf32, #tpu.memory_space<vmem>>, vector<16x64xf32>,
    } else {
    }
    %c0 = arith.constant 0 : index
    %c0_1 = arith.constant 0 : index
    %3 = vector.load %arg22[%c0, %c0_1] : memref<16x64xf32, #tpu.memory_space<vmem>>, vector<16x64xf32>
    %4 = arith.truncf %3 : vector<16x64xf32> to vector<16x64xbf16>
    %c0_2 = arith.constant 0 : index
    %c0_3 = arith.constant 0 : index
    %c0_4 = arith.constant 0 : index
    %5 = vector.load %arg5[%c0_2, %c0_3, %c0_4] : memref<1x64x192xbf16, #tpu.memory_space<vmem>>, vector<1x64x192xbf16>
    %6 = vector.shape_cast %5 : vector<1x64x192xbf16> to vector<64x192xbf16>
    %cst = arith.constant dense<0.000000e+00> : vector<16x192xf32>
    %7 = tpu.matmul %4, %6, %cst {dimension_numbers = #tpu.dot_dimension_numbers<[1], [0], [0], [1], [0, 0, 1, 1], [], []>} : vector<16x64xbf16>, vector<64x192xbf16>, vector<16x192xf32> -> vector<16x192xf32>
    %c0_5 = arith.constant 0 : index
    %c0_6 = arith.constant 0 : index
    %c0_7 = arith.constant 0 : index
    %8 = vector.load %arg6[%c0_5, %c0_6, %c0_7] : memref<1x1x192xf32, #tpu.memory_space<vmem>>, vector<1x1x192xf32>
    %9 = vector.shape_cast %8 : vector<1x1x192xf32> to vector<1x192xf32>
    %10 = vector.broadcast %9 : vector<1x192xf32> to vector<16x192xf32>
    %11 = arith.addf %7, %10 : vector<16x192xf32>
    %c0_8 = arith.constant 0 : index
    %c0_9 = arith.constant 0 : index
    %12 = vector.load %arg2[%c0_8, %c0_9] : memref<2x8xf32, #tpu.memory_space<vmem>>, vector<2x8xf32>
    %13 = vector.extract_strided_slice %11 {offsets = [0, 0], sizes = [8, 192], strides = [1, 1]} : vector<16x192xf32> to vector<8x192xf32>
    %14 = vector.extract_strided_slice %13 {offsets = [0, 0], sizes = [8, 16], strides = [1, 1]} : vector<8x192xf32> to vector<8x16xf32>
    %15 = arith.truncf %14 : vector<8x16xf32> to vector<8x16xbf16>
    %16 = vector.extract_strided_slice %13 {offsets = [0, 64], sizes = [8, 16], strides = [1, 1]} : vector<8x192xf32> to vector<8x16xf32>
    %17 = arith.truncf %16 : vector<8x16xf32> to vector<8x16xbf16>
    %cst_10 = arith.constant dense<0.000000e+00> : vector<8x8xf32>
    %18 = tpu.matmul %15, %17, %cst_10 {dimension_numbers = #tpu.dot_dimension_numbers<[1], [1], [0], [0], [0, 0, 1, 0], [], []>} : vector<8x16xbf16>, vector<8x16xbf16>, vector<8x8xf32> -> vector<8x8xf32>
    %19 = vector.extract_strided_slice %13 {offsets = [0, 16], sizes = [8, 16], strides = [1, 1]} : vector<8x192xf32> to vector<8x16xf32>
    %20 = arith.truncf %19 : vector<8x16xf32> to vector<8x16xbf16>
    %21 = vector.extract_strided_slice %13 {offsets = [0, 80], sizes = [8, 16], strides = [1, 1]} : vector<8x192xf32> to vector<8x16xf32>
    %22 = arith.truncf %21 : vector<8x16xf32> to vector<8x16xbf16>
    %cst_11 = arith.constant dense<0.000000e+00> : vector<8x8xf32>
    %23 = tpu.matmul %20, %22, %cst_11 {dimension_numbers = #tpu.dot_dimension_numbers<[1], [1], [0], [0], [0, 0, 1, 0], [], []>} : vector<8x16xbf16>, vector<8x16xbf16>, vector<8x8xf32> -> vector<8x8xf32>
    %24 = vector.extract_strided_slice %13 {offsets = [0, 32], sizes = [8, 16], strides = [1, 1]} : vector<8x192xf32> to vector<8x16xf32>
    %25 = arith.truncf %24 : vector<8x16xf32> to vector<8x16xbf16>
    %26 = vector.extract_strided_slice %13 {offsets = [0, 96], sizes = [8, 16], strides = [1, 1]} : vector<8x192xf32> to vector<8x16xf32>
    %27 = arith.truncf %26 : vector<8x16xf32> to vector<8x16xbf16>
    %cst_12 = arith.constant dense<0.000000e+00> : vector<8x8xf32>
    %28 = tpu.matmul %25, %27, %cst_12 {dimension_numbers = #tpu.dot_dimension_numbers<[1], [1], [0], [0], [0, 0, 1, 0], [], []>} : vector<8x16xbf16>, vector<8x16xbf16>, vector<8x8xf32> -> vector<8x8xf32>
    %29 = vector.extract_strided_slice %13 {offsets = [0, 48], sizes = [8, 16], strides = [1, 1]} : vector<8x192xf32> to vector<8x16xf32>
    %30 = arith.truncf %29 : vector<8x16xf32> to vector<8x16xbf16>
    %31 = vector.extract_strided_slice %13 {offsets = [0, 112], sizes = [8, 16], strides = [1, 1]} : vector<8x192xf32> to vector<8x16xf32>
    %32 = arith.truncf %31 : vector<8x16xf32> to vector<8x16xbf16>
    %cst_13 = arith.constant dense<0.000000e+00> : vector<8x8xf32>
    %33 = tpu.matmul %30, %32, %cst_13 {dimension_numbers = #tpu.dot_dimension_numbers<[1], [1], [0], [0], [0, 0, 1, 0], [], []>} : vector<8x16xbf16>, vector<8x16xbf16>, vector<8x8xf32> -> vector<8x8xf32>
    %34 = tpu.concatenate %18, %23, %28, %33 in 0 : vector<8x8xf32>, vector<8x8xf32>, vector<8x8xf32>, vector<8x8xf32> -> vector<32x8xf32>
    %35 = vector.extract_strided_slice %12 {offsets = [0, 0], sizes = [1, 8], strides = [1, 1]} : vector<2x8xf32> to vector<1x8xf32>
    %36 = vector.broadcast %35 : vector<1x8xf32> to vector<32x8xf32>
    %37 = arith.addf %34, %36 : vector<32x8xf32>
    %cst_14 = arith.constant dense<0xFF800000> : vector<32xf32>
    %38 = vector.multi_reduction <maximumf>, %37, %cst_14 [1] : vector<32x8xf32> to vector<32xf32>
    %39 = vector.shape_cast %38 : vector<32xf32> to vector<32x1xf32>
    %40 = vector.broadcast %39 : vector<32x1xf32> to vector<32x8xf32>
    %41 = arith.subf %37, %40 : vector<32x8xf32>
    %42 = math.exp %41 : vector<32x8xf32>
    %cst_15 = arith.constant dense<0.000000e+00> : vector<32xf32>
    %43 = vector.multi_reduction <add>, %42, %cst_15 [1] : vector<32x8xf32> to vector<32xf32>
    %44 = vector.shape_cast %43 : vector<32xf32> to vector<32x1xf32>
    %45 = tpu.reciprocal %44 {approx = true} : vector<32x1xf32> -> vector<32x1xf32>
    %46 = vector.broadcast %45 : vector<32x1xf32> to vector<32x8xf32>
    %47 = arith.mulf %42, %46 : vector<32x8xf32>
    %48 = vector.extract_strided_slice %13 {offsets = [0, 128], sizes = [8, 16], strides = [1, 1]} : vector<8x192xf32> to vector<8x16xf32>
    %49 = arith.truncf %48 : vector<8x16xf32> to vector<8x16xbf16>
    %50 = vector.extract_strided_slice %47 {offsets = [0, 0], sizes = [8, 8], strides = [1, 1]} : vector<32x8xf32> to vector<8x8xf32>
    %51 = arith.truncf %50 : vector<8x8xf32> to vector<8x8xbf16>
    %cst_16 = arith.constant dense<0.000000e+00> : vector<8x16xf32>
    %52 = tpu.matmul %51, %49, %cst_16 {dimension_numbers = #tpu.dot_dimension_numbers<[1], [0], [0], [1], [0, 0, 1, 1], [], []>} : vector<8x8xbf16>, vector<8x16xbf16>, vector<8x16xf32> -> vector<8x16xf32>
    %53 = vector.extract_strided_slice %13 {offsets = [0, 144], sizes = [8, 16], strides = [1, 1]} : vector<8x192xf32> to vector<8x16xf32>
    %54 = arith.truncf %53 : vector<8x16xf32> to vector<8x16xbf16>
    %55 = vector.extract_strided_slice %47 {offsets = [8, 0], sizes = [8, 8], strides = [1, 1]} : vector<32x8xf32> to vector<8x8xf32>
    %56 = arith.truncf %55 : vector<8x8xf32> to vector<8x8xbf16>
    %cst_17 = arith.constant dense<0.000000e+00> : vector<8x16xf32>
    %57 = tpu.matmul %56, %54, %cst_17 {dimension_numbers = #tpu.dot_dimension_numbers<[1], [0], [0], [1], [0, 0, 1, 1], [], []>} : vector<8x8xbf16>, vector<8x16xbf16>, vector<8x16xf32> -> vector<8x16xf32>
    %58 = vector.extract_strided_slice %13 {offsets = [0, 160], sizes = [8, 16], strides = [1, 1]} : vector<8x192xf32> to vector<8x16xf32>
    %59 = arith.truncf %58 : vector<8x16xf32> to vector<8x16xbf16>
    %60 = vector.extract_strided_slice %47 {offsets = [16, 0], sizes = [8, 8], strides = [1, 1]} : vector<32x8xf32> to vector<8x8xf32>
    %61 = arith.truncf %60 : vector<8x8xf32> to vector<8x8xbf16>
    %cst_18 = arith.constant dense<0.000000e+00> : vector<8x16xf32>
    %62 = tpu.matmul %61, %59, %cst_18 {dimension_numbers = #tpu.dot_dimension_numbers<[1], [0], [0], [1], [0, 0, 1, 1], [], []>} : vector<8x8xbf16>, vector<8x16xbf16>, vector<8x16xf32> -> vector<8x16xf32>
    %63 = vector.extract_strided_slice %13 {offsets = [0, 176], sizes = [8, 16], strides = [1, 1]} : vector<8x192xf32> to vector<8x16xf32>
    %64 = arith.truncf %63 : vector<8x16xf32> to vector<8x16xbf16>
    %65 = vector.extract_strided_slice %47 {offsets = [24, 0], sizes = [8, 8], strides = [1, 1]} : vector<32x8xf32> to vector<8x8xf32>
    %66 = arith.truncf %65 : vector<8x8xf32> to vector<8x8xbf16>
    %cst_19 = arith.constant dense<0.000000e+00> : vector<8x16xf32>
    %67 = tpu.matmul %66, %64, %cst_19 {dimension_numbers = #tpu.dot_dimension_numbers<[1], [0], [0], [1], [0, 0, 1, 1], [], []>} : vector<8x8xbf16>, vector<8x16xbf16>, vector<8x16xf32> -> vector<8x16xf32>
    %68 = tpu.concatenate %52, %57, %62, %67 in 1 : vector<8x16xf32>, vector<8x16xf32>, vector<8x16xf32>, vector<8x16xf32> -> vector<8x64xf32>
    %69 = vector.extract_strided_slice %11 {offsets = [8, 0], sizes = [8, 192], strides = [1, 1]} : vector<16x192xf32> to vector<8x192xf32>
    %70 = vector.extract_strided_slice %69 {offsets = [0, 0], sizes = [8, 16], strides = [1, 1]} : vector<8x192xf32> to vector<8x16xf32>
    %71 = arith.truncf %70 : vector<8x16xf32> to vector<8x16xbf16>
    %72 = vector.extract_strided_slice %69 {offsets = [0, 64], sizes = [8, 16], strides = [1, 1]} : vector<8x192xf32> to vector<8x16xf32>
    %73 = arith.truncf %72 : vector<8x16xf32> to vector<8x16xbf16>
    %cst_20 = arith.constant dense<0.000000e+00> : vector<8x8xf32>
    %74 = tpu.matmul %71, %73, %cst_20 {dimension_numbers = #tpu.dot_dimension_numbers<[1], [1], [0], [0], [0, 0, 1, 0], [], []>} : vector<8x16xbf16>, vector<8x16xbf16>, vector<8x8xf32> -> vector<8x8xf32>
    %75 = vector.extract_strided_slice %69 {offsets = [0, 16], sizes = [8, 16], strides = [1, 1]} : vector<8x192xf32> to vector<8x16xf32>
    %76 = arith.truncf %75 : vector<8x16xf32> to vector<8x16xbf16>
    %77 = vector.extract_strided_slice %69 {offsets = [0, 80], sizes = [8, 16], strides = [1, 1]} : vector<8x192xf32> to vector<8x16xf32>
    %78 = arith.truncf %77 : vector<8x16xf32> to vector<8x16xbf16>
    %cst_21 = arith.constant dense<0.000000e+00> : vector<8x8xf32>
    %79 = tpu.matmul %76, %78, %cst_21 {dimension_numbers = #tpu.dot_dimension_numbers<[1], [1], [0], [0], [0, 0, 1, 0], [], []>} : vector<8x16xbf16>, vector<8x16xbf16>, vector<8x8xf32> -> vector<8x8xf32>
    %80 = vector.extract_strided_slice %69 {offsets = [0, 32], sizes = [8, 16], strides = [1, 1]} : vector<8x192xf32> to vector<8x16xf32>
    %81 = arith.truncf %80 : vector<8x16xf32> to vector<8x16xbf16>
    %82 = vector.extract_strided_slice %69 {offsets = [0, 96], sizes = [8, 16], strides = [1, 1]} : vector<8x192xf32> to vector<8x16xf32>
    %83 = arith.truncf %82 : vector<8x16xf32> to vector<8x16xbf16>
    %cst_22 = arith.constant dense<0.000000e+00> : vector<8x8xf32>
    %84 = tpu.matmul %81, %83, %cst_22 {dimension_numbers = #tpu.dot_dimension_numbers<[1], [1], [0], [0], [0, 0, 1, 0], [], []>} : vector<8x16xbf16>, vector<8x16xbf16>, vector<8x8xf32> -> vector<8x8xf32>
    %85 = vector.extract_strided_slice %69 {offsets = [0, 48], sizes = [8, 16], strides = [1, 1]} : vector<8x192xf32> to vector<8x16xf32>
    %86 = arith.truncf %85 : vector<8x16xf32> to vector<8x16xbf16>
    %87 = vector.extract_strided_slice %69 {offsets = [0, 112], sizes = [8, 16], strides = [1, 1]} : vector<8x192xf32> to vector<8x16xf32>
    %88 = arith.truncf %87 : vector<8x16xf32> to vector<8x16xbf16>
    %cst_23 = arith.constant dense<0.000000e+00> : vector<8x8xf32>
    %89 = tpu.matmul %86, %88, %cst_23 {dimension_numbers = #tpu.dot_dimension_numbers<[1], [1], [0], [0], [0, 0, 1, 0], [], []>} : vector<8x16xbf16>, vector<8x16xbf16>, vector<8x8xf32> -> vector<8x8xf32>
    %90 = tpu.concatenate %74, %79, %84, %89 in 0 : vector<8x8xf32>, vector<8x8xf32>, vector<8x8xf32>, vector<8x8xf32> -> vector<32x8xf32>
    %91 = vector.extract_strided_slice %12 {offsets = [1, 0], sizes = [1, 8], strides = [1, 1]} : vector<2x8xf32> to vector<1x8xf32>
    %92 = vector.broadcast %91 : vector<1x8xf32> to vector<32x8xf32>
    %93 = arith.addf %90, %92 : vector<32x8xf32>
    %cst_24 = arith.constant dense<0xFF800000> : vector<32xf32>
    %94 = vector.multi_reduction <maximumf>, %93, %cst_24 [1] : vector<32x8xf32> to vector<32xf32>
    %95 = vector.shape_cast %94 : vector<32xf32> to vector<32x1xf32>
    %96 = vector.broadcast %95 : vector<32x1xf32> to vector<32x8xf32>
    %97 = arith.subf %93, %96 : vector<32x8xf32>
    %98 = math.exp %97 : vector<32x8xf32>
    %cst_25 = arith.constant dense<0.000000e+00> : vector<32xf32>
    %99 = vector.multi_reduction <add>, %98, %cst_25 [1] : vector<32x8xf32> to vector<32xf32>
    %100 = vector.shape_cast %99 : vector<32xf32> to vector<32x1xf32>
    %101 = tpu.reciprocal %100 {approx = true} : vector<32x1xf32> -> vector<32x1xf32>
    %102 = vector.broadcast %101 : vector<32x1xf32> to vector<32x8xf32>
    %103 = arith.mulf %98, %102 : vector<32x8xf32>
    %104 = vector.extract_strided_slice %69 {offsets = [0, 128], sizes = [8, 16], strides = [1, 1]} : vector<8x192xf32> to vector<8x16xf32>
    %105 = arith.truncf %104 : vector<8x16xf32> to vector<8x16xbf16>
    %106 = vector.extract_strided_slice %103 {offsets = [0, 0], sizes = [8, 8], strides = [1, 1]} : vector<32x8xf32> to vector<8x8xf32>
    %107 = arith.truncf %106 : vector<8x8xf32> to vector<8x8xbf16>
    %cst_26 = arith.constant dense<0.000000e+00> : vector<8x16xf32>
    %108 = tpu.matmul %107, %105, %cst_26 {dimension_numbers = #tpu.dot_dimension_numbers<[1], [0], [0], [1], [0, 0, 1, 1], [], []>} : vector<8x8xbf16>, vector<8x16xbf16>, vector<8x16xf32> -> vector<8x16xf32>
    %109 = vector.extract_strided_slice %69 {offsets = [0, 144], sizes = [8, 16], strides = [1, 1]} : vector<8x192xf32> to vector<8x16xf32>
    %110 = arith.truncf %109 : vector<8x16xf32> to vector<8x16xbf16>
    %111 = vector.extract_strided_slice %103 {offsets = [8, 0], sizes = [8, 8], strides = [1, 1]} : vector<32x8xf32> to vector<8x8xf32>
    %112 = arith.truncf %111 : vector<8x8xf32> to vector<8x8xbf16>
    %cst_27 = arith.constant dense<0.000000e+00> : vector<8x16xf32>
    %113 = tpu.matmul %112, %110, %cst_27 {dimension_numbers = #tpu.dot_dimension_numbers<[1], [0], [0], [1], [0, 0, 1, 1], [], []>} : vector<8x8xbf16>, vector<8x16xbf16>, vector<8x16xf32> -> vector<8x16xf32>
    %114 = vector.extract_strided_slice %69 {offsets = [0, 160], sizes = [8, 16], strides = [1, 1]} : vector<8x192xf32> to vector<8x16xf32>
    %115 = arith.truncf %114 : vector<8x16xf32> to vector<8x16xbf16>
    %116 = vector.extract_strided_slice %103 {offsets = [16, 0], sizes = [8, 8], strides = [1, 1]} : vector<32x8xf32> to vector<8x8xf32>
    %117 = arith.truncf %116 : vector<8x8xf32> to vector<8x8xbf16>
    %cst_28 = arith.constant dense<0.000000e+00> : vector<8x16xf32>
    %118 = tpu.matmul %117, %115, %cst_28 {dimension_numbers = #tpu.dot_dimension_numbers<[1], [0], [0], [1], [0, 0, 1, 1], [], []>} : vector<8x8xbf16>, vector<8x16xbf16>, vector<8x16xf32> -> vector<8x16xf32>
    %119 = vector.extract_strided_slice %69 {offsets = [0, 176], sizes = [8, 16], strides = [1, 1]} : vector<8x192xf32> to vector<8x16xf32>
    %120 = arith.truncf %119 : vector<8x16xf32> to vector<8x16xbf16>
    %121 = vector.extract_strided_slice %103 {offsets = [24, 0], sizes = [8, 8], strides = [1, 1]} : vector<32x8xf32> to vector<8x8xf32>
    %122 = arith.truncf %121 : vector<8x8xf32> to vector<8x8xbf16>
    %cst_29 = arith.constant dense<0.000000e+00> : vector<8x16xf32>
    %123 = tpu.matmul %122, %120, %cst_29 {dimension_numbers = #tpu.dot_dimension_numbers<[1], [0], [0], [1], [0, 0, 1, 1], [], []>} : vector<8x8xbf16>, vector<8x16xbf16>, vector<8x16xf32> -> vector<8x16xf32>
    %124 = tpu.concatenate %108, %113, %118, %123 in 1 : vector<8x16xf32>, vector<8x16xf32>, vector<8x16xf32>, vector<8x16xf32> -> vector<8x64xf32>
    %125 = tpu.concatenate %68, %124 in 0 : vector<8x64xf32>, vector<8x64xf32> -> vector<16x64xf32>
    %126 = arith.truncf %125 : vector<16x64xf32> to vector<16x64xbf16>
    %c0_30 = arith.constant 0 : index
    %c0_31 = arith.constant 0 : index
    %c0_32 = arith.constant 0 : index
    %127 = vector.load %arg7[%c0_30, %c0_31, %c0_32] : memref<1x64x64xbf16, #tpu.memory_space<vmem>>, vector<1x64x64xbf16>
    %128 = vector.shape_cast %127 : vector<1x64x64xbf16> to vector<64x64xbf16>
    %cst_33 = arith.constant dense<0.000000e+00> : vector<16x64xf32>
    %129 = tpu.matmul %126, %128, %cst_33 {dimension_numbers = #tpu.dot_dimension_numbers<[1], [0], [0], [1], [0, 0, 1, 1], [], []>} : vector<16x64xbf16>, vector<64x64xbf16>, vector<16x64xf32> -> vector<16x64xf32>
    %c0_34 = arith.constant 0 : index
    %c0_35 = arith.constant 0 : index
    %c0_36 = arith.constant 0 : index
    %130 = vector.load %arg8[%c0_34, %c0_35, %c0_36] : memref<1x1x64xf32, #tpu.memory_space<vmem>>, vector<1x1x64xf32>
    %131 = vector.shape_cast %130 : vector<1x1x64xf32> to vector<1x64xf32>
    %132 = vector.broadcast %131 : vector<1x64xf32> to vector<16x64xf32>
    %133 = arith.addf %129, %132 : vector<16x64xf32>
    %134 = arith.addf %133, %3 : vector<16x64xf32>
    %c0_37 = arith.constant 0 : index
    %c0_38 = arith.constant 0 : index
    %c0_39 = arith.constant 0 : index
    %135 = vector.load %arg9[%c0_37, %c0_38, %c0_39] : memref<1x1x64xf32, #tpu.memory_space<vmem>>, vector<1x1x64xf32>
    %136 = vector.shape_cast %135 : vector<1x1x64xf32> to vector<1x64xf32>
    %c0_40 = arith.constant 0 : index
    %c0_41 = arith.constant 0 : index
    %c0_42 = arith.constant 0 : index
    %137 = vector.load %arg10[%c0_40, %c0_41, %c0_42] : memref<1x1x64xf32, #tpu.memory_space<vmem>>, vector<1x1x64xf32>
    %138 = vector.shape_cast %137 : vector<1x1x64xf32> to vector<1x64xf32>
    %cst_43 = arith.constant dense<0.000000e+00> : vector<16xf32>
    %139 = vector.multi_reduction <add>, %134, %cst_43 [1] : vector<16x64xf32> to vector<16xf32>
    %140 = vector.shape_cast %139 : vector<16xf32> to vector<16x1xf32>
    %cst_44 = arith.constant 6.400000e+01 : f32
    %141 = vector.broadcast %cst_44 : f32 to vector<16x1xf32>
    %142 = arith.divf %140, %141 : vector<16x1xf32>
    %143 = vector.broadcast %142 : vector<16x1xf32> to vector<16x64xf32>
    %144 = arith.subf %134, %143 : vector<16x64xf32>
    %145 = arith.mulf %144, %144 : vector<16x64xf32>
    %cst_45 = arith.constant dense<0.000000e+00> : vector<16xf32>
    %146 = vector.multi_reduction <add>, %145, %cst_45 [1] : vector<16x64xf32> to vector<16xf32>
    %147 = vector.shape_cast %146 : vector<16xf32> to vector<16x1xf32>
    %cst_46 = arith.constant 6.400000e+01 : f32
    %148 = vector.broadcast %cst_46 : f32 to vector<16x1xf32>
    %149 = arith.divf %147, %148 : vector<16x1xf32>
    %cst_47 = arith.constant 9.99999996E-13 : f32
    %150 = vector.broadcast %cst_47 : f32 to vector<16x1xf32>
    %151 = arith.addf %149, %150 : vector<16x1xf32>
    %152 = math.rsqrt %151 : vector<16x1xf32>
    %153 = vector.broadcast %152 : vector<16x1xf32> to vector<16x64xf32>
    %154 = arith.mulf %144, %153 : vector<16x64xf32>
    %155 = vector.broadcast %136 : vector<1x64xf32> to vector<16x64xf32>
    %156 = arith.mulf %154, %155 : vector<16x64xf32>
    %157 = vector.broadcast %138 : vector<1x64xf32> to vector<16x64xf32>
    %158 = arith.addf %156, %157 : vector<16x64xf32>
    %159 = arith.truncf %158 : vector<16x64xf32> to vector<16x64xbf16>
    %c0_48 = arith.constant 0 : index
    %c0_49 = arith.constant 0 : index
    %c0_50 = arith.constant 0 : index
    %160 = vector.load %arg11[%c0_48, %c0_49, %c0_50] : memref<1x64x256xbf16, #tpu.memory_space<vmem>>, vector<1x64x256xbf16>
    %161 = vector.shape_cast %160 : vector<1x64x256xbf16> to vector<64x256xbf16>
    %cst_51 = arith.constant dense<0.000000e+00> : vector<16x256xf32>
    %162 = tpu.matmul %159, %161, %cst_51 {dimension_numbers = #tpu.dot_dimension_numbers<[1], [0], [0], [1], [0, 0, 1, 1], [], []>} : vector<16x64xbf16>, vector<64x256xbf16>, vector<16x256xf32> -> vector<16x256xf32>
    %c0_52 = arith.constant 0 : index
    %c0_53 = arith.constant 0 : index
    %c0_54 = arith.constant 0 : index
    %163 = vector.load %arg12[%c0_52, %c0_53, %c0_54] : memref<1x1x256xf32, #tpu.memory_space<vmem>>, vector<1x1x256xf32>
    %164 = vector.shape_cast %163 : vector<1x1x256xf32> to vector<1x256xf32>
    %165 = vector.broadcast %164 : vector<1x256xf32> to vector<16x256xf32>
    %166 = arith.addf %162, %165 : vector<16x256xf32>
    %167 = arith.mulf %166, %166 : vector<16x256xf32>
    %168 = arith.mulf %166, %167 : vector<16x256xf32>
    %cst_55 = arith.constant 4.471500e-02 : f32
    %169 = vector.broadcast %cst_55 : f32 to vector<16x256xf32>
    %170 = arith.mulf %169, %168 : vector<16x256xf32>
    %171 = arith.addf %166, %170 : vector<16x256xf32>
    %cst_56 = arith.constant 0.797884583 : f32
    %172 = vector.broadcast %cst_56 : f32 to vector<16x256xf32>
    %173 = arith.mulf %172, %171 : vector<16x256xf32>
    %174 = math.tanh %173 : vector<16x256xf32>
    %cst_57 = arith.constant 1.000000e+00 : f32
    %175 = vector.broadcast %cst_57 : f32 to vector<16x256xf32>
    %176 = arith.addf %175, %174 : vector<16x256xf32>
    %cst_58 = arith.constant 5.000000e-01 : f32
    %177 = vector.broadcast %cst_58 : f32 to vector<16x256xf32>
    %178 = arith.mulf %177, %176 : vector<16x256xf32>
    %179 = arith.mulf %166, %178 : vector<16x256xf32>
    %180 = arith.truncf %179 : vector<16x256xf32> to vector<16x256xbf16>
    %c0_59 = arith.constant 0 : index
    %c0_60 = arith.constant 0 : index
    %c0_61 = arith.constant 0 : index
    %181 = vector.load %arg13[%c0_59, %c0_60, %c0_61] : memref<1x256x64xbf16, #tpu.memory_space<vmem>>, vector<1x256x64xbf16>
    %182 = vector.shape_cast %181 : vector<1x256x64xbf16> to vector<256x64xbf16>
    %cst_62 = arith.constant dense<0.000000e+00> : vector<16x64xf32>
    %183 = tpu.matmul %180, %182, %cst_62 {dimension_numbers = #tpu.dot_dimension_numbers<[1], [0], [0], [1], [0, 0, 1, 1], [], []>} : vector<16x256xbf16>, vector<256x64xbf16>, vector<16x64xf32> -> vector<16x64xf32>
    %c0_63 = arith.constant 0 : index
    %c0_64 = arith.constant 0 : index
    %c0_65 = arith.constant 0 : index
    %184 = vector.load %arg14[%c0_63, %c0_64, %c0_65] : memref<1x1x64xf32, #tpu.memory_space<vmem>>, vector<1x1x64xf32>
    %185 = vector.shape_cast %184 : vector<1x1x64xf32> to vector<1x64xf32>
    %186 = vector.broadcast %185 : vector<1x64xf32> to vector<16x64xf32>
    %187 = arith.addf %183, %186 : vector<16x64xf32>
    %188 = arith.addf %187, %158 : vector<16x64xf32>
    %c0_66 = arith.constant 0 : index
    %c0_67 = arith.constant 0 : index
    %c0_68 = arith.constant 0 : index
    %189 = vector.load %arg15[%c0_66, %c0_67, %c0_68] : memref<1x1x64xf32, #tpu.memory_space<vmem>>, vector<1x1x64xf32>
    %190 = vector.shape_cast %189 : vector<1x1x64xf32> to vector<1x64xf32>
    %c0_69 = arith.constant 0 : index
    %c0_70 = arith.constant 0 : index
    %c0_71 = arith.constant 0 : index
    %191 = vector.load %arg16[%c0_69, %c0_70, %c0_71] : memref<1x1x64xf32, #tpu.memory_space<vmem>>, vector<1x1x64xf32>
    %192 = vector.shape_cast %191 : vector<1x1x64xf32> to vector<1x64xf32>
    %cst_72 = arith.constant dense<0.000000e+00> : vector<16xf32>
    %193 = vector.multi_reduction <add>, %188, %cst_72 [1] : vector<16x64xf32> to vector<16xf32>
    %194 = vector.shape_cast %193 : vector<16xf32> to vector<16x1xf32>
    %cst_73 = arith.constant 6.400000e+01 : f32
    %195 = vector.broadcast %cst_73 : f32 to vector<16x1xf32>
    %196 = arith.divf %194, %195 : vector<16x1xf32>
    %197 = vector.broadcast %196 : vector<16x1xf32> to vector<16x64xf32>
    %198 = arith.subf %188, %197 : vector<16x64xf32>
    %199 = arith.mulf %198, %198 : vector<16x64xf32>
    %cst_74 = arith.constant dense<0.000000e+00> : vector<16xf32>
    %200 = vector.multi_reduction <add>, %199, %cst_74 [1] : vector<16x64xf32> to vector<16xf32>
    %201 = vector.shape_cast %200 : vector<16xf32> to vector<16x1xf32>
    %cst_75 = arith.constant 6.400000e+01 : f32
    %202 = vector.broadcast %cst_75 : f32 to vector<16x1xf32>
    %203 = arith.divf %201, %202 : vector<16x1xf32>
    %cst_76 = arith.constant 9.99999996E-13 : f32
    %204 = vector.broadcast %cst_76 : f32 to vector<16x1xf32>
    %205 = arith.addf %203, %204 : vector<16x1xf32>
    %206 = math.rsqrt %205 : vector<16x1xf32>
    %207 = vector.broadcast %206 : vector<16x1xf32> to vector<16x64xf32>
    %208 = arith.mulf %198, %207 : vector<16x64xf32>
    %209 = vector.broadcast %190 : vector<1x64xf32> to vector<16x64xf32>
    %210 = arith.mulf %208, %209 : vector<16x64xf32>
    %211 = vector.broadcast %192 : vector<1x64xf32> to vector<16x64xf32>
    %212 = arith.addf %210, %211 : vector<16x64xf32>
    %c0_77 = arith.constant 0 : index
    %c0_78 = arith.constant 0 : index
    %213 = vector.load %arg22[%c0_77, %c0_78] : memref<16x64xf32, #tpu.memory_space<vmem>>, vector<16x64xf32>
    tpu.vector_store %arg22[%c0_77, %c0_78], %212 {strides = array<i32>} : memref<16x64xf32, #tpu.memory_space<vmem>>, vector<16x64xf32>,
    %c1_i32 = arith.constant 1 : i32
    %214 = arith.cmpi eq, %arg0, %c1_i32 : i32
    %215 = arith.extui %214 : i1 to i32
    %c0_i32_79 = arith.constant 0 : i32
    %216 = arith.cmpi ne, %215, %c0_i32_79 : i32
    scf.if %216 {
      %217 = vector.extract_strided_slice %212 {offsets = [0, 0], sizes = [1, 64], strides = [1, 1]} : vector<16x64xf32> to vector<1x64xf32>
      %218 = vector.extract_strided_slice %212 {offsets = [8, 0], sizes = [1, 64], strides = [1, 1]} : vector<16x64xf32> to vector<1x64xf32>
      %219 = tpu.concatenate %217, %218 in 0 : vector<1x64xf32>, vector<1x64xf32> -> vector<2x64xf32>
      %220 = arith.truncf %219 : vector<2x64xf32> to vector<2x64xbf16>
      %c0_80 = arith.constant 0 : index
      %c0_81 = arith.constant 0 : index
      %221 = vector.load %arg17[%c0_80, %c0_81] : memref<64x64xbf16, #tpu.memory_space<vmem>>, vector<64x64xbf16>
      %cst_82 = arith.constant dense<0.000000e+00> : vector<2x64xf32>
      %222 = tpu.matmul %220, %221, %cst_82 {dimension_numbers = #tpu.dot_dimension_numbers<[1], [0], [0], [1], [0, 0, 1, 1], [], []>} : vector<2x64xbf16>, vector<64x64xbf16>, vector<2x64xf32> -> vector<2x64xf32>
      %c0_83 = arith.constant 0 : index
      %c0_84 = arith.constant 0 : index
      %223 = vector.load %arg18[%c0_83, %c0_84] : memref<1x64xf32, #tpu.memory_space<vmem>>, vector<1x64xf32>
      %224 = vector.broadcast %223 : vector<1x64xf32> to vector<2x64xf32>
      %225 = arith.addf %222, %224 : vector<2x64xf32>
      %226 = math.tanh %225 : vector<2x64xf32>
      %227 = arith.truncf %226 : vector<2x64xf32> to vector<2x64xbf16>
      %c0_85 = arith.constant 0 : index
      %c0_86 = arith.constant 0 : index
      %228 = vector.load %arg19[%c0_85, %c0_86] : memref<64x128xbf16, #tpu.memory_space<vmem>>, vector<64x128xbf16>
      %cst_87 = arith.constant dense<0.000000e+00> : vector<2x128xf32>
      %229 = tpu.matmul %227, %228, %cst_87 {dimension_numbers = #tpu.dot_dimension_numbers<[1], [0], [0], [1], [0, 0, 1, 1], [], []>} : vector<2x64xbf16>, vector<64x128xbf16>, vector<2x128xf32> -> vector<2x128xf32>
      %c0_88 = arith.constant 0 : index
      %c0_89 = arith.constant 0 : index
      %230 = vector.load %arg20[%c0_88, %c0_89] : memref<1x128xf32, #tpu.memory_space<vmem>>, vector<1x128xf32>
      %231 = vector.broadcast %230 : vector<1x128xf32> to vector<2x128xf32>
      %232 = arith.addf %229, %231 : vector<2x128xf32>
      %c0_90 = arith.constant 0 : index
      %c0_91 = arith.constant 0 : index
      %233 = vector.load %arg21[%c0_90, %c0_91] : memref<2x128xf32, #tpu.memory_space<vmem>>, vector<2x128xf32>
      tpu.vector_store %arg21[%c0_90, %c0_91], %232 {strides = array<i32>} : memref<2x128xf32, #tpu.memory_space<vmem>>, vector<2x128xf32>,
    } else {
    }
    return
  }
  func.func @transform_0(%arg0: i32) -> (i32, i32) {
    %c0_i32 = arith.constant 0 : i32
    %c0_i32_0 = arith.constant 0 : i32
    %c0_i32_1 = arith.constant 0 : i32
    return %c0_i32, %c0_i32_0 : i32, i32
  }
  func.func @transform_1(%arg0: i32) -> (i32, i32) {
    %c0_i32 = arith.constant 0 : i32
    %c0_i32_0 = arith.constant 0 : i32
    %c0_i32_1 = arith.constant 0 : i32
    return %c0_i32, %c0_i32_0 : i32, i32
  }
  func.func @transform_2(%arg0: i32) -> (i32, i32) {
    %c0_i32 = arith.constant 0 : i32
    %c0_i32_0 = arith.constant 0 : i32
    %c0_i32_1 = arith.constant 0 : i32
    return %c0_i32, %c0_i32_0 : i32, i32
  }
  func.func @transform_3(%arg0: i32) -> (i32, i32) {
    %c0_i32 = arith.constant 0 : i32
    %c0_i32_0 = arith.constant 0 : i32
    %c0_i32_1 = arith.constant 0 : i32
    return %c0_i32, %c0_i32_0 : i32, i32
  }
  func.func @transform_4(%arg0: i32) -> (i32, i32, i32) {
    %c0_i32 = arith.constant 0 : i32
    %c0_i32_0 = arith.constant 0 : i32
    %c0_i32_1 = arith.constant 0 : i32
    return %arg0, %c0_i32, %c0_i32_0 : i32, i32, i32
  }
  func.func @transform_5(%arg0: i32) -> (i32, i32, i32) {
    %c0_i32 = arith.constant 0 : i32
    %c0_i32_0 = arith.constant 0 : i32
    %c0_i32_1 = arith.constant 0 : i32
    return %arg0, %c0_i32, %c0_i32_0 : i32, i32, i32
  }
  func.func @transform_6(%arg0: i32) -> (i32, i32, i32) {
    %c0_i32 = arith.constant 0 : i32
    %c0_i32_0 = arith.constant 0 : i32
    %c0_i32_1 = arith.constant 0 : i32
    return %arg0, %c0_i32, %c0_i32_0 : i32, i32, i32
  }
  func.func @transform_7(%arg0: i32) -> (i32, i32, i32) {
    %c0_i32 = arith.constant 0 : i32
    %c0_i32_0 = arith.constant 0 : i32
    %c0_i32_1 = arith.constant 0 : i32
    return %arg0, %c0_i32, %c0_i32_0 : i32, i32, i32
  }
  func.func @transform_8(%arg0: i32) -> (i32, i32, i32) {
    %c0_i32 = arith.constant 0 : i32
    %c0_i32_0 = arith.constant 0 : i32
    %c0_i32_1 = arith.constant 0 : i32
    return %arg0, %c0_i32, %c0_i32_0 : i32, i32, i32
  }
  func.func @transform_9(%arg0: i32) -> (i32, i32, i32) {
    %c0_i32 = arith.constant 0 : i32
    %c0_i32_0 = arith.constant 0 : i32
    %c0_i32_1 = arith.constant 0 : i32
    return %arg0, %c0_i32, %c0_i32_0 : i32, i32, i32
  }
  func.func @transform_10(%arg0: i32) -> (i32, i32, i32) {
    %c0_i32 = arith.constant 0 : i32
    %c0_i32_0 = arith.constant 0 : i32
    %c0_i32_1 = arith.constant 0 : i32
    return %arg0, %c0_i32, %c0_i32_0 : i32, i32, i32
  }
  func.func @transform_11(%arg0: i32) -> (i32, i32, i32) {
    %c0_i32 = arith.constant 0 : i32
    %c0_i32_0 = arith.constant 0 : i32
    %c0_i32_1 = arith.constant 0 : i32
    return %arg0, %c0_i32, %c0_i32_0 : i32, i32, i32
  }
  func.func @transform_12(%arg0: i32) -> (i32, i32, i32) {
    %c0_i32 = arith.constant 0 : i32
    %c0_i32_0 = arith.constant 0 : i32
    %c0_i32_1 = arith.constant 0 : i32
    return %arg0, %c0_i32, %c0_i32_0 : i32, i32, i32
  }
  func.func @transform_13(%arg0: i32) -> (i32, i32, i32) {
    %c0_i32 = arith.constant 0 : i32
    %c0_i32_0 = arith.constant 0 : i32
    %c0_i32_1 = arith.constant 0 : i32
    return %arg0, %c0_i32, %c0_i32_0 : i32, i32, i32
  }
  func.func @transform_14(%arg0: i32) -> (i32, i32, i32) {
    %c0_i32 = arith.constant 0 : i32
    %c0_i32_0 = arith.constant 0 : i32
    %c0_i32_1 = arith.constant 0 : i32
    return %arg0, %c0_i32, %c0_i32_0 : i32, i32, i32
  }
  func.func @transform_15(%arg0: i32) -> (i32, i32, i32) {
    %c0_i32 = arith.constant 0 : i32
    %c0_i32_0 = arith.constant 0 : i32
    %c0_i32_1 = arith.constant 0 : i32
    return %arg0, %c0_i32, %c0_i32_0 : i32, i32, i32
  }
  func.func @transform_16(%arg0: i32) -> (i32, i32) {
    %c0_i32 = arith.constant 0 : i32
    %c0_i32_0 = arith.constant 0 : i32
    %c0_i32_1 = arith.constant 0 : i32
    return %c0_i32, %c0_i32_0 : i32, i32
  }
  func.func @transform_17(%arg0: i32) -> (i32, i32) {
    %c0_i32 = arith.constant 0 : i32
    %c0_i32_0 = arith.constant 0 : i32
    %c0_i32_1 = arith.constant 0 : i32
    return %c0_i32, %c0_i32_0 : i32, i32
  }
  func.func @transform_18(%arg0: i32) -> (i32, i32) {
    %c0_i32 = arith.constant 0 : i32
    %c0_i32_0 = arith.constant 0 : i32
    %c0_i32_1 = arith.constant 0 : i32
    return %c0_i32, %c0_i32_0 : i32, i32
  }
  func.func @transform_19(%arg0: i32) -> (i32, i32) {
    %c0_i32 = arith.constant 0 : i32
    %c0_i32_0 = arith.constant 0 : i32
    %c0_i32_1 = arith.constant 0 : i32
    return %c0_i32, %c0_i32_0 : i32, i32
  }
  func.func @transform_20(%arg0: i32) -> (i32, i32) {
    %c0_i32 = arith.constant 0 : i32
    %c0_i32_0 = arith.constant 0 : i32
    %c0_i32_1 = arith.constant 0 : i32
    return %c0_i32, %c0_i32_0 : i32, i32
  }
}

</mosaic_0001>

<llo_original>
// kernel: bert_classify_forward.1
$region0: #{bert_classify_forward.1}
  #allocation0 [shape = 'u32[]', space=smem, size = 0x4, offset = 0x4, fixed_abs, tag = 'smem constant byte address 0x4 - core index']
  #allocation1 [shape = 'u32[144,128]{1,0:T(1,128)}', space=vmem, size = 0x12000, scoped, tag = 'internal scratch']
  #allocation2 [shape = 'f32[16,64]{1,0:T(8,128)}', space=vmem, size = 0x2000, scoped, tag = 'scratch operand']
  %s0 = inlined_call_operand.vmem [shape: f32[16,64], index: 0, kind: input, shape index: {}]
  %s1 = inlined_call_operand.vmem [shape: f32[2,8], index: 1, kind: input, shape index: {}]
  %s2 = inlined_call_operand.vmem [shape: f32[1,64], index: 2, kind: input, shape index: {}]
  %s3 = inlined_call_operand.vmem [shape: f32[1,64], index: 3, kind: input, shape index: {}]
  %s4 = inlined_call_operand.vmem [shape: bf16[2,64,192], index: 4, kind: input, shape index: {}]
  %s5 = inlined_call_operand.vmem [shape: f32[2,1,192], index: 5, kind: input, shape index: {}]
  %s6 = inlined_call_operand.vmem [shape: bf16[2,64,64], index: 6, kind: input, shape index: {}]
  %s7 = inlined_call_operand.vmem [shape: f32[2,1,64], index: 7, kind: input, shape index: {}]
  %s8 = inlined_call_operand.vmem [shape: f32[2,1,64], index: 8, kind: input, shape index: {}]
  %s9 = inlined_call_operand.vmem [shape: f32[2,1,64], index: 9, kind: input, shape index: {}]
  %s10 = inlined_call_operand.vmem [shape: bf16[2,64,256], index: 10, kind: input, shape index: {}]
  %s11 = inlined_call_operand.vmem [shape: f32[2,1,256], index: 11, kind: input, shape index: {}]
  %s12 = inlined_call_operand.vmem [shape: bf16[2,256,64], index: 12, kind: input, shape index: {}]
  %s13 = inlined_call_operand.vmem [shape: f32[2,1,64], index: 13, kind: input, shape index: {}]
  %s14 = inlined_call_operand.vmem [shape: f32[2,1,64], index: 14, kind: input, shape index: {}]
  %s15 = inlined_call_operand.vmem [shape: f32[2,1,64], index: 15, kind: input, shape index: {}]
  %s16 = inlined_call_operand.vmem [shape: bf16[64,64], index: 16, kind: input, shape index: {}]
  %s17 = inlined_call_operand.vmem [shape: f32[1,64], index: 17, kind: input, shape index: {}]
  %s18 = inlined_call_operand.vmem [shape: bf16[64,128], index: 18, kind: input, shape index: {}]
  %s19 = inlined_call_operand.vmem [shape: f32[1,128], index: 19, kind: input, shape index: {}]
  %s20 = inlined_call_operand.hbm [shape: f32[2,128], index: 20, kind: output, shape index: {}]
  %s21 = sld [smem:[#allocation0]]
  $region121: #{bert_classify_forward.1} parent=0
    _
  %s23 = ssub.s32 1, %s21
  %s24 = scalar_select 0, %s23, %s21
  $region1: #{bert_classify_forward.1} parent=0
    #allocation3 [shape = 'u8[1024]{0}', space=vmem, size = 0x400, scoped, tag = 'output window, operand 0, single buffered']
    #allocation4 [shape = 's32[2]{0}', space=sflag, size = 0x8, scoped, tag = 'scoped memory for bert_classify_forward.1']
    %25 = vsyncpa [#allocation4], 0
    loop: start=0, step=1, limit=4
    $region2: #{bert_classify_forward.1} parent=1 // loop_pre_header
      _
    $region3: #{bert_classify_forward.1} parent=1 // loop_header
      %s27 = sphi 0, %s31
      %p28 = scmp.ge.s32.totalorder %s27, 4
      %s35 = sphi 0, %s35
      %s37 = sphi 0, %s35
      %s38 = sphi 0, %s37
      %s52 = sphi 0, %s38
      %s56 = sphi 0, %s56
      %s58 = sphi 0, %s56
      %s59 = sphi 0, %s58
      %s73 = sphi 0, %s59
      %s77 = sphi 0, %s77
      %s79 = sphi 0, %s77
      %s80 = sphi 0, %s79
      %s94 = sphi 0, %s80
      %s98 = sphi 0, %s98
      %s100 = sphi 0, %s98
      %s101 = sphi 0, %s100
      %s115 = sphi 0, %s101
      %s121 = sphi 0, %s123
      %s124 = sphi 0, %s121
      %s125 = sphi 0, %s124
      %s141 = sphi 0, %s125
      %s147 = sphi 0, %s149
      %s150 = sphi 0, %s147
      %s151 = sphi 0, %s150
      %s167 = sphi 0, %s151
      %s173 = sphi 0, %s175
      %s176 = sphi 0, %s173
      %s177 = sphi 0, %s176
      %s193 = sphi 0, %s177
      %s199 = sphi 0, %s201
      %s202 = sphi 0, %s199
      %s203 = sphi 0, %s202
      %s219 = sphi 0, %s203
      %s225 = sphi 0, %s227
      %s228 = sphi 0, %s225
      %s229 = sphi 0, %s228
      %s245 = sphi 0, %s229
      %s251 = sphi 0, %s253
      %s254 = sphi 0, %s251
      %s255 = sphi 0, %s254
      %s271 = sphi 0, %s255
      %s277 = sphi 0, %s279
      %s280 = sphi 0, %s277
      %s281 = sphi 0, %s280
      %s297 = sphi 0, %s281
      %s303 = sphi 0, %s305
      %s306 = sphi 0, %s303
      %s307 = sphi 0, %s306
      %s323 = sphi 0, %s307
      %s329 = sphi 0, %s331
      %s332 = sphi 0, %s329
      %s333 = sphi 0, %s332
      %s349 = sphi 0, %s333
      %s355 = sphi 0, %s357
      %s358 = sphi 0, %s355
      %s359 = sphi 0, %s358
      %s375 = sphi 0, %s359
      %s381 = sphi 0, %s383
      %s384 = sphi 0, %s381
      %s385 = sphi 0, %s384
      %s401 = sphi 0, %s385
      %s407 = sphi 0, %s409
      %s410 = sphi 0, %s407
      %s411 = sphi 0, %s410
      %s427 = sphi 0, %s411
      %s431 = sphi 0, %s431
      %s433 = sphi 0, %s431
      %s434 = sphi 0, %s433
      %s448 = sphi 0, %s434
      %s452 = sphi 0, %s452
      %s454 = sphi 0, %s452
      %s455 = sphi 0, %s454
      %s469 = sphi 0, %s455
      %s473 = sphi 0, %s473
      %s475 = sphi 0, %s473
      %s476 = sphi 0, %s475
      %s490 = sphi 0, %s476
      %s494 = sphi 0, %s494
      %s496 = sphi 0, %s494
      %s497 = sphi 0, %s496
      %s511 = sphi 0, %s497
      %s515 = sphi 0, %s515
      %s517 = sphi 0, %s515
      %s518 = sphi 0, %s517
      %s532 = sphi 0, %s518
    $region4: #{bert_classify_forward.1} parent=1 // loop_header_branch
      %30 = sbr.rel (%p28) target = $region8
    $region5: #{bert_classify_forward.1} parent=1 // loop_body
      %s32 = ssub.s32 %s27, 1
      %s33 = ssub.s32 %s27, 2
      %s34 = sadd.s32 %s27, 1
      %s36 = sadd.s32 %s35, 1
      %p39 = scmp.eq.s32.totalorder %s27, 1
      %p40 = scmp.ne.s32.totalorder %s35, %s37
      %p41 = scmp.eq.s32.totalorder %s27, 0
      %p42 = por %p40, %p41
      %p43 = scmp.ne.s32.totalorder %s35, %s37
      %p44 = scmp.eq.s32.totalorder %s32, 1
      %p45 = por %p43, %p44
      %p46 = scmp.ne.s32.totalorder %s37, %s38
      %p47 = scmp.eq.s32.totalorder %s32, 0
      %p48 = por %p46, %p47
      %p49 = scmp.ne.s32.totalorder %s37, %s38
      %p50 = scmp.eq.s32.totalorder %s33, 1
      %p51 = por %p49, %p50
      %p53 = scmp.ne.s32.totalorder %s38, %s52
      %p54 = scmp.eq.s32.totalorder %s33, 0
      %p55 = por %p53, %p54
      %s57 = sadd.s32 %s56, 1
      %p60 = scmp.eq.s32.totalorder %s27, 1
      %p61 = scmp.ne.s32.totalorder %s56, %s58
      %p62 = scmp.eq.s32.totalorder %s27, 0
      %p63 = por %p61, %p62
      %p64 = scmp.ne.s32.totalorder %s56, %s58
      %p65 = scmp.eq.s32.totalorder %s32, 1
      %p66 = por %p64, %p65
      %p67 = scmp.ne.s32.totalorder %s58, %s59
      %p68 = scmp.eq.s32.totalorder %s32, 0
      %p69 = por %p67, %p68
      %p70 = scmp.ne.s32.totalorder %s58, %s59
      %p71 = scmp.eq.s32.totalorder %s33, 1
      %p72 = por %p70, %p71
      %p74 = scmp.ne.s32.totalorder %s59, %s73
      %p75 = scmp.eq.s32.totalorder %s33, 0
      %p76 = por %p74, %p75
      %s78 = sadd.s32 %s77, 1
      %p81 = scmp.eq.s32.totalorder %s27, 1
      %p82 = scmp.ne.s32.totalorder %s77, %s79
      %p83 = scmp.eq.s32.totalorder %s27, 0
      %p84 = por %p82, %p83
      %p85 = scmp.ne.s32.totalorder %s77, %s79
      %p86 = scmp.eq.s32.totalorder %s32, 1
      %p87 = por %p85, %p86
      %p88 = scmp.ne.s32.totalorder %s79, %s80
      %p89 = scmp.eq.s32.totalorder %s32, 0
      %p90 = por %p88, %p89
      %p91 = scmp.ne.s32.totalorder %s79, %s80
      %p92 = scmp.eq.s32.totalorder %s33, 1
      %p93 = por %p91, %p92
      %p95 = scmp.ne.s32.totalorder %s80, %s94
      %p96 = scmp.eq.s32.totalorder %s33, 0
      %p97 = por %p95, %p96
      %s99 = sadd.s32 %s98, 1
      %p102 = scmp.eq.s32.totalorder %s27, 1
      %p103 = scmp.ne.s32.totalorder %s98, %s100
      %p104 = scmp.eq.s32.totalorder %s27, 0
      %p105 = por %p103, %p104
      %p106 = scmp.ne.s32.totalorder %s98, %s100
      %p107 = scmp.eq.s32.totalorder %s32, 1
      %p108 = por %p106, %p107
      %p109 = scmp.ne.s32.totalorder %s100, %s101
      %p110 = scmp.eq.s32.totalorder %s32, 0
      %p111 = por %p109, %p110
      %p112 = scmp.ne.s32.totalorder %s100, %s101
      %p113 = scmp.eq.s32.totalorder %s33, 1
      %p114 = por %p112, %p113
      %p116 = scmp.ne.s32.totalorder %s101, %s115
      %p117 = scmp.eq.s32.totalorder %s33, 0
      %p118 = por %p116, %p117
      %s119 = ssub.s32 %s27, %s34
      %p120 = scmp.eq.s32.totalorder %s119, 0
      %s122 = sadd.s32 %s121, 1
      %s123 = scalar_select %p120, %s121, %s122
      %p126 = pneg %p120
      %p127 = scmp.eq.s32.totalorder %s27, 1
      %p128 = por %p126, %p127
      %p129 = scmp.ne.s32.totalorder %s121, %s124
      %p130 = scmp.eq.s32.totalorder %s27, 0
      %p131 = por %p129, %p130
      %p132 = scmp.ne.s32.totalorder %s121, %s124
      %p133 = scmp.eq.s32.totalorder %s32, 1
      %p134 = por %p132, %p133
      %p135 = scmp.ne.s32.totalorder %s124, %s125
      %p136 = scmp.eq.s32.totalorder %s32, 0
      %p137 = por %p135, %p136
      %p138 = scmp.ne.s32.totalorder %s124, %s125
      %p139 = scmp.eq.s32.totalorder %s33, 1
      %p140 = por %p138, %p139
      %p142 = scmp.ne.s32.totalorder %s125, %s141
      %p143 = scmp.eq.s32.totalorder %s33, 0
      %p144 = por %p142, %p143
      %s145 = ssub.s32 %s27, %s34
      %p146 = scmp.eq.s32.totalorder %s145, 0
      %s148 = sadd.s32 %s147, 1
      %s149 = scalar_select %p146, %s147, %s148
      %p152 = pneg %p146
      %p153 = scmp.eq.s32.totalorder %s27, 1
      %p154 = por %p152, %p153
      %p155 = scmp.ne.s32.totalorder %s147, %s150
      %p156 = scmp.eq.s32.totalorder %s27, 0
      %p157 = por %p155, %p156
      %p158 = scmp.ne.s32.totalorder %s147, %s150
      %p159 = scmp.eq.s32.totalorder %s32, 1
      %p160 = por %p158, %p159
      %p161 = scmp.ne.s32.totalorder %s150, %s151
      %p162 = scmp.eq.s32.totalorder %s32, 0
      %p163 = por %p161, %p162
      %p164 = scmp.ne.s32.totalorder %s150, %s151
      %p165 = scmp.eq.s32.totalorder %s33, 1
      %p166 = por %p164, %p165
      %p168 = scmp.ne.s32.totalorder %s151, %s167
      %p169 = scmp.eq.s32.totalorder %s33, 0
      %p170 = por %p168, %p169
      %s171 = ssub.s32 %s27, %s34
      %p172 = scmp.eq.s32.totalorder %s171, 0
      %s174 = sadd.s32 %s173, 1
      %s175 = scalar_select %p172, %s173, %s174
      %p178 = pneg %p172
      %p179 = scmp.eq.s32.totalorder %s27, 1
      %p180 = por %p178, %p179
      %p181 = scmp.ne.s32.totalorder %s173, %s176
      %p182 = scmp.eq.s32.totalorder %s27, 0
      %p183 = por %p181, %p182
      %p184 = scmp.ne.s32.totalorder %s173, %s176
      %p185 = scmp.eq.s32.totalorder %s32, 1
      %p186 = por %p184, %p185
      %p187 = scmp.ne.s32.totalorder %s176, %s177
      %p188 = scmp.eq.s32.totalorder %s32, 0
      %p189 = por %p187, %p188
      %p190 = scmp.ne.s32.totalorder %s176, %s177
      %p191 = scmp.eq.s32.totalorder %s33, 1
      %p192 = por %p190, %p191
      %p194 = scmp.ne.s32.totalorder %s177, %s193
      %p195 = scmp.eq.s32.totalorder %s33, 0
      %p196 = por %p194, %p195
      %s197 = ssub.s32 %s27, %s34
      %p198 = scmp.eq.s32.totalorder %s197, 0
      %s200 = sadd.s32 %s199, 1
      %s201 = scalar_select %p198, %s199, %s200
      %p204 = pneg %p198
      %p205 = scmp.eq.s32.totalorder %s27, 1
      %p206 = por %p204, %p205
      %p207 = scmp.ne.s32.totalorder %s199, %s202
      %p208 = scmp.eq.s32.totalorder %s27, 0
      %p209 = por %p207, %p208
      %p210 = scmp.ne.s32.totalorder %s199, %s202
      %p211 = scmp.eq.s32.totalorder %s32, 1
      %p212 = por %p210, %p211
      %p213 = scmp.ne.s32.totalorder %s202, %s203
      %p214 = scmp.eq.s32.totalorder %s32, 0
      %p215 = por %p213, %p214
      %p216 = scmp.ne.s32.totalorder %s202, %s203
      %p217 = scmp.eq.s32.totalorder %s33, 1
      %p218 = por %p216, %p217
      %p220 = scmp.ne.s32.totalorder %s203, %s219
      %p221 = scmp.eq.s32.totalorder %s33, 0
      %p222 = por %p220, %p221
      %s223 = ssub.s32 %s27, %s34
      %p224 = scmp.eq.s32.totalorder %s223, 0
      %s226 = sadd.s32 %s225, 1
      %s227 = scalar_select %p224, %s225, %s226
      %p230 = pneg %p224
      %p231 = scmp.eq.s32.totalorder %s27, 1
      %p232 = por %p230, %p231
      %p233 = scmp.ne.s32.totalorder %s225, %s228
      %p234 = scmp.eq.s32.totalorder %s27, 0
      %p235 = por %p233, %p234
      %p236 = scmp.ne.s32.totalorder %s225, %s228
      %p237 = scmp.eq.s32.totalorder %s32, 1
      %p238 = por %p236, %p237
      %p239 = scmp.ne.s32.totalorder %s228, %s229
      %p240 = scmp.eq.s32.totalorder %s32, 0
      %p241 = por %p239, %p240
      %p242 = scmp.ne.s32.totalorder %s228, %s229
      %p243 = scmp.eq.s32.totalorder %s33, 1
      %p244 = por %p242, %p243
      %p246 = scmp.ne.s32.totalorder %s229, %s245
      %p247 = scmp.eq.s32.totalorder %s33, 0
      %p248 = por %p246, %p247
      %s249 = ssub.s32 %s27, %s34
      %p250 = scmp.eq.s32.totalorder %s249, 0
      %s252 = sadd.s32 %s251, 1
      %s253 = scalar_select %p250, %s251, %s252
      %p256 = pneg %p250
      %p257 = scmp.eq.s32.totalorder %s27, 1
      %p258 = por %p256, %p257
      %p259 = scmp.ne.s32.totalorder %s251, %s254
      %p260 = scmp.eq.s32.totalorder %s27, 0
      %p261 = por %p259, %p260
      %p262 = scmp.ne.s32.totalorder %s251, %s254
      %p263 = scmp.eq.s32.totalorder %s32, 1
      %p264 = por %p262, %p263
      %p265 = scmp.ne.s32.totalorder %s254, %s255
      %p266 = scmp.eq.s32.totalorder %s32, 0
      %p267 = por %p265, %p266
      %p268 = scmp.ne.s32.totalorder %s254, %s255
      %p269 = scmp.eq.s32.totalorder %s33, 1
      %p270 = por %p268, %p269
      %p272 = scmp.ne.s32.totalorder %s255, %s271
      %p273 = scmp.eq.s32.totalorder %s33, 0
      %p274 = por %p272, %p273
      %s275 = ssub.s32 %s27, %s34
      %p276 = scmp.eq.s32.totalorder %s275, 0
      %s278 = sadd.s32 %s277, 1
      %s279 = scalar_select %p276, %s277, %s278
      %p282 = pneg %p276
      %p283 = scmp.eq.s32.totalorder %s27, 1
      %p284 = por %p282, %p283
      %p285 = scmp.ne.s32.totalorder %s277, %s280
      %p286 = scmp.eq.s32.totalorder %s27, 0
      %p287 = por %p285, %p286
      %p288 = scmp.ne.s32.totalorder %s277, %s280
      %p289 = scmp.eq.s32.totalorder %s32, 1
      %p290 = por %p288, %p289
      %p291 = scmp.ne.s32.totalorder %s280, %s281
      %p292 = scmp.eq.s32.totalorder %s32, 0
      %p293 = por %p291, %p292
      %p294 = scmp.ne.s32.totalorder %s280, %s281
      %p295 = scmp.eq.s32.totalorder %s33, 1
      %p296 = por %p294, %p295
      %p298 = scmp.ne.s32.totalorder %s281, %s297
      %p299 = scmp.eq.s32.totalorder %s33, 0
      %p300 = por %p298, %p299
      %s301 = ssub.s32 %s27, %s34
      %p302 = scmp.eq.s32.totalorder %s301, 0
      %s304 = sadd.s32 %s303, 1
      %s305 = scalar_select %p302, %s303, %s304
      %p308 = pneg %p302
      %p309 = scmp.eq.s32.totalorder %s27, 1
      %p310 = por %p308, %p309
      %p311 = scmp.ne.s32.totalorder %s303, %s306
      %p312 = scmp.eq.s32.totalorder %s27, 0
      %p313 = por %p311, %p312
      %p314 = scmp.ne.s32.totalorder %s303, %s306
      %p315 = scmp.eq.s32.totalorder %s32, 1
      %p316 = por %p314, %p315
      %p317 = scmp.ne.s32.totalorder %s306, %s307
      %p318 = scmp.eq.s32.totalorder %s32, 0
      %p319 = por %p317, %p318
      %p320 = scmp.ne.s32.totalorder %s306, %s307
      %p321 = scmp.eq.s32.totalorder %s33, 1
      %p322 = por %p320, %p321
      %p324 = scmp.ne.s32.totalorder %s307, %s323
      %p325 = scmp.eq.s32.totalorder %s33, 0
      %p326 = por %p324, %p325
      %s327 = ssub.s32 %s27, %s34
      %p328 = scmp.eq.s32.totalorder %s327, 0
      %s330 = sadd.s32 %s329, 1
      %s331 = scalar_select %p328, %s329, %s330
      %p334 = pneg %p328
      %p335 = scmp.eq.s32.totalorder %s27, 1
      %p336 = por %p334, %p335
      %p337 = scmp.ne.s32.totalorder %s329, %s332
      %p338 = scmp.eq.s32.totalorder %s27, 0
      %p339 = por %p337, %p338
      %p340 = scmp.ne.s32.totalorder %s329, %s332
      %p341 = scmp.eq.s32.totalorder %s32, 1
      %p342 = por %p340, %p341
      %p343 = scmp.ne.s32.totalorder %s332, %s333
      %p344 = scmp.eq.s32.totalorder %s32, 0
      %p345 = por %p343, %p344
      %p346 = scmp.ne.s32.totalorder %s332, %s333
      %p347 = scmp.eq.s32.totalorder %s33, 1
      %p348 = por %p346, %p347
      %p350 = scmp.ne.s32.totalorder %s333, %s349
      %p351 = scmp.eq.s32.totalorder %s33, 0
      %p352 = por %p350, %p351
      %s353 = ssub.s32 %s27, %s34
      %p354 = scmp.eq.s32.totalorder %s353, 0
      %s356 = sadd.s32 %s355, 1
      %s357 = scalar_select %p354, %s355, %s356
      %p360 = pneg %p354
      %p361 = scmp.eq.s32.totalorder %s27, 1
      %p362 = por %p360, %p361
      %p363 = scmp.ne.s32.totalorder %s355, %s358
      %p364 = scmp.eq.s32.totalorder %s27, 0
      %p365 = por %p363, %p364
      %p366 = scmp.ne.s32.totalorder %s355, %s358
      %p367 = scmp.eq.s32.totalorder %s32, 1
      %p368 = por %p366, %p367
      %p369 = scmp.ne.s32.totalorder %s358, %s359
      %p370 = scmp.eq.s32.totalorder %s32, 0
      %p371 = por %p369, %p370
      %p372 = scmp.ne.s32.totalorder %s358, %s359
      %p373 = scmp.eq.s32.totalorder %s33, 1
      %p374 = por %p372, %p373
      %p376 = scmp.ne.s32.totalorder %s359, %s375
      %p377 = scmp.eq.s32.totalorder %s33, 0
      %p378 = por %p376, %p377
      %s379 = ssub.s32 %s27, %s34
      %p380 = scmp.eq.s32.totalorder %s379, 0
      %s382 = sadd.s32 %s381, 1
      %s383 = scalar_select %p380, %s381, %s382
      %p386 = pneg %p380
      %p387 = scmp.eq.s32.totalorder %s27, 1
      %p388 = por %p386, %p387
      %p389 = scmp.ne.s32.totalorder %s381, %s384
      %p390 = scmp.eq.s32.totalorder %s27, 0
      %p391 = por %p389, %p390
      %p392 = scmp.ne.s32.totalorder %s381, %s384
      %p393 = scmp.eq.s32.totalorder %s32, 1
      %p394 = por %p392, %p393
      %p395 = scmp.ne.s32.totalorder %s384, %s385
      %p396 = scmp.eq.s32.totalorder %s32, 0
      %p397 = por %p395, %p396
      %p398 = scmp.ne.s32.totalorder %s384, %s385
      %p399 = scmp.eq.s32.totalorder %s33, 1
      %p400 = por %p398, %p399
      %p402 = scmp.ne.s32.totalorder %s385, %s401
      %p403 = scmp.eq.s32.totalorder %s33, 0
      %p404 = por %p402, %p403
      %s405 = ssub.s32 %s27, %s34
      %p406 = scmp.eq.s32.totalorder %s405, 0
      %s408 = sadd.s32 %s407, 1
      %s409 = scalar_select %p406, %s407, %s408
      %p412 = pneg %p406
      %p413 = scmp.eq.s32.totalorder %s27, 1
      %p414 = por %p412, %p413
      %p415 = scmp.ne.s32.totalorder %s407, %s410
      %p416 = scmp.eq.s32.totalorder %s27, 0
      %p417 = por %p415, %p416
      %p418 = scmp.ne.s32.totalorder %s407, %s410
      %p419 = scmp.eq.s32.totalorder %s32, 1
      %p420 = por %p418, %p419
      %p421 = scmp.ne.s32.totalorder %s410, %s411
      %p422 = scmp.eq.s32.totalorder %s32, 0
      %p423 = por %p421, %p422
      %p424 = scmp.ne.s32.totalorder %s410, %s411
      %p425 = scmp.eq.s32.totalorder %s33, 1
      %p426 = por %p424, %p425
      %p428 = scmp.ne.s32.totalorder %s411, %s427
      %p429 = scmp.eq.s32.totalorder %s33, 0
      %p430 = por %p428, %p429
      %s432 = sadd.s32 %s431, 1
      %p435 = scmp.eq.s32.totalorder %s27, 1
      %p436 = scmp.ne.s32.totalorder %s431, %s433
      %p437 = scmp.eq.s32.totalorder %s27, 0
      %p438 = por %p436, %p437
      %p439 = scmp.ne.s32.totalorder %s431, %s433
      %p440 = scmp.eq.s32.totalorder %s32, 1
      %p441 = por %p439, %p440
      %p442 = scmp.ne.s32.totalorder %s433, %s434
      %p443 = scmp.eq.s32.totalorder %s32, 0
      %p444 = por %p442, %p443
      %p445 = scmp.ne.s32.totalorder %s433, %s434
      %p446 = scmp.eq.s32.totalorder %s33, 1
      %p447 = por %p445, %p446
      %p449 = scmp.ne.s32.totalorder %s434, %s448
      %p450 = scmp.eq.s32.totalorder %s33, 0
      %p451 = por %p449, %p450
      %s453 = sadd.s32 %s452, 1
      %p456 = scmp.eq.s32.totalorder %s27, 1
      %p457 = scmp.ne.s32.totalorder %s452, %s454
      %p458 = scmp.eq.s32.totalorder %s27, 0
      %p459 = por %p457, %p458
      %p460 = scmp.ne.s32.totalorder %s452, %s454
      %p461 = scmp.eq.s32.totalorder %s32, 1
      %p462 = por %p460, %p461
      %p463 = scmp.ne.s32.totalorder %s454, %s455
      %p464 = scmp.eq.s32.totalorder %s32, 0
      %p465 = por %p463, %p464
      %p466 = scmp.ne.s32.totalorder %s454, %s455
      %p467 = scmp.eq.s32.totalorder %s33, 1
      %p468 = por %p466, %p467
      %p470 = scmp.ne.s32.totalorder %s455, %s469
      %p471 = scmp.eq.s32.totalorder %s33, 0
      %p472 = por %p470, %p471
      %s474 = sadd.s32 %s473, 1
      %p477 = scmp.eq.s32.totalorder %s27, 1
      %p478 = scmp.ne.s32.totalorder %s473, %s475
      %p479 = scmp.eq.s32.totalorder %s27, 0
      %p480 = por %p478, %p479
      %p481 = scmp.ne.s32.totalorder %s473, %s475
      %p482 = scmp.eq.s32.totalorder %s32, 1
      %p483 = por %p481, %p482
      %p484 = scmp.ne.s32.totalorder %s475, %s476
      %p485 = scmp.eq.s32.totalorder %s32, 0
      %p486 = por %p484, %p485
      %p487 = scmp.ne.s32.totalorder %s475, %s476
      %p488 = scmp.eq.s32.totalorder %s33, 1
      %p489 = por %p487, %p488
      %p491 = scmp.ne.s32.totalorder %s476, %s490
      %p492 = scmp.eq.s32.totalorder %s33, 0
      %p493 = por %p491, %p492
      %s495 = sadd.s32 %s494, 1
      %p498 = scmp.eq.s32.totalorder %s27, 1
      %p499 = scmp.ne.s32.totalorder %s494, %s496
      %p500 = scmp.eq.s32.totalorder %s27, 0
      %p501 = por %p499, %p500
      %p502 = scmp.ne.s32.totalorder %s494, %s496
      %p503 = scmp.eq.s32.totalorder %s32, 1
      %p504 = por %p502, %p503
      %p505 = scmp.ne.s32.totalorder %s496, %s497
      %p506 = scmp.eq.s32.totalorder %s32, 0
      %p507 = por %p505, %p506
      %p508 = scmp.ne.s32.totalorder %s496, %s497
      %p509 = scmp.eq.s32.totalorder %s33, 1
      %p510 = por %p508, %p509
      %p512 = scmp.ne.s32.totalorder %s497, %s511
      %p513 = scmp.eq.s32.totalorder %s33, 0
      %p514 = por %p512, %p513
      %s516 = sadd.s32 %s515, 1
      %p519 = scmp.eq.s32.totalorder %s27, 1
      %p520 = scmp.ne.s32.totalorder %s515, %s517
      %p521 = scmp.eq.s32.totalorder %s27, 0
      %p522 = por %p520, %p521
      %p523 = scmp.ne.s32.totalorder %s515, %s517
      %p524 = scmp.eq.s32.totalorder %s32, 1
      %p525 = por %p523, %p524
      %p526 = scmp.ne.s32.totalorder %s517, %s518
      %p527 = scmp.eq.s32.totalorder %s32, 0
      %p528 = por %p526, %p527
      %p529 = scmp.ne.s32.totalorder %s517, %s518
      %p530 = scmp.eq.s32.totalorder %s33, 1
      %p531 = por %p529, %p530
      %p533 = scmp.ne.s32.totalorder %s518, %s532
      %p534 = scmp.eq.s32.totalorder %s33, 0
      %p535 = por %p533, %p534
      %p536 = scmp.le.s32.totalorder 1, %s27
      %p537 = scmp.lt.s32.totalorder %s27, 3
      %p538 = pnand %p536, %p537
      %p539 = pneg %p538
      // Predicated region
      $region9: #{bert_classify_forward.1} parent=5 // pred_check
        _
      $region10: #{bert_classify_forward.1} parent=5 // pred_check_branch
        %541 = sbr.rel (%p538) target = $region12
      $region11: #{bert_classify_forward.1} parent=5 // pred_region
        %s542 = ssub.s32 %s27, 1
        // Predicated region
        $region13: #{bert_classify_forward.1} parent=11 // pred_check
          %p543 = pneg %p48
        $region14: #{bert_classify_forward.1} parent=11 // pred_check_branch
          %545 = sbr.rel (%p543) target = $region16
        $region15: #{bert_classify_forward.1} parent=11 // pred_region
          _
        $region16: #{bert_classify_forward.1} parent=11 // pred_fallthru
          _
        // Predicated region
        $region17: #{bert_classify_forward.1} parent=11 // pred_check
          %p546 = pneg %p69
        $region18: #{bert_classify_forward.1} parent=11 // pred_check_branch
          %548 = sbr.rel (%p546) target = $region20
        $region19: #{bert_classify_forward.1} parent=11 // pred_region
          _
        $region20: #{bert_classify_forward.1} parent=11 // pred_fallthru
          _
        // Predicated region
        $region21: #{bert_classify_forward.1} parent=11 // pred_check
          %p549 = pneg %p90
        $region22: #{bert_classify_forward.1} parent=11 // pred_check_branch
          %551 = sbr.rel (%p549) target = $region24
        $region23: #{bert_classify_forward.1} parent=11 // pred_region
          _
        $region24: #{bert_classify_forward.1} parent=11 // pred_fallthru
          _
        // Predicated region
        $region25: #{bert_classify_forward.1} parent=11 // pred_check
          %p552 = pneg %p111
        $region26: #{bert_classify_forward.1} parent=11 // pred_check_branch
          %554 = sbr.rel (%p552) target = $region28
        $region27: #{bert_classify_forward.1} parent=11 // pred_region
          _
        $region28: #{bert_classify_forward.1} parent=11 // pred_fallthru
          _
        // Predicated region
        $region29: #{bert_classify_forward.1} parent=11 // pred_check
          %p555 = pneg %p444
        $region30: #{bert_classify_forward.1} parent=11 // pred_check_branch
          %557 = sbr.rel (%p555) target = $region32
        $region31: #{bert_classify_forward.1} parent=11 // pred_region
          _
        $region32: #{bert_classify_forward.1} parent=11 // pred_fallthru
          _
        // Predicated region
        $region33: #{bert_classify_forward.1} parent=11 // pred_check
          %p558 = pneg %p465
        $region34: #{bert_classify_forward.1} parent=11 // pred_check_branch
          %560 = sbr.rel (%p558) target = $region36
        $region35: #{bert_classify_forward.1} parent=11 // pred_region
          _
        $region36: #{bert_classify_forward.1} parent=11 // pred_fallthru
          _
        // Predicated region
        $region37: #{bert_classify_forward.1} parent=11 // pred_check
          %p561 = pneg %p486
        $region38: #{bert_classify_forward.1} parent=11 // pred_check_branch
          %563 = sbr.rel (%p561) target = $region40
        $region39: #{bert_classify_forward.1} parent=11 // pred_region
          _
        $region40: #{bert_classify_forward.1} parent=11 // pred_fallthru
          _
        // Predicated region
        $region41: #{bert_classify_forward.1} parent=11 // pred_check
          %p564 = pneg %p507
        $region42: #{bert_classify_forward.1} parent=11 // pred_check_branch
          %566 = sbr.rel (%p564) target = $region44
        $region43: #{bert_classify_forward.1} parent=11 // pred_region
          _
        $region44: #{bert_classify_forward.1} parent=11 // pred_fallthru
          _
      $region12: #{bert_classify_forward.1} parent=5 // pred_fallthru
        _
      %p567 = scmp.lt.s32.totalorder %s27, 2
      // Predicated region
      $region45: #{bert_classify_forward.1} parent=5 // pred_check
        %p568 = pneg %p567
      $region46: #{bert_classify_forward.1} parent=5 // pred_check_branch
        %570 = sbr.rel (%p568) target = $region48
      $region47: #{bert_classify_forward.1} parent=5 // pred_region
        // Predicated region
        $region49: #{bert_classify_forward.1} parent=47 // pred_check
          %p571 = pneg %p131
        $region50: #{bert_classify_forward.1} parent=47 // pred_check_branch
          %573 = sbr.rel (%p571) target = $region52
        $region51: #{bert_classify_forward.1} parent=47 // pred_region
          %p574 = scmp.lt.s32.totalorder %s27, 1
          %s575 = scalar_select %p574, %s27, 1
          %s576 = smul.addr %s575, 16
          %s577 = smul.addr %s576, 4
          %s578 = scalar_lea.vmem %s4, %s577
        $region52: #{bert_classify_forward.1} parent=47 // pred_fallthru
          _
        // Predicated region
        $region53: #{bert_classify_forward.1} parent=47 // pred_check
          %p579 = pneg %p157
        $region54: #{bert_classify_forward.1} parent=47 // pred_check_branch
          %581 = sbr.rel (%p579) target = $region56
        $region55: #{bert_classify_forward.1} parent=47 // pred_region
          %p582 = scmp.lt.s32.totalorder %s27, 1
          %s583 = scalar_select %p582, %s27, 1
          %s584 = smul.addr %s583, 2
          %s585 = scalar_lea.vmem %s5, %s584
        $region56: #{bert_classify_forward.1} parent=47 // pred_fallthru
          _
        // Predicated region
        $region57: #{bert_classify_forward.1} parent=47 // pred_check
          %p586 = pneg %p183
        $region58: #{bert_classify_forward.1} parent=47 // pred_check_branch
          %588 = sbr.rel (%p586) target = $region60
        $region59: #{bert_classify_forward.1} parent=47 // pred_region
          %p589 = scmp.lt.s32.totalorder %s27, 1
          %s590 = scalar_select %p589, %s27, 1
          %s591 = smul.addr %s590, 8
          %s592 = smul.addr %s591, 4
          %s593 = scalar_lea.vmem %s6, %s592
        $region60: #{bert_classify_forward.1} parent=47 // pred_fallthru
          _
        // Predicated region
        $region61: #{bert_classify_forward.1} parent=47 // pred_check
          %p594 = pneg %p209
        $region62: #{bert_classify_forward.1} parent=47 // pred_check_branch
          %596 = sbr.rel (%p594) target = $region64
        $region63: #{bert_classify_forward.1} parent=47 // pred_region
          %p597 = scmp.lt.s32.totalorder %s27, 1
          %s598 = scalar_select %p597, %s27, 1
          %s599 = scalar_lea.vmem %s7, %s598
        $region64: #{bert_classify_forward.1} parent=47 // pred_fallthru
          _
        // Predicated region
        $region65: #{bert_classify_forward.1} parent=47 // pred_check
          %p600 = pneg %p235
        $region66: #{bert_classify_forward.1} parent=47 // pred_check_branch
          %602 = sbr.rel (%p600) target = $region68
        $region67: #{bert_classify_forward.1} parent=47 // pred_region
          %p603 = scmp.lt.s32.totalorder %s27, 1
          %s604 = scalar_select %p603, %s27, 1
          %s605 = scalar_lea.vmem %s8, %s604
        $region68: #{bert_classify_forward.1} parent=47 // pred_fallthru
          _
        // Predicated region
        $region69: #{bert_classify_forward.1} parent=47 // pred_check
          %p606 = pneg %p261
        $region70: #{bert_classify_forward.1} parent=47 // pred_check_branch
          %608 = sbr.rel (%p606) target = $region72
        $region71: #{bert_classify_forward.1} parent=47 // pred_region
          %p609 = scmp.lt.s32.totalorder %s27, 1
          %s610 = scalar_select %p609, %s27, 1
          %s611 = scalar_lea.vmem %s9, %s610
        $region72: #{bert_classify_forward.1} parent=47 // pred_fallthru
          _
        // Predicated region
        $region73: #{bert_classify_forward.1} parent=47 // pred_check
          %p612 = pneg %p287
        $region74: #{bert_classify_forward.1} parent=47 // pred_check_branch
          %614 = sbr.rel (%p612) target = $region76
        $region75: #{bert_classify_forward.1} parent=47 // pred_region
          %p615 = scmp.lt.s32.totalorder %s27, 1
          %s616 = scalar_select %p615, %s27, 1
          %s617 = smul.addr %s616, 16
          %s618 = smul.addr %s617, 4
          %s619 = scalar_lea.vmem %s10, %s618
        $region76: #{bert_classify_forward.1} parent=47 // pred_fallthru
          _
        // Predicated region
        $region77: #{bert_classify_forward.1} parent=47 // pred_check
          %p620 = pneg %p313
        $region78: #{bert_classify_forward.1} parent=47 // pred_check_branch
          %622 = sbr.rel (%p620) target = $region80
        $region79: #{bert_classify_forward.1} parent=47 // pred_region
          %p623 = scmp.lt.s32.totalorder %s27, 1
          %s624 = scalar_select %p623, %s27, 1
          %s625 = smul.addr %s624, 2
          %s626 = scalar_lea.vmem %s11, %s625
        $region80: #{bert_classify_forward.1} parent=47 // pred_fallthru
          _
        // Predicated region
        $region81: #{bert_classify_forward.1} parent=47 // pred_check
          %p627 = pneg %p339
        $region82: #{bert_classify_forward.1} parent=47 // pred_check_branch
          %629 = sbr.rel (%p627) target = $region84
        $region83: #{bert_classify_forward.1} parent=47 // pred_region
          %p630 = scmp.lt.s32.totalorder %s27, 1
          %s631 = scalar_select %p630, %s27, 1
          %s632 = smul.addr %s631, 32
          %s633 = smul.addr %s632, 4
          %s634 = scalar_lea.vmem %s12, %s633
        $region84: #{bert_classify_forward.1} parent=47 // pred_fallthru
          _
        // Predicated region
        $region85: #{bert_classify_forward.1} parent=47 // pred_check
          %p635 = pneg %p365
        $region86: #{bert_classify_forward.1} parent=47 // pred_check_branch
          %637 = sbr.rel (%p635) target = $region88
        $region87: #{bert_classify_forward.1} parent=47 // pred_region
          %p638 = scmp.lt.s32.totalorder %s27, 1
          %s639 = scalar_select %p638, %s27, 1
          %s640 = scalar_lea.vmem %s13, %s639
        $region88: #{bert_classify_forward.1} parent=47 // pred_fallthru
          _
        // Predicated region
        $region89: #{bert_classify_forward.1} parent=47 // pred_check
          %p641 = pneg %p391
        $region90: #{bert_classify_forward.1} parent=47 // pred_check_branch
          %643 = sbr.rel (%p641) target = $region92
        $region91: #{bert_classify_forward.1} parent=47 // pred_region
          %p644 = scmp.lt.s32.totalorder %s27, 1
          %s645 = scalar_select %p644, %s27, 1
          %s646 = scalar_lea.vmem %s14, %s645
        $region92: #{bert_classify_forward.1} parent=47 // pred_fallthru
          _
        // Predicated region
        $region93: #{bert_classify_forward.1} parent=47 // pred_check
          %p647 = pneg %p417
        $region94: #{bert_classify_forward.1} parent=47 // pred_check_branch
          %649 = sbr.rel (%p647) target = $region96
        $region95: #{bert_classify_forward.1} parent=47 // pred_region
          %p650 = scmp.lt.s32.totalorder %s27, 1
          %s651 = scalar_select %p650, %s27, 1
          %s652 = scalar_lea.vmem %s15, %s651
        $region96: #{bert_classify_forward.1} parent=47 // pred_fallthru
          _
      $region48: #{bert_classify_forward.1} parent=5 // pred_fallthru
        _
      %p653 = scmp.le.s32.totalorder 1, %s27
      %p654 = scmp.lt.s32.totalorder %s27, 3
      %p655 = pnand %p653, %p654
      %p656 = pneg %p655
      // Predicated region
      $region97: #{bert_classify_forward.1} parent=5 // pred_check
        _
      $region98: #{bert_classify_forward.1} parent=5 // pred_check_branch
        %658 = sbr.rel (%p655) target = $region100
      $region99: #{bert_classify_forward.1} parent=5 // pred_region
        %s659 = ssub.s32 %s27, 1
        %p660 = pneg %p48
        %p661 = pneg %p45
        %p662 = pneg %p69
        %p663 = pneg %p66
        %p664 = pneg %p90
        %p665 = pneg %p87
        %p666 = pneg %p111
        %p667 = pneg %p108
        %p668 = scmp.lt.s32.totalorder %s32, 1
        %s669 = scalar_select %p668, %s32, 1
        %s670 = smul.addr %s669, 16
        %s671 = smul.addr %s670, 4
        %s672 = scalar_lea.vmem %s4, %s671
        %p673 = pneg %p137
        %p674 = pneg %p134
        %p675 = scmp.lt.s32.totalorder %s32, 1
        %s676 = scalar_select %p675, %s32, 1
        %s677 = smul.addr %s676, 2
        %s678 = scalar_lea.vmem %s5, %s677
        %p679 = pneg %p163
        %p680 = pneg %p160
        %p681 = scmp.lt.s32.totalorder %s32, 1
        %s682 = scalar_select %p681, %s32, 1
        %s683 = smul.addr %s682, 8
        %s684 = smul.addr %s683, 4
        %s685 = scalar_lea.vmem %s6, %s684
        %p686 = pneg %p189
        %p687 = pneg %p186
        %p688 = scmp.lt.s32.totalorder %s32, 1
        %s689 = scalar_select %p688, %s32, 1
        %s690 = scalar_lea.vmem %s7, %s689
        %p691 = pneg %p215
        %p692 = pneg %p212
        %p693 = scmp.lt.s32.totalorder %s32, 1
        %s694 = scalar_select %p693, %s32, 1
        %s695 = scalar_lea.vmem %s8, %s694
        %p696 = pneg %p241
        %p697 = pneg %p238
        %p698 = scmp.lt.s32.totalorder %s32, 1
        %s699 = scalar_select %p698, %s32, 1
        %s700 = scalar_lea.vmem %s9, %s699
        %p701 = pneg %p267
        %p702 = pneg %p264
        %p703 = scmp.lt.s32.totalorder %s32, 1
        %s704 = scalar_select %p703, %s32, 1
        %s705 = smul.addr %s704, 16
        %s706 = smul.addr %s705, 4
        %s707 = scalar_lea.vmem %s10, %s706
        %p708 = pneg %p293
        %p709 = pneg %p290
        %p710 = scmp.lt.s32.totalorder %s32, 1
        %s711 = scalar_select %p710, %s32, 1
        %s712 = smul.addr %s711, 2
        %s713 = scalar_lea.vmem %s11, %s712
        %p714 = pneg %p319
        %p715 = pneg %p316
        %p716 = scmp.lt.s32.totalorder %s32, 1
        %s717 = scalar_select %p716, %s32, 1
        %s718 = smul.addr %s717, 32
        %s719 = smul.addr %s718, 4
        %s720 = scalar_lea.vmem %s12, %s719
        %p721 = pneg %p345
        %p722 = pneg %p342
        %p723 = scmp.lt.s32.totalorder %s32, 1
        %s724 = scalar_select %p723, %s32, 1
        %s725 = scalar_lea.vmem %s13, %s724
        %p726 = pneg %p371
        %p727 = pneg %p368
        %p728 = scmp.lt.s32.totalorder %s32, 1
        %s729 = scalar_select %p728, %s32, 1
        %s730 = scalar_lea.vmem %s14, %s729
        %p731 = pneg %p397
        %p732 = pneg %p394
        %p733 = scmp.lt.s32.totalorder %s32, 1
        %s734 = scalar_select %p733, %s32, 1
        %s735 = scalar_lea.vmem %s15, %s734
        %p736 = pneg %p423
        %p737 = pneg %p420
        %p738 = pneg %p444
        %p739 = pneg %p441
        %p740 = pneg %p465
        %p741 = pneg %p462
        %p742 = pneg %p486
        %p743 = pneg %p483
        %p744 = pneg %p507
        %p745 = pneg %p504
        %p746 = pneg %p528
        %p747 = pneg %p525
        %p748 = scmp.lt.s32.totalorder %s32, 1
        %s749 = scalar_select %p748, %s32, 1
        %s750 = smul.addr %s749, 16
        %s751 = smul.addr %s750, 4
        %s752 = scalar_lea.vmem %s4, %s751
        %p753 = scmp.lt.s32.totalorder %s32, 1
        %s754 = scalar_select %p753, %s32, 1
        %s755 = smul.addr %s754, 2
        %s756 = scalar_lea.vmem %s5, %s755
        %p757 = scmp.lt.s32.totalorder %s32, 1
        %s758 = scalar_select %p757, %s32, 1
        %s759 = smul.addr %s758, 8
        %s760 = smul.addr %s759, 4
        %s761 = scalar_lea.vmem %s6, %s760
        %p762 = scmp.lt.s32.totalorder %s32, 1
        %s763 = scalar_select %p762, %s32, 1
        %s764 = scalar_lea.vmem %s7, %s763
        %p765 = scmp.lt.s32.totalorder %s32, 1
        %s766 = scalar_select %p765, %s32, 1
        %s767 = scalar_lea.vmem %s8, %s766
        %p768 = scmp.lt.s32.totalorder %s32, 1
        %s769 = scalar_select %p768, %s32, 1
        %s770 = scalar_lea.vmem %s9, %s769
        %p771 = scmp.lt.s32.totalorder %s32, 1
        %s772 = scalar_select %p771, %s32, 1
        %s773 = smul.addr %s772, 16
        %s774 = smul.addr %s773, 4
        %s775 = scalar_lea.vmem %s10, %s774
        %p776 = scmp.lt.s32.totalorder %s32, 1
        %s777 = scalar_select %p776, %s32, 1
        %s778 = smul.addr %s777, 2
        %s779 = scalar_lea.vmem %s11, %s778
        %p780 = scmp.lt.s32.totalorder %s32, 1
        %s781 = scalar_select %p780, %s32, 1
        %s782 = smul.addr %s781, 32
        %s783 = smul.addr %s782, 4
        %s784 = scalar_lea.vmem %s12, %s783
        %p785 = scmp.lt.s32.totalorder %s32, 1
        %s786 = scalar_select %p785, %s32, 1
        %s787 = scalar_lea.vmem %s13, %s786
        %p788 = scmp.lt.s32.totalorder %s32, 1
        %s789 = scalar_select %p788, %s32, 1
        %s790 = scalar_lea.vmem %s14, %s789
        %p791 = scmp.lt.s32.totalorder %s32, 1
        %s792 = scalar_select %p791, %s32, 1
        %s793 = scalar_lea.vmem %s15, %s792
        %p795 = scmp.eq.s32.totalorder %s32, 0
        // Predicated region
        $region101: #{bert_classify_forward.1} parent=99 // pred_check
          %p796 = pneg %p795
        $region102: #{bert_classify_forward.1} parent=99 // pred_check_branch
          %798 = sbr.rel (%p796) target = $region104
        $region103: #{bert_classify_forward.1} parent=99 // pred_region
          %v799 = vld [vmem:[%s0] sm:$0xff]
          %v800 = vld [vmem:[%s0 + $0x8] sm:$0xff]
          %v801 = vld [vmem:[%s2] sm:$0x1]
          %v802 = vld [vmem:[%s3] sm:$0x1]
          %vm803 = vcmask 523264
          %v804 = vsel %vm803, %v799, 0.0
          %805 = vadd.xlane.f32.xlu0 %v804
          %v806 = vpop.xlane.xlu0 %805
          %v807 = vsel %vm803, %v800, 0.0
          %808 = vadd.xlane.f32.xlu0 %v807
          %v809 = vpop.xlane.xlu0 %808
          %v810 = vrcp.pop 64.0
          %v811 = vmul.f32 %v806, %v810
          %v812 = vmul.f32 %v809, %v810
          %v813 = vsub.f32 %v799, %v811
          %v814 = vsub.f32 %v800, %v812
          %v815 = vmul.f32 %v813, %v813
          %v816 = vmul.f32 %v814, %v814
          %v817 = vsel %vm803, %v815, 0.0
          %818 = vadd.xlane.f32.xlu0 %v817
          %v819 = vpop.xlane.xlu0 %818
          %v820 = vsel %vm803, %v816, 0.0
          %821 = vadd.xlane.f32.xlu0 %v820
          %v822 = vpop.xlane.xlu0 %821
          %v823 = vmul.f32 %v819, %v810
          %v824 = vmul.f32 %v822, %v810
          %v825 = vadd.f32 %v823, 1e-12
          %v826 = vadd.f32 %v824, 1e-12
          %v827 = vrsqrt.pop %v825
          %v828 = vrsqrt.pop %v826
          %v829 = vmul.f32 %v813, %v827
          %v830 = vmul.f32 %v814, %v828
          %v832 = vlaneseq
          %v833 = vshrl.u32 %v832, 7
          %v834 = vsub.s32 0, %v833
          %v835 = vrot.slane %v801, %v834
          %v837 = vmul.f32 %v829, %v835
          %v838 = vmul.f32 %v830, %v835
          %v840 = vlaneseq
          %v841 = vshrl.u32 %v840, 7
          %v842 = vsub.s32 0, %v841
          %v843 = vrot.slane %v802, %v842
          %v845 = vadd.f32 %v837, %v843
          %v846 = vadd.f32 %v838, %v843
          %847 = vst.msk [vmem:[#allocation2] sm:$0xff] %vm803, %v845
          %848 = vst.msk [vmem:[#allocation2 + $0x8] sm:$0xff] %vm803, %v846
        $region104: #{bert_classify_forward.1} parent=99 // pred_fallthru
          _
        %v849 = vld [vmem:[#allocation2] sm:$0xff]
        %v850 = vld [vmem:[#allocation2 + $0x8] sm:$0xff]
        %v851 = vpack.c.bf16 %v850, %v849
        %v852 = vld [vmem:[%s752] sm:$0xff]
        %v853 = vld [vmem:[%s752 + $0x8] sm:$0xff]
        %v854 = vld [vmem:[%s752 + $0x10] sm:$0xff]
        %v855 = vld [vmem:[%s752 + $0x18] sm:$0xff]
        %v856 = vld [vmem:[%s752 + $0x20] sm:$0xff]
        %v857 = vld [vmem:[%s752 + $0x28] sm:$0xff]
        %v858 = vld [vmem:[%s752 + $0x30] sm:$0xff]
        %v859 = vld [vmem:[%s752 + $0x38] sm:$0xff]
        %v860 = vld [vmem:[%s756] sm:$0x3]
        %v862 = vlaneseq
        %v863 = vshrl.u32 %v862, 7
        %v864 = vsub.s32 0, %v863
        %v865 = vrot.slane %v860, %v864
        %v866 = vlaneseq
        %v867 = vshrl.u32 %v866, 7
        %v868 = vsub.s32 1, %v867
        %v869 = vrot.slane %v860, %v868
        %v880 = vunpack.c.l.b16 %v852
        %v881 = vunpack.c.h.b16 %v852
        %v882 = vunpack.c.l.b16 %v853
        %v883 = vunpack.c.h.b16 %v853
        %v884 = vunpack.c.l.b16 %v854
        %v885 = vunpack.c.h.b16 %v854
        %v886 = vunpack.c.l.b16 %v855
        %v887 = vunpack.c.h.b16 %v855
        %v888 = vunpack.c.l.b16 %v856
        %v889 = vunpack.c.h.b16 %v856
        %v890 = vunpack.c.l.b16 %v857
        %v891 = vunpack.c.h.b16 %v857
        %v892 = vunpack.c.l.b16 %v858
        %v893 = vunpack.c.h.b16 %v858
        %v894 = vunpack.c.l.b16 %v859
        %v895 = vunpack.c.h.b16 %v859
        %v896 = vpack.c.b16 %v882, %v880
        %v897 = vpack.c.b16 %v883, %v881
        %v898 = vpack.c.b16 %v886, %v884
        %v899 = vpack.c.b16 %v887, %v885
        %v900 = vpack.c.b16 %v890, %v888
        %v901 = vpack.c.b16 %v891, %v889
        %v902 = vpack.c.b16 %v894, %v892
        %v903 = vpack.c.b16 %v895, %v893
        %vm912 = vcmask 523264
        %v914 = vsel %vm912, %v851, 0
        %916 = vmatprep.subr.bf16.mxu0 %v897
        %917 = vmatpush1.bf16.msra.mxu0 %v896
        %918 = vmatprep.subr.bf16.mxu0 %v899
        %919 = vmatpush1.bf16.msra.mxu0 %v898
        %920 = vmatprep.subr.bf16.mxu0 %v901
        %921 = vmatpush1.bf16.msra.mxu0 %v900
        %922 = vmatprep.subr.bf16.mxu0 %v903
        %923 = vmatpush1.bf16.msra.mxu0 %v902
        %924 = vmatprep.subr.bf16.mxu0 0
        %925 = vmatpush1.bf16.msra.mxu0 0
        %926 = vmatprep.subr.bf16.mxu0 0
        %927 = vmatpush1.bf16.msra.mxu0 0
        %928 = vmatprep.subr.bf16.mxu0 0
        %929 = vmatpush1.bf16.msra.mxu0 0
        %930 = vmatprep.subr.bf16.mxu0 0
        %931 = vmatpush1.bf16.msra.mxu0 0
        %932 = vmatprep.subr.bf16.mxu0 0
        %933 = vmatpush1.bf16.msra.mxu0 0
        %934 = vmatprep.subr.bf16.mxu0 0
        %935 = vmatpush1.bf16.msra.mxu0 0
        %936 = vmatprep.subr.bf16.mxu0 0
        %937 = vmatpush1.bf16.msra.mxu0 0
        %938 = vmatprep.subr.bf16.mxu0 0
        %939 = vmatpush1.bf16.msra.mxu0 0
        %940 = vmatprep.subr.bf16.mxu0 0
        %941 = vmatpush1.bf16.msra.mxu0 0
        %942 = vmatprep.subr.bf16.mxu0 0
        %943 = vmatpush1.bf16.msra.mxu0 0
        %944 = vmatprep.subr.bf16.mxu0 0
        %945 = vmatpush1.bf16.msra.mxu0 0
        %946 = vmatprep.subr.bf16.mxu0 0
        %947 = vmatpush1.bf16.msra.mxu0 0
        %948 = vmatprep.mubr.bf16.mxu0 0
        %949 = vmatmul.mubr.bf16.gmra.mrb[0].mxu0 %v914
        %v950 = vpop.f32.mrb[0].mxu0
        %v951 = vadd.f32 %v865, %v950
        %v952 = vpop.f32.mrb[0].mxu0
        %v953 = vadd.f32 %v869, %v952
        %v954 = vpop.f32.mrb[0].mxu0
        %v955 = vadd.f32 %v865, %v954
        %v956 = vpop.f32.mrb[0].mxu0
        %v957 = vadd.f32 %v869, %v956
        %958 = vdwg.mxu0
        %v959 = vld [vmem:[%s1] sm:$0x3]
        %v960 = vpack.c.bf16 %v951, %v951
        %962 = vrot.lane.b32.xlu0 %v960, 64
        %v963 = vpop.permute.xlu0 %962
        %vm964 = vcmask 130048
        %v966 = vsel %vm964, %v960, 0
        %v969 = vsel %vm964, %v963, 0
        %971 = vmatprep.subr.bf16.mxu0 0
        %972 = vmatpush1.bf16.xpose.msra.mxu0 %v969
        %973 = vmatprep.subr.bf16.mxu0 0
        %974 = vmatpush1.bf16.xpose.msra.mxu0 0
        %975 = vmatprep.subr.bf16.mxu0 0
        %976 = vmatpush1.bf16.xpose.msra.mxu0 0
        %977 = vmatprep.subr.bf16.mxu0 0
        %978 = vmatpush1.bf16.xpose.msra.mxu0 0
        %979 = vmatprep.subr.bf16.mxu0 0
        %980 = vmatpush1.bf16.xpose.msra.mxu0 0
        %981 = vmatprep.subr.bf16.mxu0 0
        %982 = vmatpush1.bf16.xpose.msra.mxu0 0
        %983 = vmatprep.subr.bf16.mxu0 0
        %984 = vmatpush1.bf16.xpose.msra.mxu0 0
        %985 = vmatprep.subr.bf16.mxu0 0
        %986 = vmatpush1.bf16.xpose.msra.mxu0 0
        %987 = vmatprep.subr.bf16.mxu0 0
        %988 = vmatpush1.bf16.xpose.msra.mxu0 0
        %989 = vmatprep.subr.bf16.mxu0 0
        %990 = vmatpush1.bf16.xpose.msra.mxu0 0
        %991 = vmatprep.subr.bf16.mxu0 0
        %992 = vmatpush1.bf16.xpose.msra.mxu0 0
        %993 = vmatprep.subr.bf16.mxu0 0
        %994 = vmatpush1.bf16.xpose.msra.mxu0 0
        %995 = vmatprep.subr.bf16.mxu0 0
        %996 = vmatpush1.bf16.xpose.msra.mxu0 0
        %997 = vmatprep.subr.bf16.mxu0 0
        %998 = vmatpush1.bf16.xpose.msra.mxu0 0
        %999 = vmatprep.subr.bf16.mxu0 0
        %1000 = vmatpush1.bf16.xpose.msra.mxu0 0
        %1001 = vmatprep.subr.bf16.mxu0 0
        %1002 = vmatpush1.bf16.xpose.msra.mxu0 0
        %1003 = vmatprep.mubr.bf16.mxu0 0
        %1004 = vmatmul.mubr.bf16.gmra.mrb[0].mxu0 %v966
        %v1005 = vpop.f32.mrb[0].mxu0
        %v1006 = vadd.f32 0.0, %v1005
        %v1007 = vpop.f32.mrb[0].mxu0
        %v1008 = vpop.f32.mrb[0].mxu0
        %v1009 = vpop.f32.mrb[0].mxu0
        %1010 = vdwg.mxu0
        %1011 = vrot.lane.b32.xlu0 %v960, 112
        %v1012 = vpop.permute.xlu0 %1011
        %1013 = vrot.lane.b32.xlu0 %v960, 48
        %v1014 = vpop.permute.xlu0 %1013
        %v1016 = vsel %vm964, %v1012, 0
        %v1019 = vsel %vm964, %v1014, 0
        %1021 = vmatprep.subr.bf16.mxu0 0
        %1022 = vmatpush1.bf16.xpose.msra.mxu0 %v1019
        %1023 = vmatprep.subr.bf16.mxu0 0
        %1024 = vmatpush1.bf16.xpose.msra.mxu0 0
        %1025 = vmatprep.subr.bf16.mxu0 0
        %1026 = vmatpush1.bf16.xpose.msra.mxu0 0
        %1027 = vmatprep.subr.bf16.mxu0 0
        %1028 = vmatpush1.bf16.xpose.msra.mxu0 0
        %1029 = vmatprep.subr.bf16.mxu0 0
        %1030 = vmatpush1.bf16.xpose.msra.mxu0 0
        %1031 = vmatprep.subr.bf16.mxu0 0
        %1032 = vmatpush1.bf16.xpose.msra.mxu0 0
        %1033 = vmatprep.subr.bf16.mxu0 0
        %1034 = vmatpush1.bf16.xpose.msra.mxu0 0
        %1035 = vmatprep.subr.bf16.mxu0 0
        %1036 = vmatpush1.bf16.xpose.msra.mxu0 0
        %1037 = vmatprep.subr.bf16.mxu0 0
        %1038 = vmatpush1.bf16.xpose.msra.mxu0 0
        %1039 = vmatprep.subr.bf16.mxu0 0
        %1040 = vmatpush1.bf16.xpose.msra.mxu0 0
        %1041 = vmatprep.subr.bf16.mxu0 0
        %1042 = vmatpush1.bf16.xpose.msra.mxu0 0
        %1043 = vmatprep.subr.bf16.mxu0 0
        %1044 = vmatpush1.bf16.xpose.msra.mxu0 0
        %1045 = vmatprep.subr.bf16.mxu0 0
        %1046 = vmatpush1.bf16.xpose.msra.mxu0 0
        %1047 = vmatprep.subr.bf16.mxu0 0
        %1048 = vmatpush1.bf16.xpose.msra.mxu0 0
        %1049 = vmatprep.subr.bf16.mxu0 0
        %1050 = vmatpush1.bf16.xpose.msra.mxu0 0
        %1051 = vmatprep.subr.bf16.mxu0 0
        %1052 = vmatpush1.bf16.xpose.msra.mxu0 0
        %1053 = vmatprep.mubr.bf16.mxu0 0
        %1054 = vmatmul.mubr.bf16.gmra.mrb[0].mxu0 %v1016
        %v1055 = vpop.f32.mrb[0].mxu0
        %v1056 = vadd.f32 0.0, %v1055
        %v1057 = vpop.f32.mrb[0].mxu0
        %v1058 = vpop.f32.mrb[0].mxu0
        %v1059 = vpop.f32.mrb[0].mxu0
        %1060 = vdwg.mxu0
        %1061 = vrot.lane.b32.xlu0 %v960, 96
        %v1062 = vpop.permute.xlu0 %1061
        %1063 = vrot.lane.b32.xlu0 %v960, 32
        %v1064 = vpop.permute.xlu0 %1063
        %v1066 = vsel %vm964, %v1062, 0
        %v1069 = vsel %vm964, %v1064, 0
        %1071 = vmatprep.subr.bf16.mxu0 0
        %1072 = vmatpush1.bf16.xpose.msra.mxu0 %v1069
        %1073 = vmatprep.subr.bf16.mxu0 0
        %1074 = vmatpush1.bf16.xpose.msra.mxu0 0
        %1075 = vmatprep.subr.bf16.mxu0 0
        %1076 = vmatpush1.bf16.xpose.msra.mxu0 0
        %1077 = vmatprep.subr.bf16.mxu0 0
        %1078 = vmatpush1.bf16.xpose.msra.mxu0 0
        %1079 = vmatprep.subr.bf16.mxu0 0
        %1080 = vmatpush1.bf16.xpose.msra.mxu0 0
        %1081 = vmatprep.subr.bf16.mxu0 0
        %1082 = vmatpush1.bf16.xpose.msra.mxu0 0
        %1083 = vmatprep.subr.bf16.mxu0 0
        %1084 = vmatpush1.bf16.xpose.msra.mxu0 0
        %1085 = vmatprep.subr.bf16.mxu0 0
        %1086 = vmatpush1.bf16.xpose.msra.mxu0 0
        %1087 = vmatprep.subr.bf16.mxu0 0
        %1088 = vmatpush1.bf16.xpose.msra.mxu0 0
        %1089 = vmatprep.subr.bf16.mxu0 0
        %1090 = vmatpush1.bf16.xpose.msra.mxu0 0
        %1091 = vmatprep.subr.bf16.mxu0 0
        %1092 = vmatpush1.bf16.xpose.msra.mxu0 0
        %1093 = vmatprep.subr.bf16.mxu0 0
        %1094 = vmatpush1.bf16.xpose.msra.mxu0 0
        %1095 = vmatprep.subr.bf16.mxu0 0
        %1096 = vmatpush1.bf16.xpose.msra.mxu0 0
        %1097 = vmatprep.subr.bf16.mxu0 0
        %1098 = vmatpush1.bf16.xpose.msra.mxu0 0
        %1099 = vmatprep.subr.bf16.mxu0 0
        %1100 = vmatpush1.bf16.xpose.msra.mxu0 0
        %1101 = vmatprep.subr.bf16.mxu0 0
        %1102 = vmatpush1.bf16.xpose.msra.mxu0 0
        %1103 = vmatprep.mubr.bf16.mxu0 0
        %1104 = vmatmul.mubr.bf16.gmra.mrb[0].mxu0 %v1066
        %v1105 = vpop.f32.mrb[0].mxu0
        %v1106 = vadd.f32 0.0, %v1105
        %v1107 = vpop.f32.mrb[0].mxu0
        %v1108 = vpop.f32.mrb[0].mxu0
        %v1109 = vpop.f32.mrb[0].mxu0
        %1110 = vdwg.mxu0
        %1111 = vrot.lane.b32.xlu0 %v960, 80
        %v1112 = vpop.permute.xlu0 %1111
        %1113 = vrot.lane.b32.xlu0 %v960, 16
        %v1114 = vpop.permute.xlu0 %1113
        %v1116 = vsel %vm964, %v1112, 0
        %v1119 = vsel %vm964, %v1114, 0
        %1121 = vmatprep.subr.bf16.mxu0 0
        %1122 = vmatpush1.bf16.xpose.msra.mxu0 %v1119
        %1123 = vmatprep.subr.bf16.mxu0 0
        %1124 = vmatpush1.bf16.xpose.msra.mxu0 0
        %1125 = vmatprep.subr.bf16.mxu0 0
        %1126 = vmatpush1.bf16.xpose.msra.mxu0 0
        %1127 = vmatprep.subr.bf16.mxu0 0
        %1128 = vmatpush1.bf16.xpose.msra.mxu0 0
        %1129 = vmatprep.subr.bf16.mxu0 0
        %1130 = vmatpush1.bf16.xpose.msra.mxu0 0
        %1131 = vmatprep.subr.bf16.mxu0 0
        %1132 = vmatpush1.bf16.xpose.msra.mxu0 0
        %1133 = vmatprep.subr.bf16.mxu0 0
        %1134 = vmatpush1.bf16.xpose.msra.mxu0 0
        %1135 = vmatprep.subr.bf16.mxu0 0
        %1136 = vmatpush1.bf16.xpose.msra.mxu0 0
        %1137 = vmatprep.subr.bf16.mxu0 0
        %1138 = vmatpush1.bf16.xpose.msra.mxu0 0
        %1139 = vmatprep.subr.bf16.mxu0 0
        %1140 = vmatpush1.bf16.xpose.msra.mxu0 0
        %1141 = vmatprep.subr.bf16.mxu0 0
        %1142 = vmatpush1.bf16.xpose.msra.mxu0 0
        %1143 = vmatprep.subr.bf16.mxu0 0
        %1144 = vmatpush1.bf16.xpose.msra.mxu0 0
        %1145 = vmatprep.subr.bf16.mxu0 0
        %1146 = vmatpush1.bf16.xpose.msra.mxu0 0
        %1147 = vmatprep.subr.bf16.mxu0 0
        %1148 = vmatpush1.bf16.xpose.msra.mxu0 0
        %1149 = vmatprep.subr.bf16.mxu0 0
        %1150 = vmatpush1.bf16.xpose.msra.mxu0 0
        %1151 = vmatprep.subr.bf16.mxu0 0
        %1152 = vmatpush1.bf16.xpose.msra.mxu0 0
        %1153 = vmatprep.mubr.bf16.mxu0 0
        %1154 = vmatmul.mubr.bf16.gmra.mrb[0].mxu0 %v1116
        %v1155 = vpop.f32.mrb[0].mxu0
        %v1156 = vadd.f32 0.0, %v1155
        %v1157 = vpop.f32.mrb[0].mxu0
        %v1158 = vpop.f32.mrb[0].mxu0
        %v1159 = vpop.f32.mrb[0].mxu0
        %1160 = vdwg.mxu0
        %v1161 = vlaneseq
        %v1162 = vshrl.u32 %v1161, 7
        %v1163 = vsub.s32 0, %v1162
        %v1164 = vrot.slane %v959, %v1163
        %v1165 = vadd.f32 %v1006, %v1164
        %v1166 = vadd.f32 %v1056, %v1164
        %v1167 = vadd.f32 %v1106, %v1164
        %v1168 = vadd.f32 %v1156, %v1164
        %vm1169 = vcmask 64512
        %v1170 = vsel %vm1169, %v1165, -inf
        %1171 = vmax.xlane.f32.xlu0 %v1170
        %v1172 = vpop.xlane.xlu0 %1171
        %v1173 = vsel %vm1169, %v1166, -inf
        %1174 = vmax.xlane.f32.xlu0 %v1173
        %v1175 = vpop.xlane.xlu0 %1174
        %v1176 = vsel %vm1169, %v1167, -inf
        %1177 = vmax.xlane.f32.xlu0 %v1176
        %v1178 = vpop.xlane.xlu0 %1177
        %v1179 = vsel %vm1169, %v1168, -inf
        %1180 = vmax.xlane.f32.xlu0 %v1179
        %v1181 = vpop.xlane.xlu0 %1180
        %v1182 = vsub.f32 %v1165, %v1172
        %v1183 = vsub.f32 %v1166, %v1175
        %v1184 = vsub.f32 %v1167, %v1178
        %v1185 = vsub.f32 %v1168, %v1181
        %v1186 = vmul.f32 %v1182, 1.442695
        %v1187 = vpow.pop %v1186
        %v1188 = vmul.f32 %v1183, 1.442695
        %v1189 = vpow.pop %v1188
        %v1190 = vmul.f32 %v1184, 1.442695
        %v1191 = vpow.pop %v1190
        %v1192 = vmul.f32 %v1185, 1.442695
        %v1193 = vpow.pop %v1192
        %v1194 = vsel %vm1169, %v1187, 0.0
        %1195 = vadd.xlane.f32.xlu0 %v1194
        %v1196 = vpop.xlane.xlu0 %1195
        %v1197 = vsel %vm1169, %v1189, 0.0
        %1198 = vadd.xlane.f32.xlu0 %v1197
        %v1199 = vpop.xlane.xlu0 %1198
        %v1200 = vsel %vm1169, %v1191, 0.0
        %1201 = vadd.xlane.f32.xlu0 %v1200
        %v1202 = vpop.xlane.xlu0 %1201
        %v1203 = vsel %vm1169, %v1193, 0.0
        %1204 = vadd.xlane.f32.xlu0 %v1203
        %v1205 = vpop.xlane.xlu0 %1204
        %v1206 = vrcp.pop %v1196
        %v1207 = vrcp.pop %v1199
        %v1208 = vrcp.pop %v1202
        %v1209 = vrcp.pop %v1205
        %v1210 = vmul.f32 %v1187, %v1206
        %v1211 = vmul.f32 %v1189, %v1207
        %v1212 = vmul.f32 %v1191, %v1208
        %v1213 = vmul.f32 %v1193, %v1209
        %v1214 = vpack.c.bf16 %v953, %v953
        %v1215 = vpack.c.bf16 %v1210, %v1210
        %v1217 = vsel %vm1169, %v1215, 0
        %vm1219 = vcmask 1043456
        %v1221 = vsel %vm1219, %v1214, 0
        %1223 = vmatprep.subr.bf16.mxu0 0
        %1224 = vmatpush1.bf16.msra.mxu0 %v1221
        %1225 = vmatprep.subr.bf16.mxu0 0
        %1226 = vmatpush1.bf16.msra.mxu0 0
        %1227 = vmatprep.subr.bf16.mxu0 0
        %1228 = vmatpush1.bf16.msra.mxu0 0
        %1229 = vmatprep.subr.bf16.mxu0 0
        %1230 = vmatpush1.bf16.msra.mxu0 0
        %1231 = vmatprep.subr.bf16.mxu0 0
        %1232 = vmatpush1.bf16.msra.mxu0 0
        %1233 = vmatprep.subr.bf16.mxu0 0
        %1234 = vmatpush1.bf16.msra.mxu0 0
        %1235 = vmatprep.subr.bf16.mxu0 0
        %1236 = vmatpush1.bf16.msra.mxu0 0
        %1237 = vmatprep.subr.bf16.mxu0 0
        %1238 = vmatpush1.bf16.msra.mxu0 0
        %1239 = vmatprep.subr.bf16.mxu0 0
        %1240 = vmatpush1.bf16.msra.mxu0 0
        %1241 = vmatprep.subr.bf16.mxu0 0
        %1242 = vmatpush1.bf16.msra.mxu0 0
        %1243 = vmatprep.subr.bf16.mxu0 0
        %1244 = vmatpush1.bf16.msra.mxu0 0
        %1245 = vmatprep.subr.bf16.mxu0 0
        %1246 = vmatpush1.bf16.msra.mxu0 0
        %1247 = vmatprep.subr.bf16.mxu0 0
        %1248 = vmatpush1.bf16.msra.mxu0 0
        %1249 = vmatprep.subr.bf16.mxu0 0
        %1250 = vmatpush1.bf16.msra.mxu0 0
        %1251 = vmatprep.subr.bf16.mxu0 0
        %1252 = vmatpush1.bf16.msra.mxu0 0
        %1253 = vmatprep.subr.bf16.mxu0 0
        %1254 = vmatpush1.bf16.msra.mxu0 0
        %1255 = vmatprep.mubr.bf16.mxu0 0
        %1256 = vmatmul.mubr.bf16.gmra.mrb[0].mxu0 %v1217
        %v1257 = vpop.f32.mrb[0].mxu0
        %v1258 = vadd.f32 0.0, %v1257
        %v1259 = vpop.f32.mrb[0].mxu0
        %v1260 = vpop.f32.mrb[0].mxu0
        %v1261 = vpop.f32.mrb[0].mxu0
        %1262 = vdwg.mxu0
        %v1263 = vpack.c.bf16 %v1211, %v1211
        %1265 = vrot.lane.b32.xlu0 %v1214, 112
        %v1266 = vpop.permute.xlu0 %1265
        %v1268 = vsel %vm1169, %v1263, 0
        %v1271 = vsel %vm1219, %v1266, 0
        %1273 = vmatprep.subr.bf16.mxu0 0
        %1274 = vmatpush1.bf16.msra.mxu0 %v1271
        %1275 = vmatprep.subr.bf16.mxu0 0
        %1276 = vmatpush1.bf16.msra.mxu0 0
        %1277 = vmatprep.subr.bf16.mxu0 0
        %1278 = vmatpush1.bf16.msra.mxu0 0
        %1279 = vmatprep.subr.bf16.mxu0 0
        %1280 = vmatpush1.bf16.msra.mxu0 0
        %1281 = vmatprep.subr.bf16.mxu0 0
        %1282 = vmatpush1.bf16.msra.mxu0 0
        %1283 = vmatprep.subr.bf16.mxu0 0
        %1284 = vmatpush1.bf16.msra.mxu0 0
        %1285 = vmatprep.subr.bf16.mxu0 0
        %1286 = vmatpush1.bf16.msra.mxu0 0
        %1287 = vmatprep.subr.bf16.mxu0 0
        %1288 = vmatpush1.bf16.msra.mxu0 0
        %1289 = vmatprep.subr.bf16.mxu0 0
        %1290 = vmatpush1.bf16.msra.mxu0 0
        %1291 = vmatprep.subr.bf16.mxu0 0
        %1292 = vmatpush1.bf16.msra.mxu0 0
        %1293 = vmatprep.subr.bf16.mxu0 0
        %1294 = vmatpush1.bf16.msra.mxu0 0
        %1295 = vmatprep.subr.bf16.mxu0 0
        %1296 = vmatpush1.bf16.msra.mxu0 0
        %1297 = vmatprep.subr.bf16.mxu0 0
        %1298 = vmatpush1.bf16.msra.mxu0 0
        %1299 = vmatprep.subr.bf16.mxu0 0
        %1300 = vmatpush1.bf16.msra.mxu0 0
        %1301 = vmatprep.subr.bf16.mxu0 0
        %1302 = vmatpush1.bf16.msra.mxu0 0
        %1303 = vmatprep.subr.bf16.mxu0 0
        %1304 = vmatpush1.bf16.msra.mxu0 0
        %1305 = vmatprep.mubr.bf16.mxu0 0
        %1306 = vmatmul.mubr.bf16.gmra.mrb[0].mxu0 %v1268
        %v1307 = vpop.f32.mrb[0].mxu0
        %v1308 = vadd.f32 0.0, %v1307
        %v1309 = vpop.f32.mrb[0].mxu0
        %v1310 = vpop.f32.mrb[0].mxu0
        %v1311 = vpop.f32.mrb[0].mxu0
        %1312 = vdwg.mxu0
        %v1313 = vpack.c.bf16 %v1212, %v1212
        %1314 = vrot.lane.b32.xlu0 %v1214, 96
        %v1315 = vpop.permute.xlu0 %1314
        %v1317 = vsel %vm1169, %v1313, 0
        %v1320 = vsel %vm1219, %v1315, 0
        %1322 = vmatprep.subr.bf16.mxu0 0
        %1323 = vmatpush1.bf16.msra.mxu0 %v1320
        %1324 = vmatprep.subr.bf16.mxu0 0
        %1325 = vmatpush1.bf16.msra.mxu0 0
        %1326 = vmatprep.subr.bf16.mxu0 0
        %1327 = vmatpush1.bf16.msra.mxu0 0
        %1328 = vmatprep.subr.bf16.mxu0 0
        %1329 = vmatpush1.bf16.msra.mxu0 0
        %1330 = vmatprep.subr.bf16.mxu0 0
        %1331 = vmatpush1.bf16.msra.mxu0 0
        %1332 = vmatprep.subr.bf16.mxu0 0
        %1333 = vmatpush1.bf16.msra.mxu0 0
        %1334 = vmatprep.subr.bf16.mxu0 0
        %1335 = vmatpush1.bf16.msra.mxu0 0
        %1336 = vmatprep.subr.bf16.mxu0 0
        %1337 = vmatpush1.bf16.msra.mxu0 0
        %1338 = vmatprep.subr.bf16.mxu0 0
        %1339 = vmatpush1.bf16.msra.mxu0 0
        %1340 = vmatprep.subr.bf16.mxu0 0
        %1341 = vmatpush1.bf16.msra.mxu0 0
        %1342 = vmatprep.subr.bf16.mxu0 0
        %1343 = vmatpush1.bf16.msra.mxu0 0
        %1344 = vmatprep.subr.bf16.mxu0 0
        %1345 = vmatpush1.bf16.msra.mxu0 0
        %1346 = vmatprep.subr.bf16.mxu0 0
        %1347 = vmatpush1.bf16.msra.mxu0 0
        %1348 = vmatprep.subr.bf16.mxu0 0
        %1349 = vmatpush1.bf16.msra.mxu0 0
        %1350 = vmatprep.subr.bf16.mxu0 0
        %1351 = vmatpush1.bf16.msra.mxu0 0
        %1352 = vmatprep.subr.bf16.mxu0 0
        %1353 = vmatpush1.bf16.msra.mxu0 0
        %1354 = vmatprep.mubr.bf16.mxu0 0
        %1355 = vmatmul.mubr.bf16.gmra.mrb[0].mxu0 %v1317
        %v1356 = vpop.f32.mrb[0].mxu0
        %v1357 = vadd.f32 0.0, %v1356
        %v1358 = vpop.f32.mrb[0].mxu0
        %v1359 = vpop.f32.mrb[0].mxu0
        %v1360 = vpop.f32.mrb[0].mxu0
        %1361 = vdwg.mxu0
        %v1362 = vpack.c.bf16 %v1213, %v1213
        %1363 = vrot.lane.b32.xlu0 %v1214, 80
        %v1364 = vpop.permute.xlu0 %1363
        %v1366 = vsel %vm1169, %v1362, 0
        %v1369 = vsel %vm1219, %v1364, 0
        %1371 = vmatprep.subr.bf16.mxu0 0
        %1372 = vmatpush1.bf16.msra.mxu0 %v1369
        %1373 = vmatprep.subr.bf16.mxu0 0
        %1374 = vmatpush1.bf16.msra.mxu0 0
        %1375 = vmatprep.subr.bf16.mxu0 0
        %1376 = vmatpush1.bf16.msra.mxu0 0
        %1377 = vmatprep.subr.bf16.mxu0 0
        %1378 = vmatpush1.bf16.msra.mxu0 0
        %1379 = vmatprep.subr.bf16.mxu0 0
        %1380 = vmatpush1.bf16.msra.mxu0 0
        %1381 = vmatprep.subr.bf16.mxu0 0
        %1382 = vmatpush1.bf16.msra.mxu0 0
        %1383 = vmatprep.subr.bf16.mxu0 0
        %1384 = vmatpush1.bf16.msra.mxu0 0
        %1385 = vmatprep.subr.bf16.mxu0 0
        %1386 = vmatpush1.bf16.msra.mxu0 0
        %1387 = vmatprep.subr.bf16.mxu0 0
        %1388 = vmatpush1.bf16.msra.mxu0 0
        %1389 = vmatprep.subr.bf16.mxu0 0
        %1390 = vmatpush1.bf16.msra.mxu0 0
        %1391 = vmatprep.subr.bf16.mxu0 0
        %1392 = vmatpush1.bf16.msra.mxu0 0
        %1393 = vmatprep.subr.bf16.mxu0 0
        %1394 = vmatpush1.bf16.msra.mxu0 0
        %1395 = vmatprep.subr.bf16.mxu0 0
        %1396 = vmatpush1.bf16.msra.mxu0 0
        %1397 = vmatprep.subr.bf16.mxu0 0
        %1398 = vmatpush1.bf16.msra.mxu0 0
        %1399 = vmatprep.subr.bf16.mxu0 0
        %1400 = vmatpush1.bf16.msra.mxu0 0
        %1401 = vmatprep.subr.bf16.mxu0 0
        %1402 = vmatpush1.bf16.msra.mxu0 0
        %1403 = vmatprep.mubr.bf16.mxu0 0
        %1404 = vmatmul.mubr.bf16.gmra.mrb[0].mxu0 %v1366
        %v1405 = vpop.f32.mrb[0].mxu0
        %v1406 = vadd.f32 0.0, %v1405
        %v1407 = vpop.f32.mrb[0].mxu0
        %v1408 = vpop.f32.mrb[0].mxu0
        %v1409 = vpop.f32.mrb[0].mxu0
        %1410 = vdwg.mxu0
        %1412 = vrot.lane.b32.xlu0 %v1308, 16
        %v1413 = vpop.permute.xlu0 %1412
        %1416 = vrot.lane.b32.xlu0 %v1357, 32
        %v1417 = vpop.permute.xlu0 %1416
        %1420 = vrot.lane.b32.xlu0 %v1406, 48
        %v1421 = vpop.permute.xlu0 %1420
        %v1423 = vsel %vm964, %v1258, %v1413
        %vm1424 = vcmask 261120
        %v1425 = vsel %vm1424, %v1423, %v1417
        %vm1426 = vcmask 392192
        %v1427 = vsel %vm1426, %v1425, %v1421
        %v1428 = vpack.c.bf16 %v955, %v955
        %1430 = vrot.lane.b32.xlu0 %v1428, 64
        %v1431 = vpop.permute.xlu0 %1430
        %v1433 = vsel %vm964, %v1428, 0
        %v1436 = vsel %vm964, %v1431, 0
        %1438 = vmatprep.subr.bf16.mxu0 0
        %1439 = vmatpush1.bf16.xpose.msra.mxu0 %v1436
        %1440 = vmatprep.subr.bf16.mxu0 0
        %1441 = vmatpush1.bf16.xpose.msra.mxu0 0
        %1442 = vmatprep.subr.bf16.mxu0 0
        %1443 = vmatpush1.bf16.xpose.msra.mxu0 0
        %1444 = vmatprep.subr.bf16.mxu0 0
        %1445 = vmatpush1.bf16.xpose.msra.mxu0 0
        %1446 = vmatprep.subr.bf16.mxu0 0
        %1447 = vmatpush1.bf16.xpose.msra.mxu0 0
        %1448 = vmatprep.subr.bf16.mxu0 0
        %1449 = vmatpush1.bf16.xpose.msra.mxu0 0
        %1450 = vmatprep.subr.bf16.mxu0 0
        %1451 = vmatpush1.bf16.xpose.msra.mxu0 0
        %1452 = vmatprep.subr.bf16.mxu0 0
        %1453 = vmatpush1.bf16.xpose.msra.mxu0 0
        %1454 = vmatprep.subr.bf16.mxu0 0
        %1455 = vmatpush1.bf16.xpose.msra.mxu0 0
        %1456 = vmatprep.subr.bf16.mxu0 0
        %1457 = vmatpush1.bf16.xpose.msra.mxu0 0
        %1458 = vmatprep.subr.bf16.mxu0 0
        %1459 = vmatpush1.bf16.xpose.msra.mxu0 0
        %1460 = vmatprep.subr.bf16.mxu0 0
        %1461 = vmatpush1.bf16.xpose.msra.mxu0 0
        %1462 = vmatprep.subr.bf16.mxu0 0
        %1463 = vmatpush1.bf16.xpose.msra.mxu0 0
        %1464 = vmatprep.subr.bf16.mxu0 0
        %1465 = vmatpush1.bf16.xpose.msra.mxu0 0
        %1466 = vmatprep.subr.bf16.mxu0 0
        %1467 = vmatpush1.bf16.xpose.msra.mxu0 0
        %1468 = vmatprep.subr.bf16.mxu0 0
        %1469 = vmatpush1.bf16.xpose.msra.mxu0 0
        %1470 = vmatprep.mubr.bf16.mxu0 0
        %1471 = vmatmul.mubr.bf16.gmra.mrb[0].mxu0 %v1433
        %v1472 = vpop.f32.mrb[0].mxu0
        %v1473 = vadd.f32 0.0, %v1472
        %v1474 = vpop.f32.mrb[0].mxu0
        %v1475 = vpop.f32.mrb[0].mxu0
        %v1476 = vpop.f32.mrb[0].mxu0
        %1477 = vdwg.mxu0
        %1478 = vrot.lane.b32.xlu0 %v1428, 112
        %v1479 = vpop.permute.xlu0 %1478
        %1480 = vrot.lane.b32.xlu0 %v1428, 48
        %v1481 = vpop.permute.xlu0 %1480
        %v1483 = vsel %vm964, %v1479, 0
        %v1486 = vsel %vm964, %v1481, 0
        %1488 = vmatprep.subr.bf16.mxu0 0
        %1489 = vmatpush1.bf16.xpose.msra.mxu0 %v1486
        %1490 = vmatprep.subr.bf16.mxu0 0
        %1491 = vmatpush1.bf16.xpose.msra.mxu0 0
        %1492 = vmatprep.subr.bf16.mxu0 0
        %1493 = vmatpush1.bf16.xpose.msra.mxu0 0
        %1494 = vmatprep.subr.bf16.mxu0 0
        %1495 = vmatpush1.bf16.xpose.msra.mxu0 0
        %1496 = vmatprep.subr.bf16.mxu0 0
        %1497 = vmatpush1.bf16.xpose.msra.mxu0 0
        %1498 = vmatprep.subr.bf16.mxu0 0
        %1499 = vmatpush1.bf16.xpose.msra.mxu0 0
        %1500 = vmatprep.subr.bf16.mxu0 0
        %1501 = vmatpush1.bf16.xpose.msra.mxu0 0
        %1502 = vmatprep.subr.bf16.mxu0 0
        %1503 = vmatpush1.bf16.xpose.msra.mxu0 0
        %1504 = vmatprep.subr.bf16.mxu0 0
        %1505 = vmatpush1.bf16.xpose.msra.mxu0 0
        %1506 = vmatprep.subr.bf16.mxu0 0
        %1507 = vmatpush1.bf16.xpose.msra.mxu0 0
        %1508 = vmatprep.subr.bf16.mxu0 0
        %1509 = vmatpush1.bf16.xpose.msra.mxu0 0
        %1510 = vmatprep.subr.bf16.mxu0 0
        %1511 = vmatpush1.bf16.xpose.msra.mxu0 0
        %1512 = vmatprep.subr.bf16.mxu0 0
        %1513 = vmatpush1.bf16.xpose.msra.mxu0 0
        %1514 = vmatprep.subr.bf16.mxu0 0
        %1515 = vmatpush1.bf16.xpose.msra.mxu0 0
        %1516 = vmatprep.subr.bf16.mxu0 0
        %1517 = vmatpush1.bf16.xpose.msra.mxu0 0
        %1518 = vmatprep.subr.bf16.mxu0 0
        %1519 = vmatpush1.bf16.xpose.msra.mxu0 0
        %1520 = vmatprep.mubr.bf16.mxu0 0
        %1521 = vmatmul.mubr.bf16.gmra.mrb[0].mxu0 %v1483
        %v1522 = vpop.f32.mrb[0].mxu0
        %v1523 = vadd.f32 0.0, %v1522
        %v1524 = vpop.f32.mrb[0].mxu0
        %v1525 = vpop.f32.mrb[0].mxu0
        %v1526 = vpop.f32.mrb[0].mxu0
        %1527 = vdwg.mxu0
        %1528 = vrot.lane.b32.xlu0 %v1428, 96
        %v1529 = vpop.permute.xlu0 %1528
        %1530 = vrot.lane.b32.xlu0 %v1428, 32
        %v1531 = vpop.permute.xlu0 %1530
        %v1533 = vsel %vm964, %v1529, 0
        %v1536 = vsel %vm964, %v1531, 0
        %1538 = vmatprep.subr.bf16.mxu0 0
        %1539 = vmatpush1.bf16.xpose.msra.mxu0 %v1536
        %1540 = vmatprep.subr.bf16.mxu0 0
        %1541 = vmatpush1.bf16.xpose.msra.mxu0 0
        %1542 = vmatprep.subr.bf16.mxu0 0
        %1543 = vmatpush1.bf16.xpose.msra.mxu0 0
        %1544 = vmatprep.subr.bf16.mxu0 0
        %1545 = vmatpush1.bf16.xpose.msra.mxu0 0
        %1546 = vmatprep.subr.bf16.mxu0 0
        %1547 = vmatpush1.bf16.xpose.msra.mxu0 0
        %1548 = vmatprep.subr.bf16.mxu0 0
        %1549 = vmatpush1.bf16.xpose.msra.mxu0 0
        %1550 = vmatprep.subr.bf16.mxu0 0
        %1551 = vmatpush1.bf16.xpose.msra.mxu0 0
        %1552 = vmatprep.subr.bf16.mxu0 0
        %1553 = vmatpush1.bf16.xpose.msra.mxu0 0
        %1554 = vmatprep.subr.bf16.mxu0 0
        %1555 = vmatpush1.bf16.xpose.msra.mxu0 0
        %1556 = vmatprep.subr.bf16.mxu0 0
        %1557 = vmatpush1.bf16.xpose.msra.mxu0 0
        %1558 = vmatprep.subr.bf16.mxu0 0
        %1559 = vmatpush1.bf16.xpose.msra.mxu0 0
        %1560 = vmatprep.subr.bf16.mxu0 0
        %1561 = vmatpush1.bf16.xpose.msra.mxu0 0
        %1562 = vmatprep.subr.bf16.mxu0 0
        %1563 = vmatpush1.bf16.xpose.msra.mxu0 0
        %1564 = vmatprep.subr.bf16.mxu0 0
        %1565 = vmatpush1.bf16.xpose.msra.mxu0 0
        %1566 = vmatprep.subr.bf16.mxu0 0
        %1567 = vmatpush1.bf16.xpose.msra.mxu0 0
        %1568 = vmatprep.subr.bf16.mxu0 0
        %1569 = vmatpush1.bf16.xpose.msra.mxu0 0
        %1570 = vmatprep.mubr.bf16.mxu0 0
        %1571 = vmatmul.mubr.bf16.gmra.mrb[0].mxu0 %v1533
        %v1572 = vpop.f32.mrb[0].mxu0
        %v1573 = vadd.f32 0.0, %v1572
        %v1574 = vpop.f32.mrb[0].mxu0
        %v1575 = vpop.f32.mrb[0].mxu0
        %v1576 = vpop.f32.mrb[0].mxu0
        %1577 = vdwg.mxu0
        %1578 = vrot.lane.b32.xlu0 %v1428, 80
        %v1579 = vpop.permute.xlu0 %1578
        %1580 = vrot.lane.b32.xlu0 %v1428, 16
        %v1581 = vpop.permute.xlu0 %1580
        %v1583 = vsel %vm964, %v1579, 0
        %v1586 = vsel %vm964, %v1581, 0
        %1588 = vmatprep.subr.bf16.mxu0 0
        %1589 = vmatpush1.bf16.xpose.msra.mxu0 %v1586
        %1590 = vmatprep.subr.bf16.mxu0 0
        %1591 = vmatpush1.bf16.xpose.msra.mxu0 0
        %1592 = vmatprep.subr.bf16.mxu0 0
        %1593 = vmatpush1.bf16.xpose.msra.mxu0 0
        %1594 = vmatprep.subr.bf16.mxu0 0
        %1595 = vmatpush1.bf16.xpose.msra.mxu0 0
        %1596 = vmatprep.subr.bf16.mxu0 0
        %1597 = vmatpush1.bf16.xpose.msra.mxu0 0
        %1598 = vmatprep.subr.bf16.mxu0 0
        %1599 = vmatpush1.bf16.xpose.msra.mxu0 0
        %1600 = vmatprep.subr.bf16.mxu0 0
        %1601 = vmatpush1.bf16.xpose.msra.mxu0 0
        %1602 = vmatprep.subr.bf16.mxu0 0
        %1603 = vmatpush1.bf16.xpose.msra.mxu0 0
        %1604 = vmatprep.subr.bf16.mxu0 0
        %1605 = vmatpush1.bf16.xpose.msra.mxu0 0
        %1606 = vmatprep.subr.bf16.mxu0 0
        %1607 = vmatpush1.bf16.xpose.msra.mxu0 0
        %1608 = vmatprep.subr.bf16.mxu0 0
        %1609 = vmatpush1.bf16.xpose.msra.mxu0 0
        %1610 = vmatprep.subr.bf16.mxu0 0
        %1611 = vmatpush1.bf16.xpose.msra.mxu0 0
        %1612 = vmatprep.subr.bf16.mxu0 0
        %1613 = vmatpush1.bf16.xpose.msra.mxu0 0
        %1614 = vmatprep.subr.bf16.mxu0 0
        %1615 = vmatpush1.bf16.xpose.msra.mxu0 0
        %1616 = vmatprep.subr.bf16.mxu0 0
        %1617 = vmatpush1.bf16.xpose.msra.mxu0 0
        %1618 = vmatprep.subr.bf16.mxu0 0
        %1619 = vmatpush1.bf16.xpose.msra.mxu0 0
        %1620 = vmatprep.mubr.bf16.mxu0 0
        %1621 = vmatmul.mubr.bf16.gmra.mrb[0].mxu0 %v1583
        %v1622 = vpop.f32.mrb[0].mxu0
        %v1623 = vadd.f32 0.0, %v1622
        %v1624 = vpop.f32.mrb[0].mxu0
        %v1625 = vpop.f32.mrb[0].mxu0
        %v1626 = vpop.f32.mrb[0].mxu0
        %1627 = vdwg.mxu0
        %v1628 = vlaneseq
        %v1629 = vshrl.u32 %v1628, 7
        %v1630 = vsub.s32 1, %v1629
        %v1631 = vrot.slane %v959, %v1630
        %v1632 = vadd.f32 %v1473, %v1631
        %v1633 = vadd.f32 %v1523, %v1631
        %v1634 = vadd.f32 %v1573, %v1631
        %v1635 = vadd.f32 %v1623, %v1631
        %v1636 = vsel %vm1169, %v1632, -inf
        %1637 = vmax.xlane.f32.xlu0 %v1636
        %v1638 = vpop.xlane.xlu0 %1637
        %v1639 = vsel %vm1169, %v1633, -inf
        %1640 = vmax.xlane.f32.xlu0 %v1639
        %v1641 = vpop.xlane.xlu0 %1640
        %v1642 = vsel %vm1169, %v1634, -inf
        %1643 = vmax.xlane.f32.xlu0 %v1642
        %v1644 = vpop.xlane.xlu0 %1643
        %v1645 = vsel %vm1169, %v1635, -inf
        %1646 = vmax.xlane.f32.xlu0 %v1645
        %v1647 = vpop.xlane.xlu0 %1646
        %v1648 = vsub.f32 %v1632, %v1638
        %v1649 = vsub.f32 %v1633, %v1641
        %v1650 = vsub.f32 %v1634, %v1644
        %v1651 = vsub.f32 %v1635, %v1647
        %v1652 = vmul.f32 %v1648, 1.442695
        %v1653 = vpow.pop %v1652
        %v1654 = vmul.f32 %v1649, 1.442695
        %v1655 = vpow.pop %v1654
        %v1656 = vmul.f32 %v1650, 1.442695
        %v1657 = vpow.pop %v1656
        %v1658 = vmul.f32 %v1651, 1.442695
        %v1659 = vpow.pop %v1658
        %v1660 = vsel %vm1169, %v1653, 0.0
        %1661 = vadd.xlane.f32.xlu0 %v1660
        %v1662 = vpop.xlane.xlu0 %1661
        %v1663 = vsel %vm1169, %v1655, 0.0
        %1664 = vadd.xlane.f32.xlu0 %v1663
        %v1665 = vpop.xlane.xlu0 %1664
        %v1666 = vsel %vm1169, %v1657, 0.0
        %1667 = vadd.xlane.f32.xlu0 %v1666
        %v1668 = vpop.xlane.xlu0 %1667
        %v1669 = vsel %vm1169, %v1659, 0.0
        %1670 = vadd.xlane.f32.xlu0 %v1669
        %v1671 = vpop.xlane.xlu0 %1670
        %v1672 = vrcp.pop %v1662
        %v1673 = vrcp.pop %v1665
        %v1674 = vrcp.pop %v1668
        %v1675 = vrcp.pop %v1671
        %v1676 = vmul.f32 %v1653, %v1672
        %v1677 = vmul.f32 %v1655, %v1673
        %v1678 = vmul.f32 %v1657, %v1674
        %v1679 = vmul.f32 %v1659, %v1675
        %v1680 = vpack.c.bf16 %v957, %v957
        %v1681 = vpack.c.bf16 %v1676, %v1676
        %v1683 = vsel %vm1169, %v1681, 0
        %v1686 = vsel %vm1219, %v1680, 0
        %1688 = vmatprep.subr.bf16.mxu0 0
        %1689 = vmatpush1.bf16.msra.mxu0 %v1686
        %1690 = vmatprep.subr.bf16.mxu0 0
        %1691 = vmatpush1.bf16.msra.mxu0 0
        %1692 = vmatprep.subr.bf16.mxu0 0
        %1693 = vmatpush1.bf16.msra.mxu0 0
        %1694 = vmatprep.subr.bf16.mxu0 0
        %1695 = vmatpush1.bf16.msra.mxu0 0
        %1696 = vmatprep.subr.bf16.mxu0 0
        %1697 = vmatpush1.bf16.msra.mxu0 0
        %1698 = vmatprep.subr.bf16.mxu0 0
        %1699 = vmatpush1.bf16.msra.mxu0 0
        %1700 = vmatprep.subr.bf16.mxu0 0
        %1701 = vmatpush1.bf16.msra.mxu0 0
        %1702 = vmatprep.subr.bf16.mxu0 0
        %1703 = vmatpush1.bf16.msra.mxu0 0
        %1704 = vmatprep.subr.bf16.mxu0 0
        %1705 = vmatpush1.bf16.msra.mxu0 0
        %1706 = vmatprep.subr.bf16.mxu0 0
        %1707 = vmatpush1.bf16.msra.mxu0 0
        %1708 = vmatprep.subr.bf16.mxu0 0
        %1709 = vmatpush1.bf16.msra.mxu0 0
        %1710 = vmatprep.subr.bf16.mxu0 0
        %1711 = vmatpush1.bf16.msra.mxu0 0
        %1712 = vmatprep.subr.bf16.mxu0 0
        %1713 = vmatpush1.bf16.msra.mxu0 0
        %1714 = vmatprep.subr.bf16.mxu0 0
        %1715 = vmatpush1.bf16.msra.mxu0 0
        %1716 = vmatprep.subr.bf16.mxu0 0
        %1717 = vmatpush1.bf16.msra.mxu0 0
        %1718 = vmatprep.subr.bf16.mxu0 0
        %1719 = vmatpush1.bf16.msra.mxu0 0
        %1720 = vmatprep.mubr.bf16.mxu0 0
        %1721 = vmatmul.mubr.bf16.gmra.mrb[0].mxu0 %v1683
        %v1722 = vpop.f32.mrb[0].mxu0
        %v1723 = vadd.f32 0.0, %v1722
        %v1724 = vpop.f32.mrb[0].mxu0
        %v1725 = vpop.f32.mrb[0].mxu0
        %v1726 = vpop.f32.mrb[0].mxu0
        %1727 = vdwg.mxu0
        %v1728 = vpack.c.bf16 %v1677, %v1677
        %1730 = vrot.lane.b32.xlu0 %v1680, 112
        %v1731 = vpop.permute.xlu0 %1730
        %v1733 = vsel %vm1169, %v1728, 0
        %v1736 = vsel %vm1219, %v1731, 0
        %1738 = vmatprep.subr.bf16.mxu0 0
        %1739 = vmatpush1.bf16.msra.mxu0 %v1736
        %1740 = vmatprep.subr.bf16.mxu0 0
        %1741 = vmatpush1.bf16.msra.mxu0 0
        %1742 = vmatprep.subr.bf16.mxu0 0
        %1743 = vmatpush1.bf16.msra.mxu0 0
        %1744 = vmatprep.subr.bf16.mxu0 0
        %1745 = vmatpush1.bf16.msra.mxu0 0
        %1746 = vmatprep.subr.bf16.mxu0 0
        %1747 = vmatpush1.bf16.msra.mxu0 0
        %1748 = vmatprep.subr.bf16.mxu0 0
        %1749 = vmatpush1.bf16.msra.mxu0 0
        %1750 = vmatprep.subr.bf16.mxu0 0
        %1751 = vmatpush1.bf16.msra.mxu0 0
        %1752 = vmatprep.subr.bf16.mxu0 0
        %1753 = vmatpush1.bf16.msra.mxu0 0
        %1754 = vmatprep.subr.bf16.mxu0 0
        %1755 = vmatpush1.bf16.msra.mxu0 0
        %1756 = vmatprep.subr.bf16.mxu0 0
        %1757 = vmatpush1.bf16.msra.mxu0 0
        %1758 = vmatprep.subr.bf16.mxu0 0
        %1759 = vmatpush1.bf16.msra.mxu0 0
        %1760 = vmatprep.subr.bf16.mxu0 0
        %1761 = vmatpush1.bf16.msra.mxu0 0
        %1762 = vmatprep.subr.bf16.mxu0 0
        %1763 = vmatpush1.bf16.msra.mxu0 0
        %1764 = vmatprep.subr.bf16.mxu0 0
        %1765 = vmatpush1.bf16.msra.mxu0 0
        %1766 = vmatprep.subr.bf16.mxu0 0
        %1767 = vmatpush1.bf16.msra.mxu0 0
        %1768 = vmatprep.subr.bf16.mxu0 0
        %1769 = vmatpush1.bf16.msra.mxu0 0
        %1770 = vmatprep.mubr.bf16.mxu0 0
        %1771 = vmatmul.mubr.bf16.gmra.mrb[0].mxu0 %v1733
        %v1772 = vpop.f32.mrb[0].mxu0
        %v1773 = vadd.f32 0.0, %v1772
        %v1774 = vpop.f32.mrb[0].mxu0
        %v1775 = vpop.f32.mrb[0].mxu0
        %v1776 = vpop.f32.mrb[0].mxu0
        %1777 = vdwg.mxu0
        %v1778 = vpack.c.bf16 %v1678, %v1678
        %1779 = vrot.lane.b32.xlu0 %v1680, 96
        %v1780 = vpop.permute.xlu0 %1779
        %v1782 = vsel %vm1169, %v1778, 0
        %v1785 = vsel %vm1219, %v1780, 0
        %1787 = vmatprep.subr.bf16.mxu0 0
        %1788 = vmatpush1.bf16.msra.mxu0 %v1785
        %1789 = vmatprep.subr.bf16.mxu0 0
        %1790 = vmatpush1.bf16.msra.mxu0 0
        %1791 = vmatprep.subr.bf16.mxu0 0
        %1792 = vmatpush1.bf16.msra.mxu0 0
        %1793 = vmatprep.subr.bf16.mxu0 0
        %1794 = vmatpush1.bf16.msra.mxu0 0
        %1795 = vmatprep.subr.bf16.mxu0 0
        %1796 = vmatpush1.bf16.msra.mxu0 0
        %1797 = vmatprep.subr.bf16.mxu0 0
        %1798 = vmatpush1.bf16.msra.mxu0 0
        %1799 = vmatprep.subr.bf16.mxu0 0
        %1800 = vmatpush1.bf16.msra.mxu0 0
        %1801 = vmatprep.subr.bf16.mxu0 0
        %1802 = vmatpush1.bf16.msra.mxu0 0
        %1803 = vmatprep.subr.bf16.mxu0 0
        %1804 = vmatpush1.bf16.msra.mxu0 0
        %1805 = vmatprep.subr.bf16.mxu0 0
        %1806 = vmatpush1.bf16.msra.mxu0 0
        %1807 = vmatprep.subr.bf16.mxu0 0
        %1808 = vmatpush1.bf16.msra.mxu0 0
        %1809 = vmatprep.subr.bf16.mxu0 0
        %1810 = vmatpush1.bf16.msra.mxu0 0
        %1811 = vmatprep.subr.bf16.mxu0 0
        %1812 = vmatpush1.bf16.msra.mxu0 0
        %1813 = vmatprep.subr.bf16.mxu0 0
        %1814 = vmatpush1.bf16.msra.mxu0 0
        %1815 = vmatprep.subr.bf16.mxu0 0
        %1816 = vmatpush1.bf16.msra.mxu0 0
        %1817 = vmatprep.subr.bf16.mxu0 0
        %1818 = vmatpush1.bf16.msra.mxu0 0
        %1819 = vmatprep.mubr.bf16.mxu0 0
        %1820 = vmatmul.mubr.bf16.gmra.mrb[0].mxu0 %v1782
        %v1821 = vpop.f32.mrb[0].mxu0
        %v1822 = vadd.f32 0.0, %v1821
        %v1823 = vpop.f32.mrb[0].mxu0
        %v1824 = vpop.f32.mrb[0].mxu0
        %v1825 = vpop.f32.mrb[0].mxu0
        %1826 = vdwg.mxu0
        %v1827 = vpack.c.bf16 %v1679, %v1679
        %1828 = vrot.lane.b32.xlu0 %v1680, 80
        %v1829 = vpop.permute.xlu0 %1828
        %v1831 = vsel %vm1169, %v1827, 0
        %v1834 = vsel %vm1219, %v1829, 0
        %1836 = vmatprep.subr.bf16.mxu0 0
        %1837 = vmatpush1.bf16.msra.mxu0 %v1834
        %1838 = vmatprep.subr.bf16.mxu0 0
        %1839 = vmatpush1.bf16.msra.mxu0 0
        %1840 = vmatprep.subr.bf16.mxu0 0
        %1841 = vmatpush1.bf16.msra.mxu0 0
        %1842 = vmatprep.subr.bf16.mxu0 0
        %1843 = vmatpush1.bf16.msra.mxu0 0
        %1844 = vmatprep.subr.bf16.mxu0 0
        %1845 = vmatpush1.bf16.msra.mxu0 0
        %1846 = vmatprep.subr.bf16.mxu0 0
        %1847 = vmatpush1.bf16.msra.mxu0 0
        %1848 = vmatprep.subr.bf16.mxu0 0
        %1849 = vmatpush1.bf16.msra.mxu0 0
        %1850 = vmatprep.subr.bf16.mxu0 0
        %1851 = vmatpush1.bf16.msra.mxu0 0
        %1852 = vmatprep.subr.bf16.mxu0 0
        %1853 = vmatpush1.bf16.msra.mxu0 0
        %1854 = vmatprep.subr.bf16.mxu0 0
        %1855 = vmatpush1.bf16.msra.mxu0 0
        %1856 = vmatprep.subr.bf16.mxu0 0
        %1857 = vmatpush1.bf16.msra.mxu0 0
        %1858 = vmatprep.subr.bf16.mxu0 0
        %1859 = vmatpush1.bf16.msra.mxu0 0
        %1860 = vmatprep.subr.bf16.mxu0 0
        %1861 = vmatpush1.bf16.msra.mxu0 0
        %1862 = vmatprep.subr.bf16.mxu0 0
        %1863 = vmatpush1.bf16.msra.mxu0 0
        %1864 = vmatprep.subr.bf16.mxu0 0
        %1865 = vmatpush1.bf16.msra.mxu0 0
        %1866 = vmatprep.subr.bf16.mxu0 0
        %1867 = vmatpush1.bf16.msra.mxu0 0
        %1868 = vmatprep.mubr.bf16.mxu0 0
        %1869 = vmatmul.mubr.bf16.gmra.mrb[0].mxu0 %v1831
        %v1870 = vpop.f32.mrb[0].mxu0
        %v1871 = vadd.f32 0.0, %v1870
        %v1872 = vpop.f32.mrb[0].mxu0
        %v1873 = vpop.f32.mrb[0].mxu0
        %v1874 = vpop.f32.mrb[0].mxu0
        %1875 = vdwg.mxu0
        %1877 = vrot.lane.b32.xlu0 %v1773, 16
        %v1878 = vpop.permute.xlu0 %1877
        %1881 = vrot.lane.b32.xlu0 %v1822, 32
        %v1882 = vpop.permute.xlu0 %1881
        %1885 = vrot.lane.b32.xlu0 %v1871, 48
        %v1886 = vpop.permute.xlu0 %1885
        %v1888 = vsel %vm964, %v1723, %v1878
        %v1889 = vsel %vm1424, %v1888, %v1882
        %v1890 = vsel %vm1426, %v1889, %v1886
        %v1891 = vpack.c.bf16 %v1890, %v1427
        %v1892 = vld [vmem:[%s761] sm:$0xf]
        %v1893 = vld [vmem:[%s761 + $0x4] sm:$0xf]
        %v1894 = vld [vmem:[%s761 + $0x8] sm:$0xf]
        %v1895 = vld [vmem:[%s761 + $0xc] sm:$0xf]
        %v1896 = vld [vmem:[%s761 + $0x10] sm:$0xf]
        %v1897 = vld [vmem:[%s761 + $0x14] sm:$0xf]
        %v1898 = vld [vmem:[%s761 + $0x18] sm:$0xf]
        %v1899 = vld [vmem:[%s761 + $0x1c] sm:$0xf]
        %v1900 = vld [vmem:[%s764] sm:$0x1]
        %v1902 = vlaneseq
        %v1903 = vshrl.u32 %v1902, 7
        %v1904 = vsub.s32 0, %v1903
        %v1905 = vrot.slane %v1900, %v1904
        %v1915 = vunpack.c.l.b16 %v1892
        %v1916 = vunpack.c.l.b16 %v1893
        %v1917 = vunpack.c.l.b16 %v1894
        %v1918 = vunpack.c.l.b16 %v1895
        %v1919 = vunpack.c.l.b16 %v1896
        %v1920 = vunpack.c.l.b16 %v1897
        %v1921 = vunpack.c.l.b16 %v1898
        %v1922 = vunpack.c.l.b16 %v1899
        %v1923 = vpack.c.b16 %v1916, %v1915
        %v1924 = vpack.c.b16 %v1918, %v1917
        %v1925 = vpack.c.b16 %v1920, %v1919
        %v1926 = vpack.c.b16 %v1922, %v1921
        %v1932 = vsel %vm912, %v1891, 0
        %1934 = vmatprep.subr.bf16.mxu0 0
        %1935 = vmatpush1.bf16.msra.mxu0 %v1923
        %1936 = vmatprep.subr.bf16.mxu0 0
        %1937 = vmatpush1.bf16.msra.mxu0 %v1924
        %1938 = vmatprep.subr.bf16.mxu0 0
        %1939 = vmatpush1.bf16.msra.mxu0 %v1925
        %1940 = vmatprep.subr.bf16.mxu0 0
        %1941 = vmatpush1.bf16.msra.mxu0 %v1926
        %1942 = vmatprep.subr.bf16.mxu0 0
        %1943 = vmatpush1.bf16.msra.mxu0 0
        %1944 = vmatprep.subr.bf16.mxu0 0
        %1945 = vmatpush1.bf16.msra.mxu0 0
        %1946 = vmatprep.subr.bf16.mxu0 0
        %1947 = vmatpush1.bf16.msra.mxu0 0
        %1948 = vmatprep.subr.bf16.mxu0 0
        %1949 = vmatpush1.bf16.msra.mxu0 0
        %1950 = vmatprep.subr.bf16.mxu0 0
        %1951 = vmatpush1.bf16.msra.mxu0 0
        %1952 = vmatprep.subr.bf16.mxu0 0
        %1953 = vmatpush1.bf16.msra.mxu0 0
        %1954 = vmatprep.subr.bf16.mxu0 0
        %1955 = vmatpush1.bf16.msra.mxu0 0
        %1956 = vmatprep.subr.bf16.mxu0 0
        %1957 = vmatpush1.bf16.msra.mxu0 0
        %1958 = vmatprep.subr.bf16.mxu0 0
        %1959 = vmatpush1.bf16.msra.mxu0 0
        %1960 = vmatprep.subr.bf16.mxu0 0
        %1961 = vmatpush1.bf16.msra.mxu0 0
        %1962 = vmatprep.subr.bf16.mxu0 0
        %1963 = vmatpush1.bf16.msra.mxu0 0
        %1964 = vmatprep.subr.bf16.mxu0 0
        %1965 = vmatpush1.bf16.msra.mxu0 0
        %1966 = vmatprep.mubr.bf16.mxu0 0
        %1967 = vmatmul.mubr.bf16.gmra.mrb[0].mxu0 %v1932
        %v1968 = vpop.f32.mrb[0].mxu0
        %v1969 = vadd.f32 %v1905, %v1968
        %v1970 = vpop.f32.mrb[0].mxu0
        %v1971 = vpop.f32.mrb[0].mxu0
        %v1972 = vadd.f32 %v1905, %v1971
        %v1973 = vpop.f32.mrb[0].mxu0
        %1974 = vdwg.mxu0
        %v1975 = vadd.f32 %v1969, %v849
        %v1976 = vadd.f32 %v1972, %v850
        %v1977 = vld [vmem:[%s767] sm:$0x1]
        %v1978 = vld [vmem:[%s770] sm:$0x1]
        %v1979 = vsel %vm912, %v1975, 0.0
        %1980 = vadd.xlane.f32.xlu0 %v1979
        %v1981 = vpop.xlane.xlu0 %1980
        %v1982 = vsel %vm912, %v1976, 0.0
        %1983 = vadd.xlane.f32.xlu0 %v1982
        %v1984 = vpop.xlane.xlu0 %1983
        %v1985 = vrcp.pop 64.0
        %v1986 = vmul.f32 %v1981, %v1985
        %v1987 = vmul.f32 %v1984, %v1985
        %v1988 = vsub.f32 %v1975, %v1986
        %v1989 = vsub.f32 %v1976, %v1987
        %v1990 = vmul.f32 %v1988, %v1988
        %v1991 = vmul.f32 %v1989, %v1989
        %v1992 = vsel %vm912, %v1990, 0.0
        %1993 = vadd.xlane.f32.xlu0 %v1992
        %v1994 = vpop.xlane.xlu0 %1993
        %v1995 = vsel %vm912, %v1991, 0.0
        %1996 = vadd.xlane.f32.xlu0 %v1995
        %v1997 = vpop.xlane.xlu0 %1996
        %v1998 = vmul.f32 %v1994, %v1985
        %v1999 = vmul.f32 %v1997, %v1985
        %v2000 = vadd.f32 %v1998, 1e-12
        %v2001 = vadd.f32 %v1999, 1e-12
        %v2002 = vrsqrt.pop %v2000
        %v2003 = vrsqrt.pop %v2001
        %v2004 = vmul.f32 %v1988, %v2002
        %v2005 = vmul.f32 %v1989, %v2003
        %v2007 = vlaneseq
        %v2008 = vshrl.u32 %v2007, 7
        %v2009 = vsub.s32 0, %v2008
        %v2010 = vrot.slane %v1977, %v2009
        %v2012 = vmul.f32 %v2004, %v2010
        %v2013 = vmul.f32 %v2005, %v2010
        %v2015 = vlaneseq
        %v2016 = vshrl.u32 %v2015, 7
        %v2017 = vsub.s32 0, %v2016
        %v2018 = vrot.slane %v1978, %v2017
        %v2020 = vadd.f32 %v2012, %v2018
        %v2021 = vadd.f32 %v2013, %v2018
        %v2022 = vpack.c.bf16 %v2021, %v2020
        %v2023 = vld [vmem:[%s775] sm:$0xff]
        %v2024 = vld [vmem:[%s775 + $0x8] sm:$0xff]
        %v2025 = vld [vmem:[%s775 + $0x10] sm:$0xff]
        %v2026 = vld [vmem:[%s775 + $0x18] sm:$0xff]
        %v2027 = vld [vmem:[%s775 + $0x20] sm:$0xff]
        %v2028 = vld [vmem:[%s775 + $0x28] sm:$0xff]
        %v2029 = vld [vmem:[%s775 + $0x30] sm:$0xff]
        %v2030 = vld [vmem:[%s775 + $0x38] sm:$0xff]
        %v2031 = vld [vmem:[%s779] sm:$0x3]
        %v2033 = vlaneseq
        %v2034 = vshrl.u32 %v2033, 7
        %v2035 = vsub.s32 0, %v2034
        %v2036 = vrot.slane %v2031, %v2035
        %v2037 = vlaneseq
        %v2038 = vshrl.u32 %v2037, 7
        %v2039 = vsub.s32 1, %v2038
        %v2040 = vrot.slane %v2031, %v2039
        %v2051 = vunpack.c.l.b16 %v2023
        %v2052 = vunpack.c.h.b16 %v2023
        %v2053 = vunpack.c.l.b16 %v2024
        %v2054 = vunpack.c.h.b16 %v2024
        %v2055 = vunpack.c.l.b16 %v2025
        %v2056 = vunpack.c.h.b16 %v2025
        %v2057 = vunpack.c.l.b16 %v2026
        %v2058 = vunpack.c.h.b16 %v2026
        %v2059 = vunpack.c.l.b16 %v2027
        %v2060 = vunpack.c.h.b16 %v2027
        %v2061 = vunpack.c.l.b16 %v2028
        %v2062 = vunpack.c.h.b16 %v2028
        %v2063 = vunpack.c.l.b16 %v2029
        %v2064 = vunpack.c.h.b16 %v2029
        %v2065 = vunpack.c.l.b16 %v2030
        %v2066 = vunpack.c.h.b16 %v2030
        %v2067 = vpack.c.b16 %v2053, %v2051
        %v2068 = vpack.c.b16 %v2054, %v2052
        %v2069 = vpack.c.b16 %v2057, %v2055
        %v2070 = vpack.c.b16 %v2058, %v2056
        %v2071 = vpack.c.b16 %v2061, %v2059
        %v2072 = vpack.c.b16 %v2062, %v2060
        %v2073 = vpack.c.b16 %v2065, %v2063
        %v2074 = vpack.c.b16 %v2066, %v2064
        %v2084 = vsel %vm912, %v2022, 0
        %2086 = vmatprep.subr.bf16.mxu0 %v2068
        %2087 = vmatpush1.bf16.msra.mxu0 %v2067
        %2088 = vmatprep.subr.bf16.mxu0 %v2070
        %2089 = vmatpush1.bf16.msra.mxu0 %v2069
        %2090 = vmatprep.subr.bf16.mxu0 %v2072
        %2091 = vmatpush1.bf16.msra.mxu0 %v2071
        %2092 = vmatprep.subr.bf16.mxu0 %v2074
        %2093 = vmatpush1.bf16.msra.mxu0 %v2073
        %2094 = vmatprep.subr.bf16.mxu0 0
        %2095 = vmatpush1.bf16.msra.mxu0 0
        %2096 = vmatprep.subr.bf16.mxu0 0
        %2097 = vmatpush1.bf16.msra.mxu0 0
        %2098 = vmatprep.subr.bf16.mxu0 0
        %2099 = vmatpush1.bf16.msra.mxu0 0
        %2100 = vmatprep.subr.bf16.mxu0 0
        %2101 = vmatpush1.bf16.msra.mxu0 0
        %2102 = vmatprep.subr.bf16.mxu0 0
        %2103 = vmatpush1.bf16.msra.mxu0 0
        %2104 = vmatprep.subr.bf16.mxu0 0
        %2105 = vmatpush1.bf16.msra.mxu0 0
        %2106 = vmatprep.subr.bf16.mxu0 0
        %2107 = vmatpush1.bf16.msra.mxu0 0
        %2108 = vmatprep.subr.bf16.mxu0 0
        %2109 = vmatpush1.bf16.msra.mxu0 0
        %2110 = vmatprep.subr.bf16.mxu0 0
        %2111 = vmatpush1.bf16.msra.mxu0 0
        %2112 = vmatprep.subr.bf16.mxu0 0
        %2113 = vmatpush1.bf16.msra.mxu0 0
        %2114 = vmatprep.subr.bf16.mxu0 0
        %2115 = vmatpush1.bf16.msra.mxu0 0
        %2116 = vmatprep.subr.bf16.mxu0 0
        %2117 = vmatpush1.bf16.msra.mxu0 0
        %2118 = vmatprep.mubr.bf16.mxu0 0
        %2119 = vmatmul.mubr.bf16.gmra.mrb[0].mxu0 %v2084
        %v2120 = vpop.f32.mrb[0].mxu0
        %v2121 = vadd.f32 %v2036, %v2120
        %v2122 = vpop.f32.mrb[0].mxu0
        %v2123 = vadd.f32 %v2040, %v2122
        %v2124 = vpop.f32.mrb[0].mxu0
        %v2125 = vadd.f32 %v2036, %v2124
        %v2126 = vpop.f32.mrb[0].mxu0
        %v2127 = vadd.f32 %v2040, %v2126
        %2128 = vdwg.mxu0
        %v2129 = vmul.f32 %v2121, %v2121
        %v2130 = vmul.f32 %v2123, %v2123
        %v2131 = vmul.f32 %v2125, %v2125
        %v2132 = vmul.f32 %v2127, %v2127
        %v2133 = vmul.f32 %v2121, %v2129
        %v2134 = vmul.f32 %v2123, %v2130
        %v2135 = vmul.f32 %v2125, %v2131
        %v2136 = vmul.f32 %v2127, %v2132
        %v2137 = vmul.f32 %v2133, 0.044715
        %v2138 = vmul.f32 %v2134, 0.044715
        %v2139 = vmul.f32 %v2135, 0.044715
        %v2140 = vmul.f32 %v2136, 0.044715
        %v2141 = vadd.f32 %v2121, %v2137
        %v2142 = vadd.f32 %v2123, %v2138
        %v2143 = vadd.f32 %v2125, %v2139
        %v2144 = vadd.f32 %v2127, %v2140
        %v2145 = vmul.f32 %v2141, 0.7978846
        %v2146 = vmul.f32 %v2142, 0.7978846
        %v2147 = vmul.f32 %v2143, 0.7978846
        %v2148 = vmul.f32 %v2144, 0.7978846
        %v2149 = vtanh.pop %v2145
        %v2150 = vtanh.pop %v2146
        %v2151 = vtanh.pop %v2147
        %v2152 = vtanh.pop %v2148
        %v2153 = vadd.f32 %v2149, 1.0
        %v2154 = vadd.f32 %v2150, 1.0
        %v2155 = vadd.f32 %v2151, 1.0
        %v2156 = vadd.f32 %v2152, 1.0
        %v2157 = vmul.f32 %v2153, 0.5
        %v2158 = vmul.f32 %v2154, 0.5
        %v2159 = vmul.f32 %v2155, 0.5
        %v2160 = vmul.f32 %v2156, 0.5
        %v2161 = vmul.f32 %v2121, %v2157
        %v2162 = vmul.f32 %v2123, %v2158
        %v2163 = vmul.f32 %v2125, %v2159
        %v2164 = vmul.f32 %v2127, %v2160
        %v2165 = vpack.c.bf16 %v2163, %v2161
        %v2166 = vpack.c.bf16 %v2164, %v2162
        %v2167 = vld [vmem:[%s784] sm:$0xf]
        %v2168 = vld [vmem:[%s784 + $0x4] sm:$0xf]
        %v2169 = vld [vmem:[%s784 + $0x8] sm:$0xf]
        %v2170 = vld [vmem:[%s784 + $0xc] sm:$0xf]
        %v2171 = vld [vmem:[%s784 + $0x10] sm:$0xf]
        %v2172 = vld [vmem:[%s784 + $0x14] sm:$0xf]
        %v2173 = vld [vmem:[%s784 + $0x18] sm:$0xf]
        %v2174 = vld [vmem:[%s784 + $0x1c] sm:$0xf]
        %v2175 = vld [vmem:[%s784 + $0x20] sm:$0xf]
        %v2176 = vld [vmem:[%s784 + $0x24] sm:$0xf]
        %v2177 = vld [vmem:[%s784 + $0x28] sm:$0xf]
        %v2178 = vld [vmem:[%s784 + $0x2c] sm:$0xf]
        %v2179 = vld [vmem:[%s784 + $0x30] sm:$0xf]
        %v2180 = vld [vmem:[%s784 + $0x34] sm:$0xf]
        %v2181 = vld [vmem:[%s784 + $0x38] sm:$0xf]
        %v2182 = vld [vmem:[%s784 + $0x3c] sm:$0xf]
        %v2183 = vld [vmem:[%s784 + $0x40] sm:$0xf]
        %v2184 = vld [vmem:[%s784 + $0x44] sm:$0xf]
        %v2185 = vld [vmem:[%s784 + $0x48] sm:$0xf]
        %v2186 = vld [vmem:[%s784 + $0x4c] sm:$0xf]
        %v2187 = vld [vmem:[%s784 + $0x50] sm:$0xf]
        %v2188 = vld [vmem:[%s784 + $0x54] sm:$0xf]
        %v2189 = vld [vmem:[%s784 + $0x58] sm:$0xf]
        %v2190 = vld [vmem:[%s784 + $0x5c] sm:$0xf]
        %v2191 = vld [vmem:[%s784 + $0x60] sm:$0xf]
        %v2192 = vld [vmem:[%s784 + $0x64] sm:$0xf]
        %v2193 = vld [vmem:[%s784 + $0x68] sm:$0xf]
        %v2194 = vld [vmem:[%s784 + $0x6c] sm:$0xf]
        %v2195 = vld [vmem:[%s784 + $0x70] sm:$0xf]
        %v2196 = vld [vmem:[%s784 + $0x74] sm:$0xf]
        %v2197 = vld [vmem:[%s784 + $0x78] sm:$0xf]
        %v2198 = vld [vmem:[%s784 + $0x7c] sm:$0xf]
        %v2199 = vld [vmem:[%s787] sm:$0x1]
        %v2201 = vlaneseq
        %v2202 = vshrl.u32 %v2201, 7
        %v2203 = vsub.s32 0, %v2202
        %v2204 = vrot.slane %v2199, %v2203
        %v2238 = vunpack.c.l.b16 %v2167
        %v2239 = vunpack.c.l.b16 %v2168
        %v2240 = vunpack.c.l.b16 %v2169
        %v2241 = vunpack.c.l.b16 %v2170
        %v2242 = vunpack.c.l.b16 %v2171
        %v2243 = vunpack.c.l.b16 %v2172
        %v2244 = vunpack.c.l.b16 %v2173
        %v2245 = vunpack.c.l.b16 %v2174
        %v2246 = vunpack.c.l.b16 %v2175
        %v2247 = vunpack.c.l.b16 %v2176
        %v2248 = vunpack.c.l.b16 %v2177
        %v2249 = vunpack.c.l.b16 %v2178
        %v2250 = vunpack.c.l.b16 %v2179
        %v2251 = vunpack.c.l.b16 %v2180
        %v2252 = vunpack.c.l.b16 %v2181
        %v2253 = vunpack.c.l.b16 %v2182
        %v2254 = vunpack.c.l.b16 %v2183
        %v2255 = vunpack.c.l.b16 %v2184
        %v2256 = vunpack.c.l.b16 %v2185
        %v2257 = vunpack.c.l.b16 %v2186
        %v2258 = vunpack.c.l.b16 %v2187
        %v2259 = vunpack.c.l.b16 %v2188
        %v2260 = vunpack.c.l.b16 %v2189
        %v2261 = vunpack.c.l.b16 %v2190
        %v2262 = vunpack.c.l.b16 %v2191
        %v2263 = vunpack.c.l.b16 %v2192
        %v2264 = vunpack.c.l.b16 %v2193
        %v2265 = vunpack.c.l.b16 %v2194
        %v2266 = vunpack.c.l.b16 %v2195
        %v2267 = vunpack.c.l.b16 %v2196
        %v2268 = vunpack.c.l.b16 %v2197
        %v2269 = vunpack.c.l.b16 %v2198
        %v2270 = vpack.c.b16 %v2239, %v2238
        %v2271 = vpack.c.b16 %v2241, %v2240
        %v2272 = vpack.c.b16 %v2243, %v2242
        %v2273 = vpack.c.b16 %v2245, %v2244
        %v2274 = vpack.c.b16 %v2247, %v2246
        %v2275 = vpack.c.b16 %v2249, %v2248
        %v2276 = vpack.c.b16 %v2251, %v2250
        %v2277 = vpack.c.b16 %v2253, %v2252
        %v2278 = vpack.c.b16 %v2255, %v2254
        %v2279 = vpack.c.b16 %v2257, %v2256
        %v2280 = vpack.c.b16 %v2259, %v2258
        %v2281 = vpack.c.b16 %v2261, %v2260
        %v2282 = vpack.c.b16 %v2263, %v2262
        %v2283 = vpack.c.b16 %v2265, %v2264
        %v2284 = vpack.c.b16 %v2267, %v2266
        %v2285 = vpack.c.b16 %v2269, %v2268
        %2302 = vmatprep.subr.bf16.mxu0 0
        %2303 = vmatpush1.bf16.msra.mxu0 %v2270
        %2304 = vmatprep.subr.bf16.mxu0 0
        %2305 = vmatpush1.bf16.msra.mxu0 %v2271
        %2306 = vmatprep.subr.bf16.mxu0 0
        %2307 = vmatpush1.bf16.msra.mxu0 %v2272
        %2308 = vmatprep.subr.bf16.mxu0 0
        %2309 = vmatpush1.bf16.msra.mxu0 %v2273
        %2310 = vmatprep.subr.bf16.mxu0 0
        %2311 = vmatpush1.bf16.msra.mxu0 %v2274
        %2312 = vmatprep.subr.bf16.mxu0 0
        %2313 = vmatpush1.bf16.msra.mxu0 %v2275
        %2314 = vmatprep.subr.bf16.mxu0 0
        %2315 = vmatpush1.bf16.msra.mxu0 %v2276
        %2316 = vmatprep.subr.bf16.mxu0 0
        %2317 = vmatpush1.bf16.msra.mxu0 %v2277
        %2318 = vmatprep.subr.bf16.mxu0 0
        %2319 = vmatpush1.bf16.msra.mxu0 %v2278
        %2320 = vmatprep.subr.bf16.mxu0 0
        %2321 = vmatpush1.bf16.msra.mxu0 %v2279
        %2322 = vmatprep.subr.bf16.mxu0 0
        %2323 = vmatpush1.bf16.msra.mxu0 %v2280
        %2324 = vmatprep.subr.bf16.mxu0 0
        %2325 = vmatpush1.bf16.msra.mxu0 %v2281
        %2326 = vmatprep.subr.bf16.mxu0 0
        %2327 = vmatpush1.bf16.msra.mxu0 %v2282
        %2328 = vmatprep.subr.bf16.mxu0 0
        %2329 = vmatpush1.bf16.msra.mxu0 %v2283
        %2330 = vmatprep.subr.bf16.mxu0 0
        %2331 = vmatpush1.bf16.msra.mxu0 %v2284
        %2332 = vmatprep.subr.bf16.mxu0 0
        %2333 = vmatpush1.bf16.msra.mxu0 %v2285
        %2334 = vmatprep.mubr.bf16.mxu0 %v2166
        %2335 = vmatmul.mubr.bf16.gmra.mrb[0].mxu0 %v2165
        %v2336 = vpop.f32.mrb[0].mxu0
        %v2337 = vadd.f32 %v2204, %v2336
        %v2338 = vpop.f32.mrb[0].mxu0
        %v2339 = vpop.f32.mrb[0].mxu0
        %v2340 = vadd.f32 %v2204, %v2339
        %v2341 = vpop.f32.mrb[0].mxu0
        %2342 = vdwg.mxu0
        %v2343 = vadd.f32 %v2337, %v2020
        %v2344 = vadd.f32 %v2340, %v2021
        %v2345 = vld [vmem:[%s790] sm:$0x1]
        %v2346 = vld [vmem:[%s793] sm:$0x1]
        %v2347 = vsel %vm912, %v2343, 0.0
        %2348 = vadd.xlane.f32.xlu0 %v2347
        %v2349 = vpop.xlane.xlu0 %2348
        %v2350 = vsel %vm912, %v2344, 0.0
        %2351 = vadd.xlane.f32.xlu0 %v2350
        %v2352 = vpop.xlane.xlu0 %2351
        %v2353 = vmul.f32 %v2349, %v1985
        %v2354 = vmul.f32 %v2352, %v1985
        %v2355 = vsub.f32 %v2343, %v2353
        %v2356 = vsub.f32 %v2344, %v2354
        %v2357 = vmul.f32 %v2355, %v2355
        %v2358 = vmul.f32 %v2356, %v2356
        %v2359 = vsel %vm912, %v2357, 0.0
        %2360 = vadd.xlane.f32.xlu0 %v2359
        %v2361 = vpop.xlane.xlu0 %2360
        %v2362 = vsel %vm912, %v2358, 0.0
        %2363 = vadd.xlane.f32.xlu0 %v2362
        %v2364 = vpop.xlane.xlu0 %2363
        %v2365 = vmul.f32 %v2361, %v1985
        %v2366 = vmul.f32 %v2364, %v1985
        %v2367 = vadd.f32 %v2365, 1e-12
        %v2368 = vadd.f32 %v2366, 1e-12
        %v2369 = vrsqrt.pop %v2367
        %v2370 = vrsqrt.pop %v2368
        %v2371 = vmul.f32 %v2355, %v2369
        %v2372 = vmul.f32 %v2356, %v2370
        %v2374 = vlaneseq
        %v2375 = vshrl.u32 %v2374, 7
        %v2376 = vsub.s32 0, %v2375
        %v2377 = vrot.slane %v2345, %v2376
        %v2379 = vmul.f32 %v2371, %v2377
        %v2380 = vmul.f32 %v2372, %v2377
        %v2382 = vlaneseq
        %v2383 = vshrl.u32 %v2382, 7
        %v2384 = vsub.s32 0, %v2383
        %v2385 = vrot.slane %v2346, %v2384
        %v2387 = vadd.f32 %v2379, %v2385
        %v2388 = vadd.f32 %v2380, %v2385
        %2389 = vst.msk [vmem:[#allocation2] sm:$0xff] %vm912, %v2387
        %2390 = vst.msk [vmem:[#allocation2 + $0x8] sm:$0xff] %vm912, %v2388
        %p2391 = scmp.eq.s32.totalorder %s32, 1
        // Predicated region
        $region105: #{bert_classify_forward.1} parent=99 // pred_check
          %p2392 = pneg %p2391
        $region106: #{bert_classify_forward.1} parent=99 // pred_check_branch
          %2394 = sbr.rel (%p2392) target = $region108
        $region107: #{bert_classify_forward.1} parent=99 // pred_region
          %v2396 = vrot.slane %v2388, 7
          %vm2398 = vcmask 1040384
          %v2399 = vsel %vm2398, %v2387, %v2396
          %v2400 = vpack.c.bf16 %v2399, %v2399
          %v2401 = vld [vmem:[%s16] sm:$0xf]
          %v2402 = vld [vmem:[%s16 + $0x4] sm:$0xf]
          %v2403 = vld [vmem:[%s16 + $0x8] sm:$0xf]
          %v2404 = vld [vmem:[%s16 + $0xc] sm:$0xf]
          %v2405 = vld [vmem:[%s16 + $0x10] sm:$0xf]
          %v2406 = vld [vmem:[%s16 + $0x14] sm:$0xf]
          %v2407 = vld [vmem:[%s16 + $0x18] sm:$0xf]
          %v2408 = vld [vmem:[%s16 + $0x1c] sm:$0xf]
          %v2409 = vld [vmem:[%s17] sm:$0x1]
          %v2411 = vlaneseq
          %v2412 = vshrl.u32 %v2411, 7
          %v2413 = vsub.s32 0, %v2412
          %v2414 = vrot.slane %v2409, %v2413
          %v2424 = vunpack.c.l.b16 %v2401
          %v2425 = vunpack.c.l.b16 %v2402
          %v2426 = vunpack.c.l.b16 %v2403
          %v2427 = vunpack.c.l.b16 %v2404
          %v2428 = vunpack.c.l.b16 %v2405
          %v2429 = vunpack.c.l.b16 %v2406
          %v2430 = vunpack.c.l.b16 %v2407
          %v2431 = vunpack.c.l.b16 %v2408
          %v2432 = vpack.c.b16 %v2425, %v2424
          %v2433 = vpack.c.b16 %v2427, %v2426
          %v2434 = vpack.c.b16 %v2429, %v2428
          %v2435 = vpack.c.b16 %v2431, %v2430
          %v2441 = vsel %vm912, %v2400, 0
          %2443 = vmatprep.subr.bf16.mxu0 0
          %2444 = vmatpush1.bf16.msra.mxu0 %v2432
          %2445 = vmatprep.subr.bf16.mxu0 0
          %2446 = vmatpush1.bf16.msra.mxu0 %v2433
          %2447 = vmatprep.subr.bf16.mxu0 0
          %2448 = vmatpush1.bf16.msra.mxu0 %v2434
          %2449 = vmatprep.subr.bf16.mxu0 0
          %2450 = vmatpush1.bf16.msra.mxu0 %v2435
          %2451 = vmatprep.subr.bf16.mxu0 0
          %2452 = vmatpush1.bf16.msra.mxu0 0
          %2453 = vmatprep.subr.bf16.mxu0 0
          %2454 = vmatpush1.bf16.msra.mxu0 0
          %2455 = vmatprep.subr.bf16.mxu0 0
          %2456 = vmatpush1.bf16.msra.mxu0 0
          %2457 = vmatprep.subr.bf16.mxu0 0
          %2458 = vmatpush1.bf16.msra.mxu0 0
          %2459 = vmatprep.subr.bf16.mxu0 0
          %2460 = vmatpush1.bf16.msra.mxu0 0
          %2461 = vmatprep.subr.bf16.mxu0 0
          %2462 = vmatpush1.bf16.msra.mxu0 0
          %2463 = vmatprep.subr.bf16.mxu0 0
          %2464 = vmatpush1.bf16.msra.mxu0 0
          %2465 = vmatprep.subr.bf16.mxu0 0
          %2466 = vmatpush1.bf16.msra.mxu0 0
          %2467 = vmatprep.subr.bf16.mxu0 0
          %2468 = vmatpush1.bf16.msra.mxu0 0
          %2469 = vmatprep.subr.bf16.mxu0 0
          %2470 = vmatpush1.bf16.msra.mxu0 0
          %2471 = vmatprep.subr.bf16.mxu0 0
          %2472 = vmatpush1.bf16.msra.mxu0 0
          %2473 = vmatprep.subr.bf16.mxu0 0
          %2474 = vmatpush1.bf16.msra.mxu0 0
          %2475 = vmatprep.mubr.bf16.mxu0 0
          %2476 = vmatmul.mubr.bf16.gmra.mrb[0].mxu0 %v2441
          %v2477 = vpop.f32.mrb[0].mxu0
          %v2478 = vadd.f32 %v2414, %v2477
          %v2479 = vpop.f32.mrb[0].mxu0
          %v2480 = vpop.f32.mrb[0].mxu0
          %v2481 = vpop.f32.mrb[0].mxu0
          %2482 = vdwg.mxu0
          %v2483 = vtanh.pop %v2478
          %v2484 = vpack.c.bf16 %v2483, %v2483
          %v2485 = vld [vmem:[%s18] sm:$0xf]
          %v2486 = vld [vmem:[%s18 + $0x4] sm:$0xf]
          %v2487 = vld [vmem:[%s18 + $0x8] sm:$0xf]
          %v2488 = vld [vmem:[%s18 + $0xc] sm:$0xf]
          %v2489 = vld [vmem:[%s18 + $0x10] sm:$0xf]
          %v2490 = vld [vmem:[%s18 + $0x14] sm:$0xf]
          %v2491 = vld [vmem:[%s18 + $0x18] sm:$0xf]
          %v2492 = vld [vmem:[%s18 + $0x1c] sm:$0xf]
          %v2493 = vld [vmem:[%s19] sm:$0x1]
          %v2495 = vlaneseq
          %v2496 = vshrl.u32 %v2495, 7
          %v2497 = vsub.s32 0, %v2496
          %v2498 = vrot.slane %v2493, %v2497
          %v2508 = vunpack.c.l.b16 %v2485
          %v2509 = vunpack.c.l.b16 %v2486
          %v2510 = vunpack.c.l.b16 %v2487
          %v2511 = vunpack.c.l.b16 %v2488
          %v2512 = vunpack.c.l.b16 %v2489
          %v2513 = vunpack.c.l.b16 %v2490
          %v2514 = vunpack.c.l.b16 %v2491
          %v2515 = vunpack.c.l.b16 %v2492
          %v2516 = vpack.c.b16 %v2509, %v2508
          %v2517 = vpack.c.b16 %v2511, %v2510
          %v2518 = vpack.c.b16 %v2513, %v2512
          %v2519 = vpack.c.b16 %v2515, %v2514
          %v2525 = vsel %vm912, %v2484, 0
          %2527 = vmatprep.subr.bf16.mxu0 0
          %2528 = vmatpush1.bf16.msra.mxu0 %v2516
          %2529 = vmatprep.subr.bf16.mxu0 0
          %2530 = vmatpush1.bf16.msra.mxu0 %v2517
          %2531 = vmatprep.subr.bf16.mxu0 0
          %2532 = vmatpush1.bf16.msra.mxu0 %v2518
          %2533 = vmatprep.subr.bf16.mxu0 0
          %2534 = vmatpush1.bf16.msra.mxu0 %v2519
          %2535 = vmatprep.subr.bf16.mxu0 0
          %2536 = vmatpush1.bf16.msra.mxu0 0
          %2537 = vmatprep.subr.bf16.mxu0 0
          %2538 = vmatpush1.bf16.msra.mxu0 0
          %2539 = vmatprep.subr.bf16.mxu0 0
          %2540 = vmatpush1.bf16.msra.mxu0 0
          %2541 = vmatprep.subr.bf16.mxu0 0
          %2542 = vmatpush1.bf16.msra.mxu0 0
          %2543 = vmatprep.subr.bf16.mxu0 0
          %2544 = vmatpush1.bf16.msra.mxu0 0
          %2545 = vmatprep.subr.bf16.mxu0 0
          %2546 = vmatpush1.bf16.msra.mxu0 0
          %2547 = vmatprep.subr.bf16.mxu0 0
          %2548 = vmatpush1.bf16.msra.mxu0 0
          %2549 = vmatprep.subr.bf16.mxu0 0
          %2550 = vmatpush1.bf16.msra.mxu0 0
          %2551 = vmatprep.subr.bf16.mxu0 0
          %2552 = vmatpush1.bf16.msra.mxu0 0
          %2553 = vmatprep.subr.bf16.mxu0 0
          %2554 = vmatpush1.bf16.msra.mxu0 0
          %2555 = vmatprep.subr.bf16.mxu0 0
          %2556 = vmatpush1.bf16.msra.mxu0 0
          %2557 = vmatprep.subr.bf16.mxu0 0
          %2558 = vmatpush1.bf16.msra.mxu0 0
          %2559 = vmatprep.mubr.bf16.mxu0 0
          %2560 = vmatmul.mubr.bf16.gmra.mrb[0].mxu0 %v2525
          %v2561 = vpop.f32.mrb[0].mxu0
          %v2562 = vadd.f32 %v2498, %v2561
          %v2563 = vpop.f32.mrb[0].mxu0
          %v2564 = vpop.f32.mrb[0].mxu0
          %v2565 = vpop.f32.mrb[0].mxu0
          %2566 = vdwg.mxu0
          %2567 = vst [vmem:[#allocation3] sm:$0x3] %v2562
        $region108: #{bert_classify_forward.1} parent=99 // pred_fallthru
          _
        // Predicated region
        $region109: #{bert_classify_forward.1} parent=99 // pred_check
          %p2568 = pneg %p525
        $region110: #{bert_classify_forward.1} parent=99 // pred_check_branch
          %2570 = sbr.rel (%p2568) target = $region112
        $region111: #{bert_classify_forward.1} parent=99 // pred_region
          %s2572 = ssub.s32 32, 32
          %2573 = vsyncadd [#allocation4], %s2572
          %s2575 = sshll.u32 [#allocation3], 4
          %s2576 = int_to_ptr.vmem [resolvable:$true] %s2575
          %2578 = dma.vmem_to_hbm [thread:$0]  %s2576, 32, %s20, [#allocation4]
        $region112: #{bert_classify_forward.1} parent=99 // pred_fallthru
          _
        // Predicated region
        $region113: #{bert_classify_forward.1} parent=99 // pred_check
          %p2579 = pneg %p525
        $region114: #{bert_classify_forward.1} parent=99 // pred_check_branch
          %2581 = sbr.rel (%p2579) target = $region116
        $region115: #{bert_classify_forward.1} parent=99 // pred_region
          %2582 = dma.done [#allocation4], 32
        $region116: #{bert_classify_forward.1} parent=99 // pred_fallthru
          _
      $region100: #{bert_classify_forward.1} parent=5 // pred_fallthru
        _
      %p2583 = scmp.le.s32.totalorder 2, %s27
      // Predicated region
      $region117: #{bert_classify_forward.1} parent=5 // pred_check
        %p2584 = pneg %p2583
      $region118: #{bert_classify_forward.1} parent=5 // pred_check_branch
        %2586 = sbr.rel (%p2584) target = $region120
      $region119: #{bert_classify_forward.1} parent=5 // pred_region
        %s2587 = ssub.s32 %s27, 2
      $region120: #{bert_classify_forward.1} parent=5 // pred_fallthru
        _
    $region6: #{bert_classify_forward.1} parent=1 // loop_footer
      %s31 = sadd.s32 1, %s27
    $region7: #{bert_classify_forward.1} parent=1 // loop_footer_branch
      %26 = sbr.rel target = $region3
    $region8: #{bert_classify_forward.1} parent=1 // loop_exit
      _
    %2588 = vsyncpa [#allocation4], 1
    %s2589 = scalar_lea.sflag [#allocation4], 1
    %2590 = vsyncpa %s2589, 1

</llo_original>
